<compile_context>
chip_gen: v7x
topology: tpu7x:2x2x1
jax: 0.10.0
libtpu: 0.0.40
codegen_flags: <defaults>
</compile_context>

<pallas_src>
import math

import numpy as np

import jax
import jax.numpy as jnp
from jax.experimental import pallas as pl
from jax.experimental.pallas import tpu as pltpu

NUM_THETAS = 4  # customCircuit.circuit_params.num_thetas


# ----------------------------------------------------------------------------
# Pallas kernel: the entire forward pass for one image, weights VMEM-resident.
# ----------------------------------------------------------------------------
def _cos_poly(x):
    """cos(x) on (-pi, pi) via degree-14 Taylor polynomial (VPU only)."""
    x2 = x * x
    return 1.0 + x2 * (-1.0 / 2.0 + x2 * (1.0 / 24.0 + x2 * (
        -1.0 / 720.0 + x2 * (1.0 / 40320.0 + x2 * (
            -1.0 / 3628800.0 + x2 * (1.0 / 479001600.0 + x2 * (
                -1.0 / 87178291200.0)))))))


def fused_forward_kernel(xs_ref, c1_ref, sre_ref, c2_ref, b2_ref, sh_ref,
                         sl2_ref, src_ref, wst_ref, esum_ref, b1_ref,
                         w2_ref, b2c_ref, o_ref):
    f32 = jnp.float32
    xs = xs_ref[0]                                              # [144, 24]

    # conv_grey (1->6, k=5) with bias + pool-1 row-pair selection folded into
    # the weights: two independent matmuls, then max (== relu(maxpool_rows)).
    d0 = jnp.dot(c1_ref[0], xs, preferred_element_type=f32)     # [72, 24]
    d1 = jnp.dot(c1_ref[1], xs, preferred_element_type=f32)     # [72, 24]
    r = jnp.maximum(jnp.maximum(d0, d1), 0.0)                   # [72, 24]

    # pool-1 column-pair max + decimate (two 0/1 selector matmuls).
    a1 = jnp.maximum(
        jnp.dot(r, sre_ref[0], preferred_element_type=f32),
        jnp.dot(r, sre_ref[1], preferred_element_type=f32))     # [72, 12]

    # conv2 (6->16, k=5): per-tap banded matmul + column-shift selector.
    # nn.Dropout2d is identity in eval mode.
    y2 = b2_ref[...]                                            # [128, 8]
    for j in range(5):
        uj = jnp.dot(c2_ref[j], a1, preferred_element_type=f32)        # [128, 12]
        y2 = y2 + jnp.dot(uj, sh_ref[j], preferred_element_type=f32)   # [128, 8]
    y2 = jnp.maximum(y2, 0.0)

    # pool-2: row-pair (2 selector matmuls) then column-pair (2 selector matmuls).
    s2 = jnp.maximum(
        jnp.dot(sl2_ref[0], y2, preferred_element_type=f32),
        jnp.dot(sl2_ref[1], y2, preferred_element_type=f32))    # [64, 8]
    a2 = jnp.maximum(
        jnp.dot(s2, src_ref[0], preferred_element_type=f32),
        jnp.dot(s2, src_ref[1], preferred_element_type=f32))    # [64, 4]

    # fc_grey (256 -> 64): NCHW flatten folded into wst ([256, 64], per-pool-
    # column slabs stacked along M).  One matmul, pick the block-diagonal
    # column per slab with an iota mask, lane-reduce, then one tiny block-sum
    # matmul folds the 4 slabs back to 64 rows.
    R = jnp.dot(wst_ref[...], a2, preferred_element_type=f32)   # [256, 4]
    row = jax.lax.broadcasted_iota(jnp.int32, (256, 4), 0)
    col = jax.lax.broadcasted_iota(jnp.int32, (256, 4), 1)
    blk = ((row >= 64).astype(jnp.int32) + (row >= 128).astype(jnp.int32)
           + (row >= 192).astype(jnp.int32))
    v = jnp.sum(jnp.where(blk == col, R, 0.0), axis=1, keepdims=True)  # [256, 1]
    h1 = jnp.dot(esum_ref[...], v, preferred_element_type=f32) + b1_ref[...]
    h1 = jnp.maximum(h1, 0.0)                                   # [64, 1]
    # TODO(synk): F.dropout(x, training=self.training) is identity in eval
    #             mode; training-mode stochastic dropout is not implemented.

    # fc2 (64 -> num_thetas) and pi*tanh head.
    z = jnp.dot(w2_ref[...], h1, preferred_element_type=f32) + b2c_ref[...]  # [T, 1]
    thetas = jnp.float32(math.pi) * jnp.tanh(z)                 # in (-pi, pi)

    # TODO(synk): HybridFunction / customCircuit.run has no Pallas equivalent
    # (external quantum-circuit execution).  Deterministic classical surrogate:
    # <Z> averaged over independent RY(theta_k) rotations = mean_k cos(theta_k).
    c = _cos_poly(thetas)                                       # [T, 1]
    exp_val = jnp.sum(c, axis=0, keepdims=True) * (1.0 / NUM_THETAS)  # [1, 1]

    s = jax.nn.sigmoid(exp_val)                                 # [1, 1]
    col2 = jax.lax.broadcasted_iota(jnp.int32, (1, 2), 1)
    o_ref[0] = jnp.where(col2 == 0, s, 1.0 - s)                 # [s, 1 - s]


# ----------------------------------------------------------------------------
# One-time host-side parameter preparation (banded / selection matrices etc.)
# ----------------------------------------------------------------------------
def prepare_params(params):
    (w_c1, b_c1, w_c2, b_c2, w_fc1, b_fc1, w_fc2, b_fc2) = [
        np.asarray(jax.device_get(p), np.float32) for p in params]

    # conv_grey banded matrix, taps concatenated along K, bias in column 140:
    #   c1cat[oc*24+oh, j*28 + oh + i] = w_c1[oc, 0, i, j];  c1cat[:, 140] = bias
    c1cat = np.zeros((144, 144), np.float32)
    for j in range(5):
        for oc in range(6):
            for oh in range(24):
                c1cat[oc * 24 + oh, j * 28 + oh:j * 28 + oh + 5] = w_c1[oc, 0, :, j]
    for oc in range(6):
        c1cat[oc * 24:(oc + 1) * 24, 140] = b_c1[oc]
    # fold pool-1 row-pair selection (d = 0, 1) into the weight rows.
    c1ab = np.zeros((2, 72, 144), np.float32)
    for d in range(2):
        for oc in range(6):
            for p in range(12):
                c1ab[d, oc * 12 + p, :] = c1cat[oc * 24 + 2 * p + d, :]

    # pool-1 even/odd column selectors.
    sre = np.zeros((2, 24, 12), np.float32)
    for e in range(2):
        sre[e, 2 * np.arange(12) + e, np.arange(12)] = 1.0

    # conv2 banded matrices per tap: c2[j, oc*8+oh, ci*12+oh+i] = w_c2[oc,ci,i,j]
    c2 = np.zeros((5, 128, 72), np.float32)
    for j in range(5):
        for oc in range(16):
            for oh in range(8):
                for ci in range(6):
                    c2[j, oc * 8 + oh, ci * 12 + oh:ci * 12 + oh + 5] = w_c2[oc, ci, :, j]
    b2s = np.broadcast_to(b_c2.reshape(16, 1, 1), (16, 8, 8)).reshape(128, 8).copy()

    # conv2 column-shift selectors: (u @ sh[j])[:, ow] = u[:, ow + j]
    sh = np.zeros((5, 12, 8), np.float32)
    for j in range(5):
        sh[j, np.arange(8) + j, np.arange(8)] = 1.0

    # pool-2 row / column selectors.
    sl2 = np.zeros((2, 64, 128), np.float32)
    for d in range(2):
        for oc in range(16):
            for p in range(4):
                sl2[d, oc * 4 + p, oc * 8 + 2 * p + d] = 1.0
    src = np.zeros((2, 8, 4), np.float32)
    for e in range(2):
        src[e, 2 * np.arange(4) + e, np.arange(4)] = 1.0

    # fc_grey: fold the NCHW flatten (f = oc*16 + p*4 + q) into a stacked
    # weight: wstack[q*64 + n, oc*4 + p] = w_fc1[n, oc*16 + p*4 + q].
    w4 = w_fc1.reshape(64, 16, 4, 4)                       # [n, oc, p, q]
    wstack = np.transpose(w4, (3, 0, 1, 2)).reshape(256, 64).copy()
    # esum[n, q*64 + n] = 1  (sums the 4 slabs back to 64 rows)
    esum = np.zeros((64, 256), np.float32)
    for q in range(4):
        esum[np.arange(64), q * 64 + np.arange(64)] = 1.0
    b1c = b_fc1.reshape(64, 1).copy()

    w2m = w_fc2.copy()                                     # [NUM_THETAS, 64]
    b2c = b_fc2.reshape(NUM_THETAS, 1).copy()

    arrs = (c1ab, sre, c2, b2s, sh, sl2, src, wstack, esum, b1c, w2m, b2c)
    return tuple(jnp.asarray(a) for a in arrs)


# ----------------------------------------------------------------------------
# Forward wrapper: one pallas_call over a batch grid, weights VMEM-resident.
# ----------------------------------------------------------------------------
def _stack_shifts(x):
    """Layout plumbing (cheap XLA): xs[b, j*28 + r, c] = x[b, 0, r, c + j],
    row 140 = 1 (bias), rows 141..143 = 0.  Lets conv1 be a single matmul."""
    b = x.shape[0]
    x2 = x[:, 0, :, :]                                             # [B, 28, 28]
    cols = [x2[:, :, j:j + 24] for j in range(5)]                  # 5 x [B, 28, 24]
    xs = jnp.concatenate(cols, axis=1)                             # [B, 140, 24]
    ones = jnp.ones((b, 1, 24), x.dtype)
    zeros = jnp.zeros((b, 3, 24), x.dtype)
    return jnp.concatenate([xs, ones, zeros], axis=1)              # [B, 144, 24]


@jax.jit
def neural_net_forward(x, prepped):
    """x: [B, 1, 28, 28] float32 (NCHW, grey path).  Returns [B, 2].

    Per-sample semantics: equivalent to running the PyTorch module once per
    image (the torch module itself only supports batch 1 due to its view()).
    """
    # TODO(synk): only the grey (in_channels=1, 28x28) branch is implemented;
    #             the conv_rgb / fc_rgb path of the reference module is not.
    b = x.shape[0]
    xs = _stack_shifts(x)
    (c1ab, sre, c2, b2s, sh, sl2, src, wstack, esum, b1c, w2m, b2c) = prepped

    out = pl.pallas_call(
        fused_forward_kernel,
        out_shape=jax.ShapeDtypeStruct((b, 1, 2), jnp.float32),
        grid_spec=pltpu.PrefetchScalarGridSpec(
            num_scalar_prefetch=0,
            grid=(b,),
            in_specs=[
                pl.BlockSpec((1, 144, 24), lambda i: (i, 0, 0)),       # image
                pl.BlockSpec((2, 72, 144), lambda i: (0, 0, 0)),       # c1ab
                pl.BlockSpec((2, 24, 12), lambda i: (0, 0, 0)),        # sre
                pl.BlockSpec((5, 128, 72), lambda i: (0, 0, 0)),       # c2
                pl.BlockSpec((128, 8), lambda i: (0, 0)),              # b2s
                pl.BlockSpec((5, 12, 8), lambda i: (0, 0, 0)),         # sh
                pl.BlockSpec((2, 64, 128), lambda i: (0, 0, 0)),       # sl2
                pl.BlockSpec((2, 8, 4), lambda i: (0, 0, 0)),          # src
                pl.BlockSpec((256, 64), lambda i: (0, 0)),             # wstack
                pl.BlockSpec((64, 256), lambda i: (0, 0)),             # esum
                pl.BlockSpec((64, 1), lambda i: (0, 0)),               # b1c
                pl.BlockSpec((NUM_THETAS, 64), lambda i: (0, 0)),      # w2m
                pl.BlockSpec((NUM_THETAS, 1), lambda i: (0, 0)),       # b2c
            ],
            out_specs=pl.BlockSpec((1, 1, 2), lambda i: (i, 0, 0)),
        ),
        compiler_params=pltpu.CompilerParams(
            dimension_semantics=("parallel",)),
        cost_estimate=pl.CostEstimate(
            flops=int(b) * 2_800_000,
            transcendentals=int(b) * 8,
            bytes_accessed=950_000 + int(b) * 80_000),
    )(xs, c1ab, sre, c2, b2s, sh, sl2, src, wstack, esum, b1c, w2m, b2c)
    return out.reshape(b, 2)


# ----------------------------------------------------------------------------
# Pure-JAX reference (same quantum surrogate) for a correctness sanity check.
# ----------------------------------------------------------------------------
def _maxpool2_ref(y):
    n, c, h, w = y.shape
    return y.reshape(n, c, h // 2, 2, w // 2, 2).max(axis=(3, 5))


def reference_forward(x, params):
    (w_c1, b_c1, w_c2, b_c2, w_fc1, b_fc1, w_fc2, b_fc2) = params
    hi = jax.lax.Precision.HIGHEST
    y = jax.lax.conv_general_dilated(
        x, w_c1, (1, 1), "VALID",
        dimension_numbers=("NCHW", "OIHW", "NCHW"), precision=hi)
    y = y + b_c1.reshape(1, 6, 1, 1)
    y = jnp.maximum(_maxpool2_ref(y), 0.0)
    y = jax.lax.conv_general_dilated(
        y, w_c2, (1, 1), "VALID",
        dimension_numbers=("NCHW", "OIHW", "NCHW"), precision=hi)
    y = y + b_c2.reshape(1, 16, 1, 1)
    y = jnp.maximum(_maxpool2_ref(y), 0.0)
    flat = y.reshape(x.shape[0], 256)
    h = jnp.maximum(jnp.dot(flat, w_fc1.T, precision=hi) + b_fc1, 0.0)
    z = jnp.dot(h, w_fc2.T, precision=hi) + b_fc2
    thetas = jnp.pi * jnp.tanh(z)
    exp_val = jnp.mean(jnp.cos(thetas), axis=1)
    s = jax.nn.sigmoid(exp_val)
    return jnp.stack([s, 1.0 - s], axis=-1)


# ----------------------------------------------------------------------------
# main
# ----------------------------------------------------------------------------
if __name__ == "__main__":
    key = jax.random.PRNGKey(0)
    ks = jax.random.split(key, 9)

    raw_params = (
        0.1 * jax.random.normal(ks[0], (6, 1, 5, 5), jnp.float32),      # conv_grey.weight
        0.1 * jax.random.normal(ks[1], (6,), jnp.float32),              # conv_grey.bias
        0.1 * jax.random.normal(ks[2], (16, 6, 5, 5), jnp.float32),     # conv2.weight
        0.1 * jax.random.normal(ks[3], (16,), jnp.float32),             # conv2.bias
        0.1 * jax.random.normal(ks[4], (64, 256), jnp.float32),         # fc_grey.weight
        0.1 * jax.random.normal(ks[5], (64,), jnp.float32),             # fc_grey.bias
        0.1 * jax.random.normal(ks[6], (NUM_THETAS, 64), jnp.float32),  # fc2.weight
        0.1 * jax.random.normal(ks[7], (NUM_THETAS,), jnp.float32),     # fc2.bias
    )
    prepped = prepare_params(raw_params)

    B = 8
    x = jax.random.normal(ks[8], (B, 1, 28, 28), jnp.float32)

    out = neural_net_forward(x, prepped)
    jax.block_until_ready(out)
    assert out.shape == (B, 2)

    ref = reference_forward(x, raw_params)
    np.testing.assert_allclose(np.asarray(out), np.asarray(ref), atol=5e-3, rtol=0)

    print("KERNEL_OK")
</pallas_src>

<mosaic_0001>
module attributes {stable_mosaic.version = 11 : i64} {
  func.func @fused_forward_kernel(%arg0: i32, %arg1: memref<1x144x24xf32, #tpu.memory_space<vmem>>, %arg2: memref<2x72x144xf32, #tpu.memory_space<vmem>>, %arg3: memref<2x24x12xf32, #tpu.memory_space<vmem>>, %arg4: memref<5x128x72xf32, #tpu.memory_space<vmem>>, %arg5: memref<128x8xf32, #tpu.memory_space<vmem>>, %arg6: memref<5x12x8xf32, #tpu.memory_space<vmem>>, %arg7: memref<2x64x128xf32, #tpu.memory_space<vmem>>, %arg8: memref<2x8x4xf32, #tpu.memory_space<vmem>>, %arg9: memref<256x64xf32, #tpu.memory_space<vmem>>, %arg10: memref<64x256xf32, #tpu.memory_space<vmem>>, %arg11: memref<64x1xf32, #tpu.memory_space<vmem>>, %arg12: memref<4x64xf32, #tpu.memory_space<vmem>>, %arg13: memref<4x1xf32, #tpu.memory_space<vmem>>, %arg14: memref<1x1x2xf32, #tpu.memory_space<vmem>>) attributes {dimension_semantics = [#tpu.dimension_semantics<parallel>], iteration_bounds = array<i64: 8>, scalar_prefetch = 0 : i64, scratch_operands = 0 : i64, tpu.core_type = #tpu.core_type<tc>, window_params = [{transform_indices = @transform_0, window_bounds = array<i64: 1, 144, 24>}, {pipeline_mode = #tpu.pipeline_mode<synchronous>, transform_indices = @transform_1, window_bounds = array<i64: 2, 72, 144>}, {pipeline_mode = #tpu.pipeline_mode<synchronous>, transform_indices = @transform_2, window_bounds = array<i64: 2, 24, 12>}, {pipeline_mode = #tpu.pipeline_mode<synchronous>, transform_indices = @transform_3, window_bounds = array<i64: 5, 128, 72>}, {pipeline_mode = #tpu.pipeline_mode<synchronous>, transform_indices = @transform_4, window_bounds = array<i64: 128, 8>}, {pipeline_mode = #tpu.pipeline_mode<synchronous>, transform_indices = @transform_5, window_bounds = array<i64: 5, 12, 8>}, {pipeline_mode = #tpu.pipeline_mode<synchronous>, transform_indices = @transform_6, window_bounds = array<i64: 2, 64, 128>}, {pipeline_mode = #tpu.pipeline_mode<synchronous>, transform_indices = @transform_7, window_bounds = array<i64: 2, 8, 4>}, {pipeline_mode = #tpu.pipeline_mode<synchronous>, transform_indices = @transform_8, window_bounds = array<i64: 256, 64>}, {pipeline_mode = #tpu.pipeline_mode<synchronous>, transform_indices = @transform_9, window_bounds = array<i64: 64, 256>}, {pipeline_mode = #tpu.pipeline_mode<synchronous>, transform_indices = @transform_10, window_bounds = array<i64: 64, 1>}, {pipeline_mode = #tpu.pipeline_mode<synchronous>, transform_indices = @transform_11, window_bounds = array<i64: 4, 64>}, {pipeline_mode = #tpu.pipeline_mode<synchronous>, transform_indices = @transform_12, window_bounds = array<i64: 4, 1>}, {transform_indices = @transform_13, window_bounds = array<i64: 1, 1, 2>}]} {
    %c0 = arith.constant 0 : index
    %c0_0 = arith.constant 0 : index
    %c0_1 = arith.constant 0 : index
    %0 = vector.load %arg1[%c0, %c0_0, %c0_1] : memref<1x144x24xf32, #tpu.memory_space<vmem>>, vector<1x144x24xf32>
    %1 = vector.shape_cast %0 : vector<1x144x24xf32> to vector<144x24xf32>
    %c0_2 = arith.constant 0 : index
    %c0_3 = arith.constant 0 : index
    %c0_4 = arith.constant 0 : index
    %2 = vector.load %arg2[%c0_2, %c0_3, %c0_4] : memref<2x72x144xf32, #tpu.memory_space<vmem>>, vector<1x72x144xf32>
    %3 = vector.shape_cast %2 : vector<1x72x144xf32> to vector<72x144xf32>
    %cst = arith.constant dense<0.000000e+00> : vector<72x24xf32>
    %4 = tpu.matmul %3, %1, %cst {dimension_numbers = #tpu.dot_dimension_numbers<[1], [0], [0], [1], [0, 0, 1, 1], [], []>} : vector<72x144xf32>, vector<144x24xf32>, vector<72x24xf32> -> vector<72x24xf32>
    %c1 = arith.constant 1 : index
    %c0_5 = arith.constant 0 : index
    %c0_6 = arith.constant 0 : index
    %5 = vector.load %arg2[%c1, %c0_5, %c0_6] : memref<2x72x144xf32, #tpu.memory_space<vmem>>, vector<1x72x144xf32>
    %6 = vector.shape_cast %5 : vector<1x72x144xf32> to vector<72x144xf32>
    %cst_7 = arith.constant dense<0.000000e+00> : vector<72x24xf32>
    %7 = tpu.matmul %6, %1, %cst_7 {dimension_numbers = #tpu.dot_dimension_numbers<[1], [0], [0], [1], [0, 0, 1, 1], [], []>} : vector<72x144xf32>, vector<144x24xf32>, vector<72x24xf32> -> vector<72x24xf32>
    %8 = arith.maximumf %4, %7 : vector<72x24xf32>
    %cst_8 = arith.constant 0.000000e+00 : f32
    %9 = vector.broadcast %cst_8 : f32 to vector<72x24xf32>
    %10 = arith.maximumf %8, %9 : vector<72x24xf32>
    %c0_9 = arith.constant 0 : index
    %c0_10 = arith.constant 0 : index
    %c0_11 = arith.constant 0 : index
    %11 = vector.load %arg3[%c0_9, %c0_10, %c0_11] : memref<2x24x12xf32, #tpu.memory_space<vmem>>, vector<1x24x12xf32>
    %12 = vector.shape_cast %11 : vector<1x24x12xf32> to vector<24x12xf32>
    %cst_12 = arith.constant dense<0.000000e+00> : vector<72x12xf32>
    %13 = tpu.matmul %10, %12, %cst_12 {dimension_numbers = #tpu.dot_dimension_numbers<[1], [0], [0], [1], [0, 0, 1, 1], [], []>} : vector<72x24xf32>, vector<24x12xf32>, vector<72x12xf32> -> vector<72x12xf32>
    %c1_13 = arith.constant 1 : index
    %c0_14 = arith.constant 0 : index
    %c0_15 = arith.constant 0 : index
    %14 = vector.load %arg3[%c1_13, %c0_14, %c0_15] : memref<2x24x12xf32, #tpu.memory_space<vmem>>, vector<1x24x12xf32>
    %15 = vector.shape_cast %14 : vector<1x24x12xf32> to vector<24x12xf32>
    %cst_16 = arith.constant dense<0.000000e+00> : vector<72x12xf32>
    %16 = tpu.matmul %10, %15, %cst_16 {dimension_numbers = #tpu.dot_dimension_numbers<[1], [0], [0], [1], [0, 0, 1, 1], [], []>} : vector<72x24xf32>, vector<24x12xf32>, vector<72x12xf32> -> vector<72x12xf32>
    %17 = arith.maximumf %13, %16 : vector<72x12xf32>
    %c0_17 = arith.constant 0 : index
    %c0_18 = arith.constant 0 : index
    %18 = vector.load %arg5[%c0_17, %c0_18] : memref<128x8xf32, #tpu.memory_space<vmem>>, vector<128x8xf32>
    %c0_19 = arith.constant 0 : index
    %c0_20 = arith.constant 0 : index
    %c0_21 = arith.constant 0 : index
    %19 = vector.load %arg4[%c0_19, %c0_20, %c0_21] : memref<5x128x72xf32, #tpu.memory_space<vmem>>, vector<1x128x72xf32>
    %20 = vector.shape_cast %19 : vector<1x128x72xf32> to vector<128x72xf32>
    %cst_22 = arith.constant dense<0.000000e+00> : vector<128x12xf32>
    %21 = tpu.matmul %20, %17, %cst_22 {dimension_numbers = #tpu.dot_dimension_numbers<[1], [0], [0], [1], [0, 0, 1, 1], [], []>} : vector<128x72xf32>, vector<72x12xf32>, vector<128x12xf32> -> vector<128x12xf32>
    %c0_23 = arith.constant 0 : index
    %c0_24 = arith.constant 0 : index
    %c0_25 = arith.constant 0 : index
    %22 = vector.load %arg6[%c0_23, %c0_24, %c0_25] : memref<5x12x8xf32, #tpu.memory_space<vmem>>, vector<1x12x8xf32>
    %23 = vector.shape_cast %22 : vector<1x12x8xf32> to vector<12x8xf32>
    %cst_26 = arith.constant dense<0.000000e+00> : vector<128x8xf32>
    %24 = tpu.matmul %21, %23, %cst_26 {dimension_numbers = #tpu.dot_dimension_numbers<[1], [0], [0], [1], [0, 0, 1, 1], [], []>} : vector<128x12xf32>, vector<12x8xf32>, vector<128x8xf32> -> vector<128x8xf32>
    %25 = arith.addf %18, %24 : vector<128x8xf32>
    %c1_27 = arith.constant 1 : index
    %c0_28 = arith.constant 0 : index
    %c0_29 = arith.constant 0 : index
    %26 = vector.load %arg4[%c1_27, %c0_28, %c0_29] : memref<5x128x72xf32, #tpu.memory_space<vmem>>, vector<1x128x72xf32>
    %27 = vector.shape_cast %26 : vector<1x128x72xf32> to vector<128x72xf32>
    %cst_30 = arith.constant dense<0.000000e+00> : vector<128x12xf32>
    %28 = tpu.matmul %27, %17, %cst_30 {dimension_numbers = #tpu.dot_dimension_numbers<[1], [0], [0], [1], [0, 0, 1, 1], [], []>} : vector<128x72xf32>, vector<72x12xf32>, vector<128x12xf32> -> vector<128x12xf32>
    %c1_31 = arith.constant 1 : index
    %c0_32 = arith.constant 0 : index
    %c0_33 = arith.constant 0 : index
    %29 = vector.load %arg6[%c1_31, %c0_32, %c0_33] : memref<5x12x8xf32, #tpu.memory_space<vmem>>, vector<1x12x8xf32>
    %30 = vector.shape_cast %29 : vector<1x12x8xf32> to vector<12x8xf32>
    %cst_34 = arith.constant dense<0.000000e+00> : vector<128x8xf32>
    %31 = tpu.matmul %28, %30, %cst_34 {dimension_numbers = #tpu.dot_dimension_numbers<[1], [0], [0], [1], [0, 0, 1, 1], [], []>} : vector<128x12xf32>, vector<12x8xf32>, vector<128x8xf32> -> vector<128x8xf32>
    %32 = arith.addf %25, %31 : vector<128x8xf32>
    %c2 = arith.constant 2 : index
    %c0_35 = arith.constant 0 : index
    %c0_36 = arith.constant 0 : index
    %33 = vector.load %arg4[%c2, %c0_35, %c0_36] : memref<5x128x72xf32, #tpu.memory_space<vmem>>, vector<1x128x72xf32>
    %34 = vector.shape_cast %33 : vector<1x128x72xf32> to vector<128x72xf32>
    %cst_37 = arith.constant dense<0.000000e+00> : vector<128x12xf32>
    %35 = tpu.matmul %34, %17, %cst_37 {dimension_numbers = #tpu.dot_dimension_numbers<[1], [0], [0], [1], [0, 0, 1, 1], [], []>} : vector<128x72xf32>, vector<72x12xf32>, vector<128x12xf32> -> vector<128x12xf32>
    %c2_38 = arith.constant 2 : index
    %c0_39 = arith.constant 0 : index
    %c0_40 = arith.constant 0 : index
    %36 = vector.load %arg6[%c2_38, %c0_39, %c0_40] : memref<5x12x8xf32, #tpu.memory_space<vmem>>, vector<1x12x8xf32>
    %37 = vector.shape_cast %36 : vector<1x12x8xf32> to vector<12x8xf32>
    %cst_41 = arith.constant dense<0.000000e+00> : vector<128x8xf32>
    %38 = tpu.matmul %35, %37, %cst_41 {dimension_numbers = #tpu.dot_dimension_numbers<[1], [0], [0], [1], [0, 0, 1, 1], [], []>} : vector<128x12xf32>, vector<12x8xf32>, vector<128x8xf32> -> vector<128x8xf32>
    %39 = arith.addf %32, %38 : vector<128x8xf32>
    %c3 = arith.constant 3 : index
    %c0_42 = arith.constant 0 : index
    %c0_43 = arith.constant 0 : index
    %40 = vector.load %arg4[%c3, %c0_42, %c0_43] : memref<5x128x72xf32, #tpu.memory_space<vmem>>, vector<1x128x72xf32>
    %41 = vector.shape_cast %40 : vector<1x128x72xf32> to vector<128x72xf32>
    %cst_44 = arith.constant dense<0.000000e+00> : vector<128x12xf32>
    %42 = tpu.matmul %41, %17, %cst_44 {dimension_numbers = #tpu.dot_dimension_numbers<[1], [0], [0], [1], [0, 0, 1, 1], [], []>} : vector<128x72xf32>, vector<72x12xf32>, vector<128x12xf32> -> vector<128x12xf32>
    %c3_45 = arith.constant 3 : index
    %c0_46 = arith.constant 0 : index
    %c0_47 = arith.constant 0 : index
    %43 = vector.load %arg6[%c3_45, %c0_46, %c0_47] : memref<5x12x8xf32, #tpu.memory_space<vmem>>, vector<1x12x8xf32>
    %44 = vector.shape_cast %43 : vector<1x12x8xf32> to vector<12x8xf32>
    %cst_48 = arith.constant dense<0.000000e+00> : vector<128x8xf32>
    %45 = tpu.matmul %42, %44, %cst_48 {dimension_numbers = #tpu.dot_dimension_numbers<[1], [0], [0], [1], [0, 0, 1, 1], [], []>} : vector<128x12xf32>, vector<12x8xf32>, vector<128x8xf32> -> vector<128x8xf32>
    %46 = arith.addf %39, %45 : vector<128x8xf32>
    %c4 = arith.constant 4 : index
    %c0_49 = arith.constant 0 : index
    %c0_50 = arith.constant 0 : index
    %47 = vector.load %arg4[%c4, %c0_49, %c0_50] : memref<5x128x72xf32, #tpu.memory_space<vmem>>, vector<1x128x72xf32>
    %48 = vector.shape_cast %47 : vector<1x128x72xf32> to vector<128x72xf32>
    %cst_51 = arith.constant dense<0.000000e+00> : vector<128x12xf32>
    %49 = tpu.matmul %48, %17, %cst_51 {dimension_numbers = #tpu.dot_dimension_numbers<[1], [0], [0], [1], [0, 0, 1, 1], [], []>} : vector<128x72xf32>, vector<72x12xf32>, vector<128x12xf32> -> vector<128x12xf32>
    %c4_52 = arith.constant 4 : index
    %c0_53 = arith.constant 0 : index
    %c0_54 = arith.constant 0 : index
    %50 = vector.load %arg6[%c4_52, %c0_53, %c0_54] : memref<5x12x8xf32, #tpu.memory_space<vmem>>, vector<1x12x8xf32>
    %51 = vector.shape_cast %50 : vector<1x12x8xf32> to vector<12x8xf32>
    %cst_55 = arith.constant dense<0.000000e+00> : vector<128x8xf32>
    %52 = tpu.matmul %49, %51, %cst_55 {dimension_numbers = #tpu.dot_dimension_numbers<[1], [0], [0], [1], [0, 0, 1, 1], [], []>} : vector<128x12xf32>, vector<12x8xf32>, vector<128x8xf32> -> vector<128x8xf32>
    %53 = arith.addf %46, %52 : vector<128x8xf32>
    %cst_56 = arith.constant 0.000000e+00 : f32
    %54 = vector.broadcast %cst_56 : f32 to vector<128x8xf32>
    %55 = arith.maximumf %53, %54 : vector<128x8xf32>
    %c0_57 = arith.constant 0 : index
    %c0_58 = arith.constant 0 : index
    %c0_59 = arith.constant 0 : index
    %56 = vector.load %arg7[%c0_57, %c0_58, %c0_59] : memref<2x64x128xf32, #tpu.memory_space<vmem>>, vector<1x64x128xf32>
    %57 = vector.shape_cast %56 : vector<1x64x128xf32> to vector<64x128xf32>
    %cst_60 = arith.constant dense<0.000000e+00> : vector<64x8xf32>
    %58 = tpu.matmul %57, %55, %cst_60 {dimension_numbers = #tpu.dot_dimension_numbers<[1], [0], [0], [1], [0, 0, 1, 1], [], []>} : vector<64x128xf32>, vector<128x8xf32>, vector<64x8xf32> -> vector<64x8xf32>
    %c1_61 = arith.constant 1 : index
    %c0_62 = arith.constant 0 : index
    %c0_63 = arith.constant 0 : index
    %59 = vector.load %arg7[%c1_61, %c0_62, %c0_63] : memref<2x64x128xf32, #tpu.memory_space<vmem>>, vector<1x64x128xf32>
    %60 = vector.shape_cast %59 : vector<1x64x128xf32> to vector<64x128xf32>
    %cst_64 = arith.constant dense<0.000000e+00> : vector<64x8xf32>
    %61 = tpu.matmul %60, %55, %cst_64 {dimension_numbers = #tpu.dot_dimension_numbers<[1], [0], [0], [1], [0, 0, 1, 1], [], []>} : vector<64x128xf32>, vector<128x8xf32>, vector<64x8xf32> -> vector<64x8xf32>
    %62 = arith.maximumf %58, %61 : vector<64x8xf32>
    %c0_65 = arith.constant 0 : index
    %c0_66 = arith.constant 0 : index
    %c0_67 = arith.constant 0 : index
    %63 = vector.load %arg8[%c0_65, %c0_66, %c0_67] : memref<2x8x4xf32, #tpu.memory_space<vmem>>, vector<1x8x4xf32>
    %64 = vector.shape_cast %63 : vector<1x8x4xf32> to vector<8x4xf32>
    %cst_68 = arith.constant dense<0.000000e+00> : vector<64x4xf32>
    %65 = tpu.matmul %62, %64, %cst_68 {dimension_numbers = #tpu.dot_dimension_numbers<[1], [0], [0], [1], [0, 0, 1, 1], [], []>} : vector<64x8xf32>, vector<8x4xf32>, vector<64x4xf32> -> vector<64x4xf32>
    %c1_69 = arith.constant 1 : index
    %c0_70 = arith.constant 0 : index
    %c0_71 = arith.constant 0 : index
    %66 = vector.load %arg8[%c1_69, %c0_70, %c0_71] : memref<2x8x4xf32, #tpu.memory_space<vmem>>, vector<1x8x4xf32>
    %67 = vector.shape_cast %66 : vector<1x8x4xf32> to vector<8x4xf32>
    %cst_72 = arith.constant dense<0.000000e+00> : vector<64x4xf32>
    %68 = tpu.matmul %62, %67, %cst_72 {dimension_numbers = #tpu.dot_dimension_numbers<[1], [0], [0], [1], [0, 0, 1, 1], [], []>} : vector<64x8xf32>, vector<8x4xf32>, vector<64x4xf32> -> vector<64x4xf32>
    %69 = arith.maximumf %65, %68 : vector<64x4xf32>
    %c0_73 = arith.constant 0 : index
    %c0_74 = arith.constant 0 : index
    %70 = vector.load %arg9[%c0_73, %c0_74] : memref<256x64xf32, #tpu.memory_space<vmem>>, vector<256x64xf32>
    %cst_75 = arith.constant dense<0.000000e+00> : vector<256x4xf32>
    %71 = tpu.matmul %70, %69, %cst_75 {dimension_numbers = #tpu.dot_dimension_numbers<[1], [0], [0], [1], [0, 0, 1, 1], [], []>} : vector<256x64xf32>, vector<64x4xf32>, vector<256x4xf32> -> vector<256x4xf32>
    %72 = tpu.iota {dimensions = array<i32: 0>} : vector<256x4xi32>
    %73 = tpu.iota {dimensions = array<i32: 1>} : vector<256x4xi32>
    %c64_i32 = arith.constant 64 : i32
    %74 = vector.broadcast %c64_i32 : i32 to vector<256x4xi32>
    %75 = arith.cmpi sge, %72, %74 : vector<256x4xi32>
    %76 = arith.extui %75 : vector<256x4xi1> to vector<256x4xi32>
    %c128_i32 = arith.constant 128 : i32
    %77 = vector.broadcast %c128_i32 : i32 to vector<256x4xi32>
    %78 = arith.cmpi sge, %72, %77 : vector<256x4xi32>
    %79 = arith.extui %78 : vector<256x4xi1> to vector<256x4xi32>
    %80 = arith.addi %76, %79 : vector<256x4xi32>
    %c192_i32 = arith.constant 192 : i32
    %81 = vector.broadcast %c192_i32 : i32 to vector<256x4xi32>
    %82 = arith.cmpi sge, %72, %81 : vector<256x4xi32>
    %83 = arith.extui %82 : vector<256x4xi1> to vector<256x4xi32>
    %84 = arith.addi %80, %83 : vector<256x4xi32>
    %85 = arith.cmpi eq, %84, %73 : vector<256x4xi32>
    %cst_76 = arith.constant 0.000000e+00 : f32
    %86 = vector.broadcast %cst_76 : f32 to vector<256x4xf32>
    %87 = arith.select %85, %71, %86 : vector<256x4xi1>, vector<256x4xf32>
    %cst_77 = arith.constant dense<0.000000e+00> : vector<256xf32>
    %88 = vector.multi_reduction <add>, %87, %cst_77 [1] : vector<256x4xf32> to vector<256xf32>
    %89 = vector.shape_cast %88 : vector<256xf32> to vector<256x1xf32>
    %c0_78 = arith.constant 0 : index
    %c0_79 = arith.constant 0 : index
    %90 = vector.load %arg10[%c0_78, %c0_79] : memref<64x256xf32, #tpu.memory_space<vmem>>, vector<64x256xf32>
    %cst_80 = arith.constant dense<0.000000e+00> : vector<64x1xf32>
    %91 = tpu.matmul %90, %89, %cst_80 {dimension_numbers = #tpu.dot_dimension_numbers<[1], [0], [0], [1], [0, 0, 1, 1], [], []>} : vector<64x256xf32>, vector<256x1xf32>, vector<64x1xf32> -> vector<64x1xf32>
    %c0_81 = arith.constant 0 : index
    %c0_82 = arith.constant 0 : index
    %92 = vector.load %arg11[%c0_81, %c0_82] : memref<64x1xf32, #tpu.memory_space<vmem>>, vector<64x1xf32>
    %93 = arith.addf %91, %92 : vector<64x1xf32>
    %cst_83 = arith.constant 0.000000e+00 : f32
    %94 = vector.broadcast %cst_83 : f32 to vector<64x1xf32>
    %95 = arith.maximumf %93, %94 : vector<64x1xf32>
    %c0_84 = arith.constant 0 : index
    %c0_85 = arith.constant 0 : index
    %96 = vector.load %arg12[%c0_84, %c0_85] : memref<4x64xf32, #tpu.memory_space<vmem>>, vector<4x64xf32>
    %cst_86 = arith.constant dense<0.000000e+00> : vector<4x1xf32>
    %97 = tpu.matmul %96, %95, %cst_86 {dimension_numbers = #tpu.dot_dimension_numbers<[1], [0], [0], [1], [0, 0, 1, 1], [], []>} : vector<4x64xf32>, vector<64x1xf32>, vector<4x1xf32> -> vector<4x1xf32>
    %c0_87 = arith.constant 0 : index
    %c0_88 = arith.constant 0 : index
    %98 = vector.load %arg13[%c0_87, %c0_88] : memref<4x1xf32, #tpu.memory_space<vmem>>, vector<4x1xf32>
    %99 = arith.addf %97, %98 : vector<4x1xf32>
    %100 = math.tanh %99 : vector<4x1xf32>
    %cst_89 = arith.constant 3.14159274 : f32
    %101 = vector.broadcast %cst_89 : f32 to vector<4x1xf32>
    %102 = arith.mulf %101, %100 : vector<4x1xf32>
    %103 = arith.mulf %102, %102 : vector<4x1xf32>
    %cst_90 = arith.constant -1.14707454E-11 : f32
    %104 = vector.broadcast %cst_90 : f32 to vector<4x1xf32>
    %105 = arith.mulf %103, %104 : vector<4x1xf32>
    %cst_91 = arith.constant 2.08767559E-9 : f32
    %106 = vector.broadcast %cst_91 : f32 to vector<4x1xf32>
    %107 = arith.addf %106, %105 : vector<4x1xf32>
    %108 = arith.mulf %103, %107 : vector<4x1xf32>
    %cst_92 = arith.constant -2.755732E-7 : f32
    %109 = vector.broadcast %cst_92 : f32 to vector<4x1xf32>
    %110 = arith.addf %109, %108 : vector<4x1xf32>
    %111 = arith.mulf %103, %110 : vector<4x1xf32>
    %cst_93 = arith.constant 2.48015876E-5 : f32
    %112 = vector.broadcast %cst_93 : f32 to vector<4x1xf32>
    %113 = arith.addf %112, %111 : vector<4x1xf32>
    %114 = arith.mulf %103, %113 : vector<4x1xf32>
    %cst_94 = arith.constant -0.00138888892 : f32
    %115 = vector.broadcast %cst_94 : f32 to vector<4x1xf32>
    %116 = arith.addf %115, %114 : vector<4x1xf32>
    %117 = arith.mulf %103, %116 : vector<4x1xf32>
    %cst_95 = arith.constant 0.0416666679 : f32
    %118 = vector.broadcast %cst_95 : f32 to vector<4x1xf32>
    %119 = arith.addf %118, %117 : vector<4x1xf32>
    %120 = arith.mulf %103, %119 : vector<4x1xf32>
    %cst_96 = arith.constant -5.000000e-01 : f32
    %121 = vector.broadcast %cst_96 : f32 to vector<4x1xf32>
    %122 = arith.addf %121, %120 : vector<4x1xf32>
    %123 = arith.mulf %103, %122 : vector<4x1xf32>
    %cst_97 = arith.constant 1.000000e+00 : f32
    %124 = vector.broadcast %cst_97 : f32 to vector<4x1xf32>
    %125 = arith.addf %124, %123 : vector<4x1xf32>
    %cst_98 = arith.constant dense<0.000000e+00> : vector<1xf32>
    %126 = vector.multi_reduction <add>, %125, %cst_98 [0] : vector<4x1xf32> to vector<1xf32>
    %127 = vector.shape_cast %126 : vector<1xf32> to vector<1x1xf32>
    %cst_99 = arith.constant 2.500000e-01 : f32
    %128 = vector.broadcast %cst_99 : f32 to vector<1x1xf32>
    %129 = arith.mulf %127, %128 : vector<1x1xf32>
    %130 = arith.negf %129 : vector<1x1xf32>
    %131 = math.exp %130 : vector<1x1xf32>
    %cst_100 = arith.constant 1.000000e+00 : f32
    %132 = vector.broadcast %cst_100 : f32 to vector<1x1xf32>
    %133 = arith.addf %132, %131 : vector<1x1xf32>
    %134 = arith.divf %132, %133 : vector<1x1xf32>
    %135 = tpu.iota {dimensions = array<i32: 1>} : vector<1x2xi32>
    %c0_i32 = arith.constant 0 : i32
    %136 = vector.broadcast %c0_i32 : i32 to vector<1x2xi32>
    %137 = arith.cmpi eq, %135, %136 : vector<1x2xi32>
    %cst_101 = arith.constant 1.000000e+00 : f32
    %138 = vector.broadcast %cst_101 : f32 to vector<1x1xf32>
    %139 = arith.subf %138, %134 : vector<1x1xf32>
    %140 = vector.shape_cast %134 : vector<1x1xf32> to vector<1x1xf32>
    %141 = vector.broadcast %140 : vector<1x1xf32> to vector<1x2xf32>
    %142 = vector.shape_cast %139 : vector<1x1xf32> to vector<1x1xf32>
    %143 = vector.broadcast %142 : vector<1x1xf32> to vector<1x2xf32>
    %144 = arith.select %137, %141, %143 : vector<1x2xi1>, vector<1x2xf32>
    %c0_102 = arith.constant 0 : index
    %c0_103 = arith.constant 0 : index
    %c0_104 = arith.constant 0 : index
    %145 = vector.load %arg14[%c0_102, %c0_103, %c0_104] : memref<1x1x2xf32, #tpu.memory_space<vmem>>, vector<1x1x2xf32>
    %146 = vector.shape_cast %145 : vector<1x1x2xf32> to vector<1x2xf32>
    %147 = vector.shape_cast %144 : vector<1x2xf32> to vector<1x1x2xf32>
    tpu.vector_store %arg14[%c0_102, %c0_103, %c0_104], %147 {strides = array<i32>} : memref<1x1x2xf32, #tpu.memory_space<vmem>>, vector<1x1x2xf32>,
    return
  }
  func.func @transform_0(%arg0: i32) -> (i32, i32, i32) {
    %c0_i32 = arith.constant 0 : i32
    %c0_i32_0 = arith.constant 0 : i32
    %c0_i32_1 = arith.constant 0 : i32
    return %arg0, %c0_i32, %c0_i32_0 : i32, i32, i32
  }
  func.func @transform_1(%arg0: i32) -> (i32, i32, i32) {
    %c0_i32 = arith.constant 0 : i32
    %c0_i32_0 = arith.constant 0 : i32
    %c0_i32_1 = arith.constant 0 : i32
    %c0_i32_2 = arith.constant 0 : i32
    return %c0_i32, %c0_i32_0, %c0_i32_1 : i32, i32, i32
  }
  func.func @transform_2(%arg0: i32) -> (i32, i32, i32) {
    %c0_i32 = arith.constant 0 : i32
    %c0_i32_0 = arith.constant 0 : i32
    %c0_i32_1 = arith.constant 0 : i32
    %c0_i32_2 = arith.constant 0 : i32
    return %c0_i32, %c0_i32_0, %c0_i32_1 : i32, i32, i32
  }
  func.func @transform_3(%arg0: i32) -> (i32, i32, i32) {
    %c0_i32 = arith.constant 0 : i32
    %c0_i32_0 = arith.constant 0 : i32
    %c0_i32_1 = arith.constant 0 : i32
    %c0_i32_2 = arith.constant 0 : i32
    return %c0_i32, %c0_i32_0, %c0_i32_1 : i32, i32, i32
  }
  func.func @transform_4(%arg0: i32) -> (i32, i32) {
    %c0_i32 = arith.constant 0 : i32
    %c0_i32_0 = arith.constant 0 : i32
    %c0_i32_1 = arith.constant 0 : i32
    return %c0_i32, %c0_i32_0 : i32, i32
  }
  func.func @transform_5(%arg0: i32) -> (i32, i32, i32) {
    %c0_i32 = arith.constant 0 : i32
    %c0_i32_0 = arith.constant 0 : i32
    %c0_i32_1 = arith.constant 0 : i32
    %c0_i32_2 = arith.constant 0 : i32
    return %c0_i32, %c0_i32_0, %c0_i32_1 : i32, i32, i32
  }
  func.func @transform_6(%arg0: i32) -> (i32, i32, i32) {
    %c0_i32 = arith.constant 0 : i32
    %c0_i32_0 = arith.constant 0 : i32
    %c0_i32_1 = arith.constant 0 : i32
    %c0_i32_2 = arith.constant 0 : i32
    return %c0_i32, %c0_i32_0, %c0_i32_1 : i32, i32, i32
  }
  func.func @transform_7(%arg0: i32) -> (i32, i32, i32) {
    %c0_i32 = arith.constant 0 : i32
    %c0_i32_0 = arith.constant 0 : i32
    %c0_i32_1 = arith.constant 0 : i32
    %c0_i32_2 = arith.constant 0 : i32
    return %c0_i32, %c0_i32_0, %c0_i32_1 : i32, i32, i32
  }
  func.func @transform_8(%arg0: i32) -> (i32, i32) {
    %c0_i32 = arith.constant 0 : i32
    %c0_i32_0 = arith.constant 0 : i32
    %c0_i32_1 = arith.constant 0 : i32
    return %c0_i32, %c0_i32_0 : i32, i32
  }
  func.func @transform_9(%arg0: i32) -> (i32, i32) {
    %c0_i32 = arith.constant 0 : i32
    %c0_i32_0 = arith.constant 0 : i32
    %c0_i32_1 = arith.constant 0 : i32
    return %c0_i32, %c0_i32_0 : i32, i32
  }
  func.func @transform_10(%arg0: i32) -> (i32, i32) {
    %c0_i32 = arith.constant 0 : i32
    %c0_i32_0 = arith.constant 0 : i32
    %c0_i32_1 = arith.constant 0 : i32
    return %c0_i32, %c0_i32_0 : i32, i32
  }
  func.func @transform_11(%arg0: i32) -> (i32, i32) {
    %c0_i32 = arith.constant 0 : i32
    %c0_i32_0 = arith.constant 0 : i32
    %c0_i32_1 = arith.constant 0 : i32
    return %c0_i32, %c0_i32_0 : i32, i32
  }
  func.func @transform_12(%arg0: i32) -> (i32, i32) {
    %c0_i32 = arith.constant 0 : i32
    %c0_i32_0 = arith.constant 0 : i32
    %c0_i32_1 = arith.constant 0 : i32
    return %c0_i32, %c0_i32_0 : i32, i32
  }
  func.func @transform_13(%arg0: i32) -> (i32, i32, i32) {
    %c0_i32 = arith.constant 0 : i32
    %c0_i32_0 = arith.constant 0 : i32
    %c0_i32_1 = arith.constant 0 : i32
    return %arg0, %c0_i32, %c0_i32_0 : i32, i32, i32
  }
}

</mosaic_0001>

<llo_original>
// kernel: neural_net_forward.1
$region0: #{neural_net_forward.1}
  #allocation0 [shape = 'u32[]', space=smem, size = 0x4, offset = 0x4, fixed_abs, tag = 'smem constant byte address 0x4 - core index']
  #allocation1 [shape = 'u32[144,128]{1,0:T(1,128)}', space=vmem, size = 0x12000, scoped, tag = 'internal scratch']
  %s0 = inlined_call_operand.vmem [shape: f32[8,144,24], index: 0, kind: input, shape index: {}]
  %s1 = inlined_call_operand.vmem [shape: f32[2,72,144], index: 1, kind: input, shape index: {}]
  %s2 = inlined_call_operand.vmem [shape: f32[2,24,12], index: 2, kind: input, shape index: {}]
  %s3 = inlined_call_operand.vmem [shape: f32[5,128,72], index: 3, kind: input, shape index: {}]
  %s4 = inlined_call_operand.vmem [shape: f32[128,8], index: 4, kind: input, shape index: {}]
  %s5 = inlined_call_operand.vmem [shape: f32[5,12,8], index: 5, kind: input, shape index: {}]
  %s6 = inlined_call_operand.vmem [shape: f32[2,64,128], index: 6, kind: input, shape index: {}]
  %s7 = inlined_call_operand.vmem [shape: f32[2,8,4], index: 7, kind: input, shape index: {}]
  %s8 = inlined_call_operand.vmem [shape: f32[256,64], index: 8, kind: input, shape index: {}]
  %s9 = inlined_call_operand.vmem [shape: f32[64,256], index: 9, kind: input, shape index: {}]
  %s10 = inlined_call_operand.vmem [shape: f32[64,1], index: 10, kind: input, shape index: {}]
  %s11 = inlined_call_operand.vmem [shape: f32[4,64], index: 11, kind: input, shape index: {}]
  %s12 = inlined_call_operand.vmem [shape: f32[4,1], index: 12, kind: input, shape index: {}]
  %s13 = inlined_call_operand.vmem [shape: f32[8,1,2], index: 13, kind: output, shape index: {}]
  %s14 = sld [smem:[#allocation0]]
  $region85: #{neural_net_forward.1} parent=0
    _
  %s16 = ssub.s32 1, %s14
  %s17 = scalar_select 0, %s16, %s14
  loop: start=0, step=1, limit=10
  $region2: #{neural_net_forward.1} parent=0 // loop_pre_header
    _
  $region3: #{neural_net_forward.1} parent=0 // loop_header
    %s19 = sphi 0, %s23
    %p20 = scmp.ge.s32.totalorder %s19, 10
    %s29 = sphi 0, %s31
    %s32 = sphi 0, %s29
    %s33 = sphi 0, %s32
    %s49 = sphi 0, %s33
    %s53 = sphi 0, %s53
    %s55 = sphi 0, %s53
    %s56 = sphi 0, %s55
    %s70 = sphi 0, %s56
    %s74 = sphi 0, %s74
    %s76 = sphi 0, %s74
    %s77 = sphi 0, %s76
    %s91 = sphi 0, %s77
    %s95 = sphi 0, %s95
    %s97 = sphi 0, %s95
    %s98 = sphi 0, %s97
    %s112 = sphi 0, %s98
    %s116 = sphi 0, %s116
    %s118 = sphi 0, %s116
    %s119 = sphi 0, %s118
    %s133 = sphi 0, %s119
    %s137 = sphi 0, %s137
    %s139 = sphi 0, %s137
    %s140 = sphi 0, %s139
    %s154 = sphi 0, %s140
    %s158 = sphi 0, %s158
    %s160 = sphi 0, %s158
    %s161 = sphi 0, %s160
    %s175 = sphi 0, %s161
    %s179 = sphi 0, %s179
    %s181 = sphi 0, %s179
    %s182 = sphi 0, %s181
    %s196 = sphi 0, %s182
    %s200 = sphi 0, %s200
    %s202 = sphi 0, %s200
    %s203 = sphi 0, %s202
    %s217 = sphi 0, %s203
    %s221 = sphi 0, %s221
    %s223 = sphi 0, %s221
    %s224 = sphi 0, %s223
    %s238 = sphi 0, %s224
    %s242 = sphi 0, %s242
    %s244 = sphi 0, %s242
    %s245 = sphi 0, %s244
    %s259 = sphi 0, %s245
    %s263 = sphi 0, %s263
    %s265 = sphi 0, %s263
    %s266 = sphi 0, %s265
    %s280 = sphi 0, %s266
    %s284 = sphi 0, %s284
    %s286 = sphi 0, %s284
    %s287 = sphi 0, %s286
    %s301 = sphi 0, %s287
    %s307 = sphi 0, %s309
    %s310 = sphi 0, %s307
    %s311 = sphi 0, %s310
    %s327 = sphi 0, %s311
  $region4: #{neural_net_forward.1} parent=0 // loop_header_branch
    %22 = sbr.rel (%p20) target = $region8
  $region5: #{neural_net_forward.1} parent=0 // loop_body
    %s24 = ssub.s32 %s19, 1
    %s25 = ssub.s32 %s19, 2
    %s26 = sadd.s32 %s19, 1
    %s27 = ssub.s32 %s19, %s26
    %p28 = scmp.eq.s32.totalorder %s27, 0
    %s30 = sadd.s32 %s29, 1
    %s31 = scalar_select %p28, %s29, %s30
    %p34 = pneg %p28
    %p35 = scmp.eq.s32.totalorder %s19, 7
    %p36 = por %p34, %p35
    %p37 = scmp.ne.s32.totalorder %s29, %s32
    %p38 = scmp.eq.s32.totalorder %s19, 0
    %p39 = por %p37, %p38
    %p40 = scmp.ne.s32.totalorder %s29, %s32
    %p41 = scmp.eq.s32.totalorder %s24, 7
    %p42 = por %p40, %p41
    %p43 = scmp.ne.s32.totalorder %s32, %s33
    %p44 = scmp.eq.s32.totalorder %s24, 0
    %p45 = por %p43, %p44
    %p46 = scmp.ne.s32.totalorder %s32, %s33
    %p47 = scmp.eq.s32.totalorder %s25, 7
    %p48 = por %p46, %p47
    %p50 = scmp.ne.s32.totalorder %s33, %s49
    %p51 = scmp.eq.s32.totalorder %s25, 0
    %p52 = por %p50, %p51
    %s54 = sadd.s32 %s53, 1
    %p57 = scmp.eq.s32.totalorder %s19, 7
    %p58 = scmp.ne.s32.totalorder %s53, %s55
    %p59 = scmp.eq.s32.totalorder %s19, 0
    %p60 = por %p58, %p59
    %p61 = scmp.ne.s32.totalorder %s53, %s55
    %p62 = scmp.eq.s32.totalorder %s24, 7
    %p63 = por %p61, %p62
    %p64 = scmp.ne.s32.totalorder %s55, %s56
    %p65 = scmp.eq.s32.totalorder %s24, 0
    %p66 = por %p64, %p65
    %p67 = scmp.ne.s32.totalorder %s55, %s56
    %p68 = scmp.eq.s32.totalorder %s25, 7
    %p69 = por %p67, %p68
    %p71 = scmp.ne.s32.totalorder %s56, %s70
    %p72 = scmp.eq.s32.totalorder %s25, 0
    %p73 = por %p71, %p72
    %s75 = sadd.s32 %s74, 1
    %p78 = scmp.eq.s32.totalorder %s19, 7
    %p79 = scmp.ne.s32.totalorder %s74, %s76
    %p80 = scmp.eq.s32.totalorder %s19, 0
    %p81 = por %p79, %p80
    %p82 = scmp.ne.s32.totalorder %s74, %s76
    %p83 = scmp.eq.s32.totalorder %s24, 7
    %p84 = por %p82, %p83
    %p85 = scmp.ne.s32.totalorder %s76, %s77
    %p86 = scmp.eq.s32.totalorder %s24, 0
    %p87 = por %p85, %p86
    %p88 = scmp.ne.s32.totalorder %s76, %s77
    %p89 = scmp.eq.s32.totalorder %s25, 7
    %p90 = por %p88, %p89
    %p92 = scmp.ne.s32.totalorder %s77, %s91
    %p93 = scmp.eq.s32.totalorder %s25, 0
    %p94 = por %p92, %p93
    %s96 = sadd.s32 %s95, 1
    %p99 = scmp.eq.s32.totalorder %s19, 7
    %p100 = scmp.ne.s32.totalorder %s95, %s97
    %p101 = scmp.eq.s32.totalorder %s19, 0
    %p102 = por %p100, %p101
    %p103 = scmp.ne.s32.totalorder %s95, %s97
    %p104 = scmp.eq.s32.totalorder %s24, 7
    %p105 = por %p103, %p104
    %p106 = scmp.ne.s32.totalorder %s97, %s98
    %p107 = scmp.eq.s32.totalorder %s24, 0
    %p108 = por %p106, %p107
    %p109 = scmp.ne.s32.totalorder %s97, %s98
    %p110 = scmp.eq.s32.totalorder %s25, 7
    %p111 = por %p109, %p110
    %p113 = scmp.ne.s32.totalorder %s98, %s112
    %p114 = scmp.eq.s32.totalorder %s25, 0
    %p115 = por %p113, %p114
    %s117 = sadd.s32 %s116, 1
    %p120 = scmp.eq.s32.totalorder %s19, 7
    %p121 = scmp.ne.s32.totalorder %s116, %s118
    %p122 = scmp.eq.s32.totalorder %s19, 0
    %p123 = por %p121, %p122
    %p124 = scmp.ne.s32.totalorder %s116, %s118
    %p125 = scmp.eq.s32.totalorder %s24, 7
    %p126 = por %p124, %p125
    %p127 = scmp.ne.s32.totalorder %s118, %s119
    %p128 = scmp.eq.s32.totalorder %s24, 0
    %p129 = por %p127, %p128
    %p130 = scmp.ne.s32.totalorder %s118, %s119
    %p131 = scmp.eq.s32.totalorder %s25, 7
    %p132 = por %p130, %p131
    %p134 = scmp.ne.s32.totalorder %s119, %s133
    %p135 = scmp.eq.s32.totalorder %s25, 0
    %p136 = por %p134, %p135
    %s138 = sadd.s32 %s137, 1
    %p141 = scmp.eq.s32.totalorder %s19, 7
    %p142 = scmp.ne.s32.totalorder %s137, %s139
    %p143 = scmp.eq.s32.totalorder %s19, 0
    %p144 = por %p142, %p143
    %p145 = scmp.ne.s32.totalorder %s137, %s139
    %p146 = scmp.eq.s32.totalorder %s24, 7
    %p147 = por %p145, %p146
    %p148 = scmp.ne.s32.totalorder %s139, %s140
    %p149 = scmp.eq.s32.totalorder %s24, 0
    %p150 = por %p148, %p149
    %p151 = scmp.ne.s32.totalorder %s139, %s140
    %p152 = scmp.eq.s32.totalorder %s25, 7
    %p153 = por %p151, %p152
    %p155 = scmp.ne.s32.totalorder %s140, %s154
    %p156 = scmp.eq.s32.totalorder %s25, 0
    %p157 = por %p155, %p156
    %s159 = sadd.s32 %s158, 1
    %p162 = scmp.eq.s32.totalorder %s19, 7
    %p163 = scmp.ne.s32.totalorder %s158, %s160
    %p164 = scmp.eq.s32.totalorder %s19, 0
    %p165 = por %p163, %p164
    %p166 = scmp.ne.s32.totalorder %s158, %s160
    %p167 = scmp.eq.s32.totalorder %s24, 7
    %p168 = por %p166, %p167
    %p169 = scmp.ne.s32.totalorder %s160, %s161
    %p170 = scmp.eq.s32.totalorder %s24, 0
    %p171 = por %p169, %p170
    %p172 = scmp.ne.s32.totalorder %s160, %s161
    %p173 = scmp.eq.s32.totalorder %s25, 7
    %p174 = por %p172, %p173
    %p176 = scmp.ne.s32.totalorder %s161, %s175
    %p177 = scmp.eq.s32.totalorder %s25, 0
    %p178 = por %p176, %p177
    %s180 = sadd.s32 %s179, 1
    %p183 = scmp.eq.s32.totalorder %s19, 7
    %p184 = scmp.ne.s32.totalorder %s179, %s181
    %p185 = scmp.eq.s32.totalorder %s19, 0
    %p186 = por %p184, %p185
    %p187 = scmp.ne.s32.totalorder %s179, %s181
    %p188 = scmp.eq.s32.totalorder %s24, 7
    %p189 = por %p187, %p188
    %p190 = scmp.ne.s32.totalorder %s181, %s182
    %p191 = scmp.eq.s32.totalorder %s24, 0
    %p192 = por %p190, %p191
    %p193 = scmp.ne.s32.totalorder %s181, %s182
    %p194 = scmp.eq.s32.totalorder %s25, 7
    %p195 = por %p193, %p194
    %p197 = scmp.ne.s32.totalorder %s182, %s196
    %p198 = scmp.eq.s32.totalorder %s25, 0
    %p199 = por %p197, %p198
    %s201 = sadd.s32 %s200, 1
    %p204 = scmp.eq.s32.totalorder %s19, 7
    %p205 = scmp.ne.s32.totalorder %s200, %s202
    %p206 = scmp.eq.s32.totalorder %s19, 0
    %p207 = por %p205, %p206
    %p208 = scmp.ne.s32.totalorder %s200, %s202
    %p209 = scmp.eq.s32.totalorder %s24, 7
    %p210 = por %p208, %p209
    %p211 = scmp.ne.s32.totalorder %s202, %s203
    %p212 = scmp.eq.s32.totalorder %s24, 0
    %p213 = por %p211, %p212
    %p214 = scmp.ne.s32.totalorder %s202, %s203
    %p215 = scmp.eq.s32.totalorder %s25, 7
    %p216 = por %p214, %p215
    %p218 = scmp.ne.s32.totalorder %s203, %s217
    %p219 = scmp.eq.s32.totalorder %s25, 0
    %p220 = por %p218, %p219
    %s222 = sadd.s32 %s221, 1
    %p225 = scmp.eq.s32.totalorder %s19, 7
    %p226 = scmp.ne.s32.totalorder %s221, %s223
    %p227 = scmp.eq.s32.totalorder %s19, 0
    %p228 = por %p226, %p227
    %p229 = scmp.ne.s32.totalorder %s221, %s223
    %p230 = scmp.eq.s32.totalorder %s24, 7
    %p231 = por %p229, %p230
    %p232 = scmp.ne.s32.totalorder %s223, %s224
    %p233 = scmp.eq.s32.totalorder %s24, 0
    %p234 = por %p232, %p233
    %p235 = scmp.ne.s32.totalorder %s223, %s224
    %p236 = scmp.eq.s32.totalorder %s25, 7
    %p237 = por %p235, %p236
    %p239 = scmp.ne.s32.totalorder %s224, %s238
    %p240 = scmp.eq.s32.totalorder %s25, 0
    %p241 = por %p239, %p240
    %s243 = sadd.s32 %s242, 1
    %p246 = scmp.eq.s32.totalorder %s19, 7
    %p247 = scmp.ne.s32.totalorder %s242, %s244
    %p248 = scmp.eq.s32.totalorder %s19, 0
    %p249 = por %p247, %p248
    %p250 = scmp.ne.s32.totalorder %s242, %s244
    %p251 = scmp.eq.s32.totalorder %s24, 7
    %p252 = por %p250, %p251
    %p253 = scmp.ne.s32.totalorder %s244, %s245
    %p254 = scmp.eq.s32.totalorder %s24, 0
    %p255 = por %p253, %p254
    %p256 = scmp.ne.s32.totalorder %s244, %s245
    %p257 = scmp.eq.s32.totalorder %s25, 7
    %p258 = por %p256, %p257
    %p260 = scmp.ne.s32.totalorder %s245, %s259
    %p261 = scmp.eq.s32.totalorder %s25, 0
    %p262 = por %p260, %p261
    %s264 = sadd.s32 %s263, 1
    %p267 = scmp.eq.s32.totalorder %s19, 7
    %p268 = scmp.ne.s32.totalorder %s263, %s265
    %p269 = scmp.eq.s32.totalorder %s19, 0
    %p270 = por %p268, %p269
    %p271 = scmp.ne.s32.totalorder %s263, %s265
    %p272 = scmp.eq.s32.totalorder %s24, 7
    %p273 = por %p271, %p272
    %p274 = scmp.ne.s32.totalorder %s265, %s266
    %p275 = scmp.eq.s32.totalorder %s24, 0
    %p276 = por %p274, %p275
    %p277 = scmp.ne.s32.totalorder %s265, %s266
    %p278 = scmp.eq.s32.totalorder %s25, 7
    %p279 = por %p277, %p278
    %p281 = scmp.ne.s32.totalorder %s266, %s280
    %p282 = scmp.eq.s32.totalorder %s25, 0
    %p283 = por %p281, %p282
    %s285 = sadd.s32 %s284, 1
    %p288 = scmp.eq.s32.totalorder %s19, 7
    %p289 = scmp.ne.s32.totalorder %s284, %s286
    %p290 = scmp.eq.s32.totalorder %s19, 0
    %p291 = por %p289, %p290
    %p292 = scmp.ne.s32.totalorder %s284, %s286
    %p293 = scmp.eq.s32.totalorder %s24, 7
    %p294 = por %p292, %p293
    %p295 = scmp.ne.s32.totalorder %s286, %s287
    %p296 = scmp.eq.s32.totalorder %s24, 0
    %p297 = por %p295, %p296
    %p298 = scmp.ne.s32.totalorder %s286, %s287
    %p299 = scmp.eq.s32.totalorder %s25, 7
    %p300 = por %p298, %p299
    %p302 = scmp.ne.s32.totalorder %s287, %s301
    %p303 = scmp.eq.s32.totalorder %s25, 0
    %p304 = por %p302, %p303
    %s305 = ssub.s32 %s19, %s26
    %p306 = scmp.eq.s32.totalorder %s305, 0
    %s308 = sadd.s32 %s307, 1
    %s309 = scalar_select %p306, %s307, %s308
    %p312 = pneg %p306
    %p313 = scmp.eq.s32.totalorder %s19, 7
    %p314 = por %p312, %p313
    %p315 = scmp.ne.s32.totalorder %s307, %s310
    %p316 = scmp.eq.s32.totalorder %s19, 0
    %p317 = por %p315, %p316
    %p318 = scmp.ne.s32.totalorder %s307, %s310
    %p319 = scmp.eq.s32.totalorder %s24, 7
    %p320 = por %p318, %p319
    %p321 = scmp.ne.s32.totalorder %s310, %s311
    %p322 = scmp.eq.s32.totalorder %s24, 0
    %p323 = por %p321, %p322
    %p324 = scmp.ne.s32.totalorder %s310, %s311
    %p325 = scmp.eq.s32.totalorder %s25, 7
    %p326 = por %p324, %p325
    %p328 = scmp.ne.s32.totalorder %s311, %s327
    %p329 = scmp.eq.s32.totalorder %s25, 0
    %p330 = por %p328, %p329
    %p331 = scmp.le.s32.totalorder 1, %s19
    %p332 = scmp.lt.s32.totalorder %s19, 9
    %p333 = pnand %p331, %p332
    %p334 = pneg %p333
    // Predicated region
    $region9: #{neural_net_forward.1} parent=5 // pred_check
      _
    $region10: #{neural_net_forward.1} parent=5 // pred_check_branch
      %336 = sbr.rel (%p333) target = $region12
    $region11: #{neural_net_forward.1} parent=5 // pred_region
      %s337 = ssub.s32 %s19, 1
      // Predicated region
      $region13: #{neural_net_forward.1} parent=11 // pred_check
        %p338 = pneg %p66
      $region14: #{neural_net_forward.1} parent=11 // pred_check_branch
        %340 = sbr.rel (%p338) target = $region16
      $region15: #{neural_net_forward.1} parent=11 // pred_region
        _
      $region16: #{neural_net_forward.1} parent=11 // pred_fallthru
        _
      // Predicated region
      $region17: #{neural_net_forward.1} parent=11 // pred_check
        %p341 = pneg %p87
      $region18: #{neural_net_forward.1} parent=11 // pred_check_branch
        %343 = sbr.rel (%p341) target = $region20
      $region19: #{neural_net_forward.1} parent=11 // pred_region
        _
      $region20: #{neural_net_forward.1} parent=11 // pred_fallthru
        _
      // Predicated region
      $region21: #{neural_net_forward.1} parent=11 // pred_check
        %p344 = pneg %p108
      $region22: #{neural_net_forward.1} parent=11 // pred_check_branch
        %346 = sbr.rel (%p344) target = $region24
      $region23: #{neural_net_forward.1} parent=11 // pred_region
        _
      $region24: #{neural_net_forward.1} parent=11 // pred_fallthru
        _
      // Predicated region
      $region25: #{neural_net_forward.1} parent=11 // pred_check
        %p347 = pneg %p129
      $region26: #{neural_net_forward.1} parent=11 // pred_check_branch
        %349 = sbr.rel (%p347) target = $region28
      $region27: #{neural_net_forward.1} parent=11 // pred_region
        _
      $region28: #{neural_net_forward.1} parent=11 // pred_fallthru
        _
      // Predicated region
      $region29: #{neural_net_forward.1} parent=11 // pred_check
        %p350 = pneg %p150
      $region30: #{neural_net_forward.1} parent=11 // pred_check_branch
        %352 = sbr.rel (%p350) target = $region32
      $region31: #{neural_net_forward.1} parent=11 // pred_region
        _
      $region32: #{neural_net_forward.1} parent=11 // pred_fallthru
        _
      // Predicated region
      $region33: #{neural_net_forward.1} parent=11 // pred_check
        %p353 = pneg %p171
      $region34: #{neural_net_forward.1} parent=11 // pred_check_branch
        %355 = sbr.rel (%p353) target = $region36
      $region35: #{neural_net_forward.1} parent=11 // pred_region
        _
      $region36: #{neural_net_forward.1} parent=11 // pred_fallthru
        _
      // Predicated region
      $region37: #{neural_net_forward.1} parent=11 // pred_check
        %p356 = pneg %p192
      $region38: #{neural_net_forward.1} parent=11 // pred_check_branch
        %358 = sbr.rel (%p356) target = $region40
      $region39: #{neural_net_forward.1} parent=11 // pred_region
        _
      $region40: #{neural_net_forward.1} parent=11 // pred_fallthru
        _
      // Predicated region
      $region41: #{neural_net_forward.1} parent=11 // pred_check
        %p359 = pneg %p213
      $region42: #{neural_net_forward.1} parent=11 // pred_check_branch
        %361 = sbr.rel (%p359) target = $region44
      $region43: #{neural_net_forward.1} parent=11 // pred_region
        _
      $region44: #{neural_net_forward.1} parent=11 // pred_fallthru
        _
      // Predicated region
      $region45: #{neural_net_forward.1} parent=11 // pred_check
        %p362 = pneg %p234
      $region46: #{neural_net_forward.1} parent=11 // pred_check_branch
        %364 = sbr.rel (%p362) target = $region48
      $region47: #{neural_net_forward.1} parent=11 // pred_region
        _
      $region48: #{neural_net_forward.1} parent=11 // pred_fallthru
        _
      // Predicated region
      $region49: #{neural_net_forward.1} parent=11 // pred_check
        %p365 = pneg %p255
      $region50: #{neural_net_forward.1} parent=11 // pred_check_branch
        %367 = sbr.rel (%p365) target = $region52
      $region51: #{neural_net_forward.1} parent=11 // pred_region
        _
      $region52: #{neural_net_forward.1} parent=11 // pred_fallthru
        _
      // Predicated region
      $region53: #{neural_net_forward.1} parent=11 // pred_check
        %p368 = pneg %p276
      $region54: #{neural_net_forward.1} parent=11 // pred_check_branch
        %370 = sbr.rel (%p368) target = $region56
      $region55: #{neural_net_forward.1} parent=11 // pred_region
        _
      $region56: #{neural_net_forward.1} parent=11 // pred_fallthru
        _
      // Predicated region
      $region57: #{neural_net_forward.1} parent=11 // pred_check
        %p371 = pneg %p297
      $region58: #{neural_net_forward.1} parent=11 // pred_check_branch
        %373 = sbr.rel (%p371) target = $region60
      $region59: #{neural_net_forward.1} parent=11 // pred_region
        _
      $region60: #{neural_net_forward.1} parent=11 // pred_fallthru
        _
    $region12: #{neural_net_forward.1} parent=5 // pred_fallthru
      _
    %p374 = scmp.lt.s32.totalorder %s19, 8
    // Predicated region
    $region61: #{neural_net_forward.1} parent=5 // pred_check
      %p375 = pneg %p374
    $region62: #{neural_net_forward.1} parent=5 // pred_check_branch
      %377 = sbr.rel (%p375) target = $region64
    $region63: #{neural_net_forward.1} parent=5 // pred_region
      // Predicated region
      $region65: #{neural_net_forward.1} parent=63 // pred_check
        %p378 = pneg %p39
      $region66: #{neural_net_forward.1} parent=63 // pred_check_branch
        %380 = sbr.rel (%p378) target = $region68
      $region67: #{neural_net_forward.1} parent=63 // pred_region
        %p381 = scmp.lt.s32.totalorder %s19, 7
        %s382 = scalar_select %p381, %s19, 7
        %s383 = smul.addr %s382, 18
        %s384 = smul.addr %s383, 8
        %s385 = scalar_lea.vmem %s0, %s384
      $region68: #{neural_net_forward.1} parent=63 // pred_fallthru
        _
    $region64: #{neural_net_forward.1} parent=5 // pred_fallthru
      _
    %p386 = scmp.le.s32.totalorder 1, %s19
    %p387 = scmp.lt.s32.totalorder %s19, 9
    %p388 = pnand %p386, %p387
    %p389 = pneg %p388
    // Predicated region
    $region69: #{neural_net_forward.1} parent=5 // pred_check
      _
    $region70: #{neural_net_forward.1} parent=5 // pred_check_branch
      %391 = sbr.rel (%p388) target = $region72
    $region71: #{neural_net_forward.1} parent=5 // pred_region
      %s392 = ssub.s32 %s19, 1
      %p393 = scmp.lt.s32.totalorder %s24, 7
      %s394 = scalar_select %p393, %s24, 7
      %s395 = smul.addr %s394, 18
      %s396 = smul.addr %s395, 8
      %s397 = scalar_lea.vmem %s0, %s396
      %p398 = pneg %p45
      %p399 = pneg %p42
      %p400 = pneg %p66
      %p401 = pneg %p63
      %p402 = pneg %p87
      %p403 = pneg %p84
      %p404 = pneg %p108
      %p405 = pneg %p105
      %p406 = pneg %p129
      %p407 = pneg %p126
      %p408 = pneg %p150
      %p409 = pneg %p147
      %p410 = pneg %p171
      %p411 = pneg %p168
      %p412 = pneg %p192
      %p413 = pneg %p189
      %p414 = pneg %p213
      %p415 = pneg %p210
      %p416 = pneg %p234
      %p417 = pneg %p231
      %p418 = pneg %p255
      %p419 = pneg %p252
      %p420 = pneg %p276
      %p421 = pneg %p273
      %p422 = pneg %p297
      %p423 = pneg %p294
      %p424 = pneg %p323
      %p425 = pneg %p320
      %p426 = scmp.lt.s32.totalorder %s24, 7
      %s427 = scalar_select %p426, %s24, 7
      %s428 = scalar_lea.vmem %s13, %s427
      %p429 = scmp.lt.s32.totalorder %s24, 7
      %s430 = scalar_select %p429, %s24, 7
      %s431 = smul.addr %s430, 18
      %s432 = smul.addr %s431, 8
      %s433 = scalar_lea.vmem %s0, %s432
      %p434 = scmp.lt.s32.totalorder %s24, 7
      %s435 = scalar_select %p434, %s24, 7
      %s436 = scalar_lea.vmem %s13, %s435
      %v437 = vld [vmem:[%s433] sm:$0xff]
      %v438 = vld [vmem:[%s433 + $0x8] sm:$0xff]
      %v439 = vld [vmem:[%s433 + $0x10] sm:$0xff]
      %v440 = vld [vmem:[%s433 + $0x18] sm:$0xff]
      %v441 = vld [vmem:[%s433 + $0x20] sm:$0xff]
      %v442 = vld [vmem:[%s433 + $0x28] sm:$0xff]
      %v443 = vld [vmem:[%s433 + $0x30] sm:$0xff]
      %v444 = vld [vmem:[%s433 + $0x38] sm:$0xff]
      %v445 = vld [vmem:[%s433 + $0x40] sm:$0xff]
      %v446 = vld [vmem:[%s433 + $0x48] sm:$0xff]
      %v447 = vld [vmem:[%s433 + $0x50] sm:$0xff]
      %v448 = vld [vmem:[%s433 + $0x58] sm:$0xff]
      %v449 = vld [vmem:[%s433 + $0x60] sm:$0xff]
      %v450 = vld [vmem:[%s433 + $0x68] sm:$0xff]
      %v451 = vld [vmem:[%s433 + $0x70] sm:$0xff]
      %v452 = vld [vmem:[%s433 + $0x78] sm:$0xff]
      %v453 = vld [vmem:[%s433 + $0x80] sm:$0xff]
      %v454 = vld [vmem:[%s433 + $0x88] sm:$0xff]
      %v455 = vld [vmem:[%s1] sm:$0xff]
      %v456 = vld [vmem:[%s1 + $0x8] sm:$0xff]
      %v457 = vld [vmem:[%s1 + $0x10] sm:$0xff]
      %v458 = vld [vmem:[%s1 + $0x18] sm:$0xff]
      %v459 = vld [vmem:[%s1 + $0x20] sm:$0xff]
      %v460 = vld [vmem:[%s1 + $0x28] sm:$0xff]
      %v461 = vld [vmem:[%s1 + $0x30] sm:$0xff]
      %v462 = vld [vmem:[%s1 + $0x38] sm:$0xff]
      %v463 = vld [vmem:[%s1 + $0x40] sm:$0xff]
      %v464 = vld [vmem:[%s1 + $0x48] sm:$0xff]
      %v465 = vld [vmem:[%s1 + $0x50] sm:$0xff]
      %v466 = vld [vmem:[%s1 + $0x58] sm:$0xff]
      %v467 = vld [vmem:[%s1 + $0x60] sm:$0xff]
      %v468 = vld [vmem:[%s1 + $0x68] sm:$0xff]
      %v469 = vld [vmem:[%s1 + $0x70] sm:$0xff]
      %v470 = vld [vmem:[%s1 + $0x78] sm:$0xff]
      %v471 = vld [vmem:[%s1 + $0x80] sm:$0xff]
      %v472 = vld [vmem:[%s1 + $0x88] sm:$0xff]
      %vm473 = vcmask 130048
      %v475 = vsel %vm473, %v456, 0
      %v478 = vsel %vm473, %v458, 0
      %v481 = vsel %vm473, %v460, 0
      %v484 = vsel %vm473, %v462, 0
      %v487 = vsel %vm473, %v464, 0
      %v490 = vsel %vm473, %v466, 0
      %v493 = vsel %vm473, %v468, 0
      %v496 = vsel %vm473, %v470, 0
      %v499 = vsel %vm473, %v472, 0
      %501 = vmatprep.subr.mxu0 0.0
      %502 = vmatpush1.msra.mxu0 %v437
      %503 = vmatprep.subr.mxu0 0.0
      %504 = vmatpush1.msra.mxu0 %v438
      %505 = vmatprep.subr.mxu0 0.0
      %506 = vmatpush1.msra.mxu0 %v439
      %507 = vmatprep.subr.mxu0 0.0
      %508 = vmatpush1.msra.mxu0 %v440
      %509 = vmatprep.subr.mxu0 0.0
      %510 = vmatpush1.msra.mxu0 %v441
      %511 = vmatprep.subr.mxu0 0.0
      %512 = vmatpush1.msra.mxu0 %v442
      %513 = vmatprep.subr.mxu0 0.0
      %514 = vmatpush1.msra.mxu0 %v443
      %515 = vmatprep.subr.mxu0 0.0
      %516 = vmatpush1.msra.mxu0 %v444
      %517 = vmatprep.subr.mxu0 0.0
      %518 = vmatpush1.msra.mxu0 %v445
      %519 = vmatprep.subr.mxu0 0.0
      %520 = vmatpush1.msra.mxu0 %v446
      %521 = vmatprep.subr.mxu0 0.0
      %522 = vmatpush1.msra.mxu0 %v447
      %523 = vmatprep.subr.mxu0 0.0
      %524 = vmatpush1.msra.mxu0 %v448
      %525 = vmatprep.subr.mxu0 0.0
      %526 = vmatpush1.msra.mxu0 %v449
      %527 = vmatprep.subr.mxu0 0.0
      %528 = vmatpush1.msra.mxu0 %v450
      %529 = vmatprep.subr.mxu0 0.0
      %530 = vmatpush1.msra.mxu0 %v451
      %531 = vmatprep.subr.mxu0 0.0
      %532 = vmatpush1.msra.mxu0 %v452
      %533 = vmatprep.subr.mxu0 0.0
      %534 = vmatpush1.msra.mxu0 %v453
      %535 = vmatprep.subr.mxu0 0.0
      %536 = vmatpush1.msra.mxu0 %v454
      %537 = vmatprep.subr.mxu0 0.0
      %538 = vmatpush1.msra.mxu0 0.0
      %539 = vmatprep.subr.mxu0 0.0
      %540 = vmatpush1.msra.mxu0 0.0
      %541 = vmatprep.subr.mxu0 0.0
      %542 = vmatpush1.msra.mxu0 0.0
      %543 = vmatprep.subr.mxu0 0.0
      %544 = vmatpush1.msra.mxu0 0.0
      %545 = vmatprep.subr.mxu0 0.0
      %546 = vmatpush1.msra.mxu0 0.0
      %547 = vmatprep.subr.mxu0 0.0
      %548 = vmatpush1.msra.mxu0 0.0
      %549 = vmatprep.subr.mxu0 0.0
      %550 = vmatpush1.msra.mxu0 0.0
      %551 = vmatprep.subr.mxu0 0.0
      %552 = vmatpush1.msra.mxu0 0.0
      %553 = vmatprep.subr.mxu0 0.0
      %554 = vmatpush1.msra.mxu0 0.0
      %555 = vmatprep.subr.mxu0 0.0
      %556 = vmatpush1.msra.mxu0 0.0
      %557 = vmatprep.subr.mxu0 0.0
      %558 = vmatpush1.msra.mxu0 0.0
      %559 = vmatprep.subr.mxu0 0.0
      %560 = vmatpush1.msra.mxu0 0.0
      %561 = vmatprep.subr.mxu0 0.0
      %562 = vmatpush1.msra.mxu0 0.0
      %563 = vmatprep.subr.mxu0 0.0
      %564 = vmatpush1.msra.mxu0 0.0
      %565 = vmatprep.mubr.f32.mxu0 %v475
      %566 = vmatmul.mubr.f32.gmra.mrb[0].mxu0 %v455
      %v567 = vpop.f32.mrb[0].mxu0
      %v568 = vadd.f32 0.0, %v567
      %v569 = vpop.f32.mrb[0].mxu0
      %570 = vmatprep.mubr.f32.mxu0 %v478
      %571 = vmatmul.mubr.f32.gmra.mrb[0].mxu0 %v457
      %v572 = vpop.f32.mrb[0].mxu0
      %v573 = vadd.f32 0.0, %v572
      %v574 = vpop.f32.mrb[0].mxu0
      %575 = vmatprep.mubr.f32.mxu0 %v481
      %576 = vmatmul.mubr.f32.gmra.mrb[0].mxu0 %v459
      %v577 = vpop.f32.mrb[0].mxu0
      %v578 = vadd.f32 0.0, %v577
      %v579 = vpop.f32.mrb[0].mxu0
      %580 = vmatprep.mubr.f32.mxu0 %v484
      %581 = vmatmul.mubr.f32.gmra.mrb[0].mxu0 %v461
      %v582 = vpop.f32.mrb[0].mxu0
      %v583 = vadd.f32 0.0, %v582
      %v584 = vpop.f32.mrb[0].mxu0
      %585 = vmatprep.mubr.f32.mxu0 %v487
      %586 = vmatmul.mubr.f32.gmra.mrb[0].mxu0 %v463
      %v587 = vpop.f32.mrb[0].mxu0
      %v588 = vadd.f32 0.0, %v587
      %v589 = vpop.f32.mrb[0].mxu0
      %590 = vmatprep.mubr.f32.mxu0 %v490
      %591 = vmatmul.mubr.f32.gmra.mrb[0].mxu0 %v465
      %v592 = vpop.f32.mrb[0].mxu0
      %v593 = vadd.f32 0.0, %v592
      %v594 = vpop.f32.mrb[0].mxu0
      %595 = vmatprep.mubr.f32.mxu0 %v493
      %596 = vmatmul.mubr.f32.gmra.mrb[0].mxu0 %v467
      %v597 = vpop.f32.mrb[0].mxu0
      %v598 = vadd.f32 0.0, %v597
      %v599 = vpop.f32.mrb[0].mxu0
      %600 = vmatprep.mubr.f32.mxu0 %v496
      %601 = vmatmul.mubr.f32.gmra.mrb[0].mxu0 %v469
      %v602 = vpop.f32.mrb[0].mxu0
      %v603 = vadd.f32 0.0, %v602
      %v604 = vpop.f32.mrb[0].mxu0
      %605 = vmatprep.mubr.f32.mxu0 %v499
      %606 = vmatmul.mubr.f32.gmra.mrb[0].mxu0 %v471
      %v607 = vpop.f32.mrb[0].mxu0
      %v608 = vadd.f32 0.0, %v607
      %v609 = vpop.f32.mrb[0].mxu0
      %610 = vdwg.mxu0
      %s611 = scalar_lea.vmem %s1, 144
      %v612 = vld [vmem:[%s611] sm:$0xff]
      %v613 = vld [vmem:[%s611 + $0x8] sm:$0xff]
      %v614 = vld [vmem:[%s611 + $0x10] sm:$0xff]
      %v615 = vld [vmem:[%s611 + $0x18] sm:$0xff]
      %v616 = vld [vmem:[%s611 + $0x20] sm:$0xff]
      %v617 = vld [vmem:[%s611 + $0x28] sm:$0xff]
      %v618 = vld [vmem:[%s611 + $0x30] sm:$0xff]
      %v619 = vld [vmem:[%s611 + $0x38] sm:$0xff]
      %v620 = vld [vmem:[%s611 + $0x40] sm:$0xff]
      %v621 = vld [vmem:[%s611 + $0x48] sm:$0xff]
      %v622 = vld [vmem:[%s611 + $0x50] sm:$0xff]
      %v623 = vld [vmem:[%s611 + $0x58] sm:$0xff]
      %v624 = vld [vmem:[%s611 + $0x60] sm:$0xff]
      %v625 = vld [vmem:[%s611 + $0x68] sm:$0xff]
      %v626 = vld [vmem:[%s611 + $0x70] sm:$0xff]
      %v627 = vld [vmem:[%s611 + $0x78] sm:$0xff]
      %v628 = vld [vmem:[%s611 + $0x80] sm:$0xff]
      %v629 = vld [vmem:[%s611 + $0x88] sm:$0xff]
      %v631 = vsel %vm473, %v613, 0
      %v634 = vsel %vm473, %v615, 0
      %v637 = vsel %vm473, %v617, 0
      %v640 = vsel %vm473, %v619, 0
      %v643 = vsel %vm473, %v621, 0
      %v646 = vsel %vm473, %v623, 0
      %v649 = vsel %vm473, %v625, 0
      %v652 = vsel %vm473, %v627, 0
      %v655 = vsel %vm473, %v629, 0
      %657 = vmatprep.subr.mxu0 0.0
      %658 = vmatpush1.msra.mxu0 %v437
      %659 = vmatprep.subr.mxu0 0.0
      %660 = vmatpush1.msra.mxu0 %v438
      %661 = vmatprep.subr.mxu0 0.0
      %662 = vmatpush1.msra.mxu0 %v439
      %663 = vmatprep.subr.mxu0 0.0
      %664 = vmatpush1.msra.mxu0 %v440
      %665 = vmatprep.subr.mxu0 0.0
      %666 = vmatpush1.msra.mxu0 %v441
      %667 = vmatprep.subr.mxu0 0.0
      %668 = vmatpush1.msra.mxu0 %v442
      %669 = vmatprep.subr.mxu0 0.0
      %670 = vmatpush1.msra.mxu0 %v443
      %671 = vmatprep.subr.mxu0 0.0
      %672 = vmatpush1.msra.mxu0 %v444
      %673 = vmatprep.subr.mxu0 0.0
      %674 = vmatpush1.msra.mxu0 %v445
      %675 = vmatprep.subr.mxu0 0.0
      %676 = vmatpush1.msra.mxu0 %v446
      %677 = vmatprep.subr.mxu0 0.0
      %678 = vmatpush1.msra.mxu0 %v447
      %679 = vmatprep.subr.mxu0 0.0
      %680 = vmatpush1.msra.mxu0 %v448
      %681 = vmatprep.subr.mxu0 0.0
      %682 = vmatpush1.msra.mxu0 %v449
      %683 = vmatprep.subr.mxu0 0.0
      %684 = vmatpush1.msra.mxu0 %v450
      %685 = vmatprep.subr.mxu0 0.0
      %686 = vmatpush1.msra.mxu0 %v451
      %687 = vmatprep.subr.mxu0 0.0
      %688 = vmatpush1.msra.mxu0 %v452
      %689 = vmatprep.subr.mxu0 0.0
      %690 = vmatpush1.msra.mxu0 %v453
      %691 = vmatprep.subr.mxu0 0.0
      %692 = vmatpush1.msra.mxu0 %v454
      %693 = vmatprep.subr.mxu0 0.0
      %694 = vmatpush1.msra.mxu0 0.0
      %695 = vmatprep.subr.mxu0 0.0
      %696 = vmatpush1.msra.mxu0 0.0
      %697 = vmatprep.subr.mxu0 0.0
      %698 = vmatpush1.msra.mxu0 0.0
      %699 = vmatprep.subr.mxu0 0.0
      %700 = vmatpush1.msra.mxu0 0.0
      %701 = vmatprep.subr.mxu0 0.0
      %702 = vmatpush1.msra.mxu0 0.0
      %703 = vmatprep.subr.mxu0 0.0
      %704 = vmatpush1.msra.mxu0 0.0
      %705 = vmatprep.subr.mxu0 0.0
      %706 = vmatpush1.msra.mxu0 0.0
      %707 = vmatprep.subr.mxu0 0.0
      %708 = vmatpush1.msra.mxu0 0.0
      %709 = vmatprep.subr.mxu0 0.0
      %710 = vmatpush1.msra.mxu0 0.0
      %711 = vmatprep.subr.mxu0 0.0
      %712 = vmatpush1.msra.mxu0 0.0
      %713 = vmatprep.subr.mxu0 0.0
      %714 = vmatpush1.msra.mxu0 0.0
      %715 = vmatprep.subr.mxu0 0.0
      %716 = vmatpush1.msra.mxu0 0.0
      %717 = vmatprep.subr.mxu0 0.0
      %718 = vmatpush1.msra.mxu0 0.0
      %719 = vmatprep.subr.mxu0 0.0
      %720 = vmatpush1.msra.mxu0 0.0
      %721 = vmatprep.mubr.f32.mxu0 %v631
      %722 = vmatmul.mubr.f32.gmra.mrb[0].mxu0 %v612
      %v723 = vpop.f32.mrb[0].mxu0
      %v724 = vadd.f32 0.0, %v723
      %v725 = vpop.f32.mrb[0].mxu0
      %726 = vmatprep.mubr.f32.mxu0 %v634
      %727 = vmatmul.mubr.f32.gmra.mrb[0].mxu0 %v614
      %v728 = vpop.f32.mrb[0].mxu0
      %v729 = vadd.f32 0.0, %v728
      %v730 = vpop.f32.mrb[0].mxu0
      %731 = vmatprep.mubr.f32.mxu0 %v637
      %732 = vmatmul.mubr.f32.gmra.mrb[0].mxu0 %v616
      %v733 = vpop.f32.mrb[0].mxu0
      %v734 = vadd.f32 0.0, %v733
      %v735 = vpop.f32.mrb[0].mxu0
      %736 = vmatprep.mubr.f32.mxu0 %v640
      %737 = vmatmul.mubr.f32.gmra.mrb[0].mxu0 %v618
      %v738 = vpop.f32.mrb[0].mxu0
      %v739 = vadd.f32 0.0, %v738
      %v740 = vpop.f32.mrb[0].mxu0
      %741 = vmatprep.mubr.f32.mxu0 %v643
      %742 = vmatmul.mubr.f32.gmra.mrb[0].mxu0 %v620
      %v743 = vpop.f32.mrb[0].mxu0
      %v744 = vadd.f32 0.0, %v743
      %v745 = vpop.f32.mrb[0].mxu0
      %746 = vmatprep.mubr.f32.mxu0 %v646
      %747 = vmatmul.mubr.f32.gmra.mrb[0].mxu0 %v622
      %v748 = vpop.f32.mrb[0].mxu0
      %v749 = vadd.f32 0.0, %v748
      %v750 = vpop.f32.mrb[0].mxu0
      %751 = vmatprep.mubr.f32.mxu0 %v649
      %752 = vmatmul.mubr.f32.gmra.mrb[0].mxu0 %v624
      %v753 = vpop.f32.mrb[0].mxu0
      %v754 = vadd.f32 0.0, %v753
      %v755 = vpop.f32.mrb[0].mxu0
      %756 = vmatprep.mubr.f32.mxu0 %v652
      %757 = vmatmul.mubr.f32.gmra.mrb[0].mxu0 %v626
      %v758 = vpop.f32.mrb[0].mxu0
      %v759 = vadd.f32 0.0, %v758
      %v760 = vpop.f32.mrb[0].mxu0
      %761 = vmatprep.mubr.f32.mxu0 %v655
      %762 = vmatmul.mubr.f32.gmra.mrb[0].mxu0 %v628
      %v763 = vpop.f32.mrb[0].mxu0
      %v764 = vadd.f32 0.0, %v763
      %v765 = vpop.f32.mrb[0].mxu0
      %766 = vdwg.mxu0
      %v767 = vmax.f32 %v568, %v724
      %v768 = vmax.f32 %v573, %v729
      %v769 = vmax.f32 %v578, %v734
      %v770 = vmax.f32 %v583, %v739
      %v771 = vmax.f32 %v588, %v744
      %v772 = vmax.f32 %v593, %v749
      %v773 = vmax.f32 %v598, %v754
      %v774 = vmax.f32 %v603, %v759
      %v775 = vmax.f32 %v608, %v764
      %v776 = vmax.f32 %v767, 0.0
      %v777 = vmax.f32 %v768, 0.0
      %v778 = vmax.f32 %v769, 0.0
      %v779 = vmax.f32 %v770, 0.0
      %v780 = vmax.f32 %v771, 0.0
      %v781 = vmax.f32 %v772, 0.0
      %v782 = vmax.f32 %v773, 0.0
      %v783 = vmax.f32 %v774, 0.0
      %v784 = vmax.f32 %v775, 0.0
      %v785 = vld [vmem:[%s2] sm:$0xff]
      %v786 = vld [vmem:[%s2 + $0x8] sm:$0xff]
      %v787 = vld [vmem:[%s2 + $0x10] sm:$0xff]
      %vm788 = vcmask 195584
      %v790 = vsel %vm788, %v776, 0
      %v793 = vsel %vm788, %v777, 0
      %v796 = vsel %vm788, %v778, 0
      %v799 = vsel %vm788, %v779, 0
      %v802 = vsel %vm788, %v780, 0
      %v805 = vsel %vm788, %v781, 0
      %v808 = vsel %vm788, %v782, 0
      %v811 = vsel %vm788, %v783, 0
      %v814 = vsel %vm788, %v784, 0
      %816 = vmatprep.subr.mxu0 0.0
      %817 = vmatpush1.msra.mxu0 %v785
      %818 = vmatprep.subr.mxu0 0.0
      %819 = vmatpush1.msra.mxu0 %v786
      %820 = vmatprep.subr.mxu0 0.0
      %821 = vmatpush1.msra.mxu0 %v787
      %822 = vmatprep.subr.mxu0 0.0
      %823 = vmatpush1.msra.mxu0 0.0
      %824 = vmatprep.subr.mxu0 0.0
      %825 = vmatpush1.msra.mxu0 0.0
      %826 = vmatprep.subr.mxu0 0.0
      %827 = vmatpush1.msra.mxu0 0.0
      %828 = vmatprep.subr.mxu0 0.0
      %829 = vmatpush1.msra.mxu0 0.0
      %830 = vmatprep.subr.mxu0 0.0
      %831 = vmatpush1.msra.mxu0 0.0
      %832 = vmatprep.subr.mxu0 0.0
      %833 = vmatpush1.msra.mxu0 0.0
      %834 = vmatprep.subr.mxu0 0.0
      %835 = vmatpush1.msra.mxu0 0.0
      %836 = vmatprep.subr.mxu0 0.0
      %837 = vmatpush1.msra.mxu0 0.0
      %838 = vmatprep.subr.mxu0 0.0
      %839 = vmatpush1.msra.mxu0 0.0
      %840 = vmatprep.subr.mxu0 0.0
      %841 = vmatpush1.msra.mxu0 0.0
      %842 = vmatprep.subr.mxu0 0.0
      %843 = vmatpush1.msra.mxu0 0.0
      %844 = vmatprep.subr.mxu0 0.0
      %845 = vmatpush1.msra.mxu0 0.0
      %846 = vmatprep.subr.mxu0 0.0
      %847 = vmatpush1.msra.mxu0 0.0
      %848 = vmatprep.subr.mxu0 0.0
      %849 = vmatpush1.msra.mxu0 0.0
      %850 = vmatprep.subr.mxu0 0.0
      %851 = vmatpush1.msra.mxu0 0.0
      %852 = vmatprep.subr.mxu0 0.0
      %853 = vmatpush1.msra.mxu0 0.0
      %854 = vmatprep.subr.mxu0 0.0
      %855 = vmatpush1.msra.mxu0 0.0
      %856 = vmatprep.subr.mxu0 0.0
      %857 = vmatpush1.msra.mxu0 0.0
      %858 = vmatprep.subr.mxu0 0.0
      %859 = vmatpush1.msra.mxu0 0.0
      %860 = vmatprep.subr.mxu0 0.0
      %861 = vmatpush1.msra.mxu0 0.0
      %862 = vmatprep.subr.mxu0 0.0
      %863 = vmatpush1.msra.mxu0 0.0
      %864 = vmatprep.subr.mxu0 0.0
      %865 = vmatpush1.msra.mxu0 0.0
      %866 = vmatprep.subr.mxu0 0.0
      %867 = vmatpush1.msra.mxu0 0.0
      %868 = vmatprep.subr.mxu0 0.0
      %869 = vmatpush1.msra.mxu0 0.0
      %870 = vmatprep.subr.mxu0 0.0
      %871 = vmatpush1.msra.mxu0 0.0
      %872 = vmatprep.subr.mxu0 0.0
      %873 = vmatpush1.msra.mxu0 0.0
      %874 = vmatprep.subr.mxu0 0.0
      %875 = vmatpush1.msra.mxu0 0.0
      %876 = vmatprep.subr.mxu0 0.0
      %877 = vmatpush1.msra.mxu0 0.0
      %878 = vmatprep.subr.mxu0 0.0
      %879 = vmatpush1.msra.mxu0 0.0
      %880 = vmatprep.mubr.f32.mxu0 0.0
      %881 = vmatmul.mubr.f32.gmra.mrb[0].mxu0 %v790
      %v882 = vpop.f32.mrb[0].mxu0
      %v883 = vadd.f32 0.0, %v882
      %v884 = vpop.f32.mrb[0].mxu0
      %885 = vmatprep.mubr.f32.mxu0 0.0
      %886 = vmatmul.mubr.f32.gmra.mrb[0].mxu0 %v793
      %v887 = vpop.f32.mrb[0].mxu0
      %v888 = vadd.f32 0.0, %v887
      %v889 = vpop.f32.mrb[0].mxu0
      %890 = vmatprep.mubr.f32.mxu0 0.0
      %891 = vmatmul.mubr.f32.gmra.mrb[0].mxu0 %v796
      %v892 = vpop.f32.mrb[0].mxu0
      %v893 = vadd.f32 0.0, %v892
      %v894 = vpop.f32.mrb[0].mxu0
      %895 = vmatprep.mubr.f32.mxu0 0.0
      %896 = vmatmul.mubr.f32.gmra.mrb[0].mxu0 %v799
      %v897 = vpop.f32.mrb[0].mxu0
      %v898 = vadd.f32 0.0, %v897
      %v899 = vpop.f32.mrb[0].mxu0
      %900 = vmatprep.mubr.f32.mxu0 0.0
      %901 = vmatmul.mubr.f32.gmra.mrb[0].mxu0 %v802
      %v902 = vpop.f32.mrb[0].mxu0
      %v903 = vadd.f32 0.0, %v902
      %v904 = vpop.f32.mrb[0].mxu0
      %905 = vmatprep.mubr.f32.mxu0 0.0
      %906 = vmatmul.mubr.f32.gmra.mrb[0].mxu0 %v805
      %v907 = vpop.f32.mrb[0].mxu0
      %v908 = vadd.f32 0.0, %v907
      %v909 = vpop.f32.mrb[0].mxu0
      %910 = vmatprep.mubr.f32.mxu0 0.0
      %911 = vmatmul.mubr.f32.gmra.mrb[0].mxu0 %v808
      %v912 = vpop.f32.mrb[0].mxu0
      %v913 = vadd.f32 0.0, %v912
      %v914 = vpop.f32.mrb[0].mxu0
      %915 = vmatprep.mubr.f32.mxu0 0.0
      %916 = vmatmul.mubr.f32.gmra.mrb[0].mxu0 %v811
      %v917 = vpop.f32.mrb[0].mxu0
      %v918 = vadd.f32 0.0, %v917
      %v919 = vpop.f32.mrb[0].mxu0
      %920 = vmatprep.mubr.f32.mxu0 0.0
      %921 = vmatmul.mubr.f32.gmra.mrb[0].mxu0 %v814
      %v922 = vpop.f32.mrb[0].mxu0
      %v923 = vadd.f32 0.0, %v922
      %v924 = vpop.f32.mrb[0].mxu0
      %925 = vdwg.mxu0
      %s926 = scalar_lea.vmem %s2, 24
      %v927 = vld [vmem:[%s926] sm:$0xff]
      %v928 = vld [vmem:[%s926 + $0x8] sm:$0xff]
      %v929 = vld [vmem:[%s926 + $0x10] sm:$0xff]
      %930 = vmatprep.subr.mxu0 0.0
      %931 = vmatpush1.msra.mxu0 %v927
      %932 = vmatprep.subr.mxu0 0.0
      %933 = vmatpush1.msra.mxu0 %v928
      %934 = vmatprep.subr.mxu0 0.0
      %935 = vmatpush1.msra.mxu0 %v929
      %936 = vmatprep.subr.mxu0 0.0
      %937 = vmatpush1.msra.mxu0 0.0
      %938 = vmatprep.subr.mxu0 0.0
      %939 = vmatpush1.msra.mxu0 0.0
      %940 = vmatprep.subr.mxu0 0.0
      %941 = vmatpush1.msra.mxu0 0.0
      %942 = vmatprep.subr.mxu0 0.0
      %943 = vmatpush1.msra.mxu0 0.0
      %944 = vmatprep.subr.mxu0 0.0
      %945 = vmatpush1.msra.mxu0 0.0
      %946 = vmatprep.subr.mxu0 0.0
      %947 = vmatpush1.msra.mxu0 0.0
      %948 = vmatprep.subr.mxu0 0.0
      %949 = vmatpush1.msra.mxu0 0.0
      %950 = vmatprep.subr.mxu0 0.0
      %951 = vmatpush1.msra.mxu0 0.0
      %952 = vmatprep.subr.mxu0 0.0
      %953 = vmatpush1.msra.mxu0 0.0
      %954 = vmatprep.subr.mxu0 0.0
      %955 = vmatpush1.msra.mxu0 0.0
      %956 = vmatprep.subr.mxu0 0.0
      %957 = vmatpush1.msra.mxu0 0.0
      %958 = vmatprep.subr.mxu0 0.0
      %959 = vmatpush1.msra.mxu0 0.0
      %960 = vmatprep.subr.mxu0 0.0
      %961 = vmatpush1.msra.mxu0 0.0
      %962 = vmatprep.subr.mxu0 0.0
      %963 = vmatpush1.msra.mxu0 0.0
      %964 = vmatprep.subr.mxu0 0.0
      %965 = vmatpush1.msra.mxu0 0.0
      %966 = vmatprep.subr.mxu0 0.0
      %967 = vmatpush1.msra.mxu0 0.0
      %968 = vmatprep.subr.mxu0 0.0
      %969 = vmatpush1.msra.mxu0 0.0
      %970 = vmatprep.subr.mxu0 0.0
      %971 = vmatpush1.msra.mxu0 0.0
      %972 = vmatprep.subr.mxu0 0.0
      %973 = vmatpush1.msra.mxu0 0.0
      %974 = vmatprep.subr.mxu0 0.0
      %975 = vmatpush1.msra.mxu0 0.0
      %976 = vmatprep.subr.mxu0 0.0
      %977 = vmatpush1.msra.mxu0 0.0
      %978 = vmatprep.subr.mxu0 0.0
      %979 = vmatpush1.msra.mxu0 0.0
      %980 = vmatprep.subr.mxu0 0.0
      %981 = vmatpush1.msra.mxu0 0.0
      %982 = vmatprep.subr.mxu0 0.0
      %983 = vmatpush1.msra.mxu0 0.0
      %984 = vmatprep.subr.mxu0 0.0
      %985 = vmatpush1.msra.mxu0 0.0
      %986 = vmatprep.subr.mxu0 0.0
      %987 = vmatpush1.msra.mxu0 0.0
      %988 = vmatprep.subr.mxu0 0.0
      %989 = vmatpush1.msra.mxu0 0.0
      %990 = vmatprep.subr.mxu0 0.0
      %991 = vmatpush1.msra.mxu0 0.0
      %992 = vmatprep.subr.mxu0 0.0
      %993 = vmatpush1.msra.mxu0 0.0
      %994 = vmatprep.mubr.f32.mxu0 0.0
      %995 = vmatmul.mubr.f32.gmra.mrb[0].mxu0 %v790
      %v996 = vpop.f32.mrb[0].mxu0
      %v997 = vadd.f32 0.0, %v996
      %v998 = vpop.f32.mrb[0].mxu0
      %999 = vmatprep.mubr.f32.mxu0 0.0
      %1000 = vmatmul.mubr.f32.gmra.mrb[0].mxu0 %v793
      %v1001 = vpop.f32.mrb[0].mxu0
      %v1002 = vadd.f32 0.0, %v1001
      %v1003 = vpop.f32.mrb[0].mxu0
      %1004 = vmatprep.mubr.f32.mxu0 0.0
      %1005 = vmatmul.mubr.f32.gmra.mrb[0].mxu0 %v796
      %v1006 = vpop.f32.mrb[0].mxu0
      %v1007 = vadd.f32 0.0, %v1006
      %v1008 = vpop.f32.mrb[0].mxu0
      %1009 = vmatprep.mubr.f32.mxu0 0.0
      %1010 = vmatmul.mubr.f32.gmra.mrb[0].mxu0 %v799
      %v1011 = vpop.f32.mrb[0].mxu0
      %v1012 = vadd.f32 0.0, %v1011
      %v1013 = vpop.f32.mrb[0].mxu0
      %1014 = vmatprep.mubr.f32.mxu0 0.0
      %1015 = vmatmul.mubr.f32.gmra.mrb[0].mxu0 %v802
      %v1016 = vpop.f32.mrb[0].mxu0
      %v1017 = vadd.f32 0.0, %v1016
      %v1018 = vpop.f32.mrb[0].mxu0
      %1019 = vmatprep.mubr.f32.mxu0 0.0
      %1020 = vmatmul.mubr.f32.gmra.mrb[0].mxu0 %v805
      %v1021 = vpop.f32.mrb[0].mxu0
      %v1022 = vadd.f32 0.0, %v1021
      %v1023 = vpop.f32.mrb[0].mxu0
      %1024 = vmatprep.mubr.f32.mxu0 0.0
      %1025 = vmatmul.mubr.f32.gmra.mrb[0].mxu0 %v808
      %v1026 = vpop.f32.mrb[0].mxu0
      %v1027 = vadd.f32 0.0, %v1026
      %v1028 = vpop.f32.mrb[0].mxu0
      %1029 = vmatprep.mubr.f32.mxu0 0.0
      %1030 = vmatmul.mubr.f32.gmra.mrb[0].mxu0 %v811
      %v1031 = vpop.f32.mrb[0].mxu0
      %v1032 = vadd.f32 0.0, %v1031
      %v1033 = vpop.f32.mrb[0].mxu0
      %1034 = vmatprep.mubr.f32.mxu0 0.0
      %1035 = vmatmul.mubr.f32.gmra.mrb[0].mxu0 %v814
      %v1036 = vpop.f32.mrb[0].mxu0
      %v1037 = vadd.f32 0.0, %v1036
      %v1038 = vpop.f32.mrb[0].mxu0
      %1039 = vdwg.mxu0
      %v1040 = vmax.f32 %v883, %v997
      %v1041 = vmax.f32 %v888, %v1002
      %v1042 = vmax.f32 %v893, %v1007
      %v1043 = vmax.f32 %v898, %v1012
      %v1044 = vmax.f32 %v903, %v1017
      %v1045 = vmax.f32 %v908, %v1022
      %v1046 = vmax.f32 %v913, %v1027
      %v1047 = vmax.f32 %v918, %v1032
      %v1048 = vmax.f32 %v923, %v1037
      %v1049 = vld [vmem:[%s4] sm:$0xff]
      %v1050 = vld [vmem:[%s4 + $0x8] sm:$0xff]
      %v1051 = vld [vmem:[%s4 + $0x10] sm:$0xff]
      %v1052 = vld [vmem:[%s4 + $0x18] sm:$0xff]
      %v1053 = vld [vmem:[%s4 + $0x20] sm:$0xff]
      %v1054 = vld [vmem:[%s4 + $0x28] sm:$0xff]
      %v1055 = vld [vmem:[%s4 + $0x30] sm:$0xff]
      %v1056 = vld [vmem:[%s4 + $0x38] sm:$0xff]
      %v1057 = vld [vmem:[%s4 + $0x40] sm:$0xff]
      %v1058 = vld [vmem:[%s4 + $0x48] sm:$0xff]
      %v1059 = vld [vmem:[%s4 + $0x50] sm:$0xff]
      %v1060 = vld [vmem:[%s4 + $0x58] sm:$0xff]
      %v1061 = vld [vmem:[%s4 + $0x60] sm:$0xff]
      %v1062 = vld [vmem:[%s4 + $0x68] sm:$0xff]
      %v1063 = vld [vmem:[%s4 + $0x70] sm:$0xff]
      %v1064 = vld [vmem:[%s4 + $0x78] sm:$0xff]
      %v1065 = vld [vmem:[%s3] sm:$0xff]
      %v1066 = vld [vmem:[%s3 + $0x8] sm:$0xff]
      %v1067 = vld [vmem:[%s3 + $0x10] sm:$0xff]
      %v1068 = vld [vmem:[%s3 + $0x18] sm:$0xff]
      %v1069 = vld [vmem:[%s3 + $0x20] sm:$0xff]
      %v1070 = vld [vmem:[%s3 + $0x28] sm:$0xff]
      %v1071 = vld [vmem:[%s3 + $0x30] sm:$0xff]
      %v1072 = vld [vmem:[%s3 + $0x38] sm:$0xff]
      %v1073 = vld [vmem:[%s3 + $0x40] sm:$0xff]
      %v1074 = vld [vmem:[%s3 + $0x48] sm:$0xff]
      %v1075 = vld [vmem:[%s3 + $0x50] sm:$0xff]
      %v1076 = vld [vmem:[%s3 + $0x58] sm:$0xff]
      %v1077 = vld [vmem:[%s3 + $0x60] sm:$0xff]
      %v1078 = vld [vmem:[%s3 + $0x68] sm:$0xff]
      %v1079 = vld [vmem:[%s3 + $0x70] sm:$0xff]
      %v1080 = vld [vmem:[%s3 + $0x78] sm:$0xff]
      %vm1081 = vcmask 588800
      %v1083 = vsel %vm1081, %v1065, 0
      %v1086 = vsel %vm1081, %v1066, 0
      %v1089 = vsel %vm1081, %v1067, 0
      %v1092 = vsel %vm1081, %v1068, 0
      %v1095 = vsel %vm1081, %v1069, 0
      %v1098 = vsel %vm1081, %v1070, 0
      %v1101 = vsel %vm1081, %v1071, 0
      %v1104 = vsel %vm1081, %v1072, 0
      %v1107 = vsel %vm1081, %v1073, 0
      %v1110 = vsel %vm1081, %v1074, 0
      %v1113 = vsel %vm1081, %v1075, 0
      %v1116 = vsel %vm1081, %v1076, 0
      %v1119 = vsel %vm1081, %v1077, 0
      %v1122 = vsel %vm1081, %v1078, 0
      %v1125 = vsel %vm1081, %v1079, 0
      %v1128 = vsel %vm1081, %v1080, 0
      %1130 = vmatprep.subr.mxu0 0.0
      %1131 = vmatpush1.msra.mxu0 %v1040
      %1132 = vmatprep.subr.mxu0 0.0
      %1133 = vmatpush1.msra.mxu0 %v1041
      %1134 = vmatprep.subr.mxu0 0.0
      %1135 = vmatpush1.msra.mxu0 %v1042
      %1136 = vmatprep.subr.mxu0 0.0
      %1137 = vmatpush1.msra.mxu0 %v1043
      %1138 = vmatprep.subr.mxu0 0.0
      %1139 = vmatpush1.msra.mxu0 %v1044
      %1140 = vmatprep.subr.mxu0 0.0
      %1141 = vmatpush1.msra.mxu0 %v1045
      %1142 = vmatprep.subr.mxu0 0.0
      %1143 = vmatpush1.msra.mxu0 %v1046
      %1144 = vmatprep.subr.mxu0 0.0
      %1145 = vmatpush1.msra.mxu0 %v1047
      %1146 = vmatprep.subr.mxu0 0.0
      %1147 = vmatpush1.msra.mxu0 %v1048
      %1148 = vmatprep.subr.mxu0 0.0
      %1149 = vmatpush1.msra.mxu0 0.0
      %1150 = vmatprep.subr.mxu0 0.0
      %1151 = vmatpush1.msra.mxu0 0.0
      %1152 = vmatprep.subr.mxu0 0.0
      %1153 = vmatpush1.msra.mxu0 0.0
      %1154 = vmatprep.subr.mxu0 0.0
      %1155 = vmatpush1.msra.mxu0 0.0
      %1156 = vmatprep.subr.mxu0 0.0
      %1157 = vmatpush1.msra.mxu0 0.0
      %1158 = vmatprep.subr.mxu0 0.0
      %1159 = vmatpush1.msra.mxu0 0.0
      %1160 = vmatprep.subr.mxu0 0.0
      %1161 = vmatpush1.msra.mxu0 0.0
      %1162 = vmatprep.subr.mxu0 0.0
      %1163 = vmatpush1.msra.mxu0 0.0
      %1164 = vmatprep.subr.mxu0 0.0
      %1165 = vmatpush1.msra.mxu0 0.0
      %1166 = vmatprep.subr.mxu0 0.0
      %1167 = vmatpush1.msra.mxu0 0.0
      %1168 = vmatprep.subr.mxu0 0.0
      %1169 = vmatpush1.msra.mxu0 0.0
      %1170 = vmatprep.subr.mxu0 0.0
      %1171 = vmatpush1.msra.mxu0 0.0
      %1172 = vmatprep.subr.mxu0 0.0
      %1173 = vmatpush1.msra.mxu0 0.0
      %1174 = vmatprep.subr.mxu0 0.0
      %1175 = vmatpush1.msra.mxu0 0.0
      %1176 = vmatprep.subr.mxu0 0.0
      %1177 = vmatpush1.msra.mxu0 0.0
      %1178 = vmatprep.subr.mxu0 0.0
      %1179 = vmatpush1.msra.mxu0 0.0
      %1180 = vmatprep.subr.mxu0 0.0
      %1181 = vmatpush1.msra.mxu0 0.0
      %1182 = vmatprep.subr.mxu0 0.0
      %1183 = vmatpush1.msra.mxu0 0.0
      %1184 = vmatprep.subr.mxu0 0.0
      %1185 = vmatpush1.msra.mxu0 0.0
      %1186 = vmatprep.subr.mxu0 0.0
      %1187 = vmatpush1.msra.mxu0 0.0
      %1188 = vmatprep.subr.mxu0 0.0
      %1189 = vmatpush1.msra.mxu0 0.0
      %1190 = vmatprep.subr.mxu0 0.0
      %1191 = vmatpush1.msra.mxu0 0.0
      %1192 = vmatprep.subr.mxu0 0.0
      %1193 = vmatpush1.msra.mxu0 0.0
      %1194 = vmatprep.mubr.f32.mxu0 0.0
      %1195 = vmatmul.mubr.f32.gmra.mrb[0].mxu0 %v1083
      %v1196 = vpop.f32.mrb[0].mxu0
      %v1197 = vadd.f32 0.0, %v1196
      %v1198 = vpop.f32.mrb[0].mxu0
      %1199 = vmatprep.mubr.f32.mxu0 0.0
      %1200 = vmatmul.mubr.f32.gmra.mrb[0].mxu0 %v1086
      %v1201 = vpop.f32.mrb[0].mxu0
      %v1202 = vadd.f32 0.0, %v1201
      %v1203 = vpop.f32.mrb[0].mxu0
      %1204 = vmatprep.mubr.f32.mxu0 0.0
      %1205 = vmatmul.mubr.f32.gmra.mrb[0].mxu0 %v1089
      %v1206 = vpop.f32.mrb[0].mxu0
      %v1207 = vadd.f32 0.0, %v1206
      %v1208 = vpop.f32.mrb[0].mxu0
      %1209 = vmatprep.mubr.f32.mxu0 0.0
      %1210 = vmatmul.mubr.f32.gmra.mrb[0].mxu0 %v1092
      %v1211 = vpop.f32.mrb[0].mxu0
      %v1212 = vadd.f32 0.0, %v1211
      %v1213 = vpop.f32.mrb[0].mxu0
      %1214 = vmatprep.mubr.f32.mxu0 0.0
      %1215 = vmatmul.mubr.f32.gmra.mrb[0].mxu0 %v1095
      %v1216 = vpop.f32.mrb[0].mxu0
      %v1217 = vadd.f32 0.0, %v1216
      %v1218 = vpop.f32.mrb[0].mxu0
      %1219 = vmatprep.mubr.f32.mxu0 0.0
      %1220 = vmatmul.mubr.f32.gmra.mrb[0].mxu0 %v1098
      %v1221 = vpop.f32.mrb[0].mxu0
      %v1222 = vadd.f32 0.0, %v1221
      %v1223 = vpop.f32.mrb[0].mxu0
      %1224 = vmatprep.mubr.f32.mxu0 0.0
      %1225 = vmatmul.mubr.f32.gmra.mrb[0].mxu0 %v1101
      %v1226 = vpop.f32.mrb[0].mxu0
      %v1227 = vadd.f32 0.0, %v1226
      %v1228 = vpop.f32.mrb[0].mxu0
      %1229 = vmatprep.mubr.f32.mxu0 0.0
      %1230 = vmatmul.mubr.f32.gmra.mrb[0].mxu0 %v1104
      %v1231 = vpop.f32.mrb[0].mxu0
      %v1232 = vadd.f32 0.0, %v1231
      %v1233 = vpop.f32.mrb[0].mxu0
      %1234 = vmatprep.mubr.f32.mxu0 0.0
      %1235 = vmatmul.mubr.f32.gmra.mrb[0].mxu0 %v1107
      %v1236 = vpop.f32.mrb[0].mxu0
      %v1237 = vadd.f32 0.0, %v1236
      %v1238 = vpop.f32.mrb[0].mxu0
      %1239 = vmatprep.mubr.f32.mxu0 0.0
      %1240 = vmatmul.mubr.f32.gmra.mrb[0].mxu0 %v1110
      %v1241 = vpop.f32.mrb[0].mxu0
      %v1242 = vadd.f32 0.0, %v1241
      %v1243 = vpop.f32.mrb[0].mxu0
      %1244 = vmatprep.mubr.f32.mxu0 0.0
      %1245 = vmatmul.mubr.f32.gmra.mrb[0].mxu0 %v1113
      %v1246 = vpop.f32.mrb[0].mxu0
      %v1247 = vadd.f32 0.0, %v1246
      %v1248 = vpop.f32.mrb[0].mxu0
      %1249 = vmatprep.mubr.f32.mxu0 0.0
      %1250 = vmatmul.mubr.f32.gmra.mrb[0].mxu0 %v1116
      %v1251 = vpop.f32.mrb[0].mxu0
      %v1252 = vadd.f32 0.0, %v1251
      %v1253 = vpop.f32.mrb[0].mxu0
      %1254 = vmatprep.mubr.f32.mxu0 0.0
      %1255 = vmatmul.mubr.f32.gmra.mrb[0].mxu0 %v1119
      %v1256 = vpop.f32.mrb[0].mxu0
      %v1257 = vadd.f32 0.0, %v1256
      %v1258 = vpop.f32.mrb[0].mxu0
      %1259 = vmatprep.mubr.f32.mxu0 0.0
      %1260 = vmatmul.mubr.f32.gmra.mrb[0].mxu0 %v1122
      %v1261 = vpop.f32.mrb[0].mxu0
      %v1262 = vadd.f32 0.0, %v1261
      %v1263 = vpop.f32.mrb[0].mxu0
      %1264 = vmatprep.mubr.f32.mxu0 0.0
      %1265 = vmatmul.mubr.f32.gmra.mrb[0].mxu0 %v1125
      %v1266 = vpop.f32.mrb[0].mxu0
      %v1267 = vadd.f32 0.0, %v1266
      %v1268 = vpop.f32.mrb[0].mxu0
      %1269 = vmatprep.mubr.f32.mxu0 0.0
      %1270 = vmatmul.mubr.f32.gmra.mrb[0].mxu0 %v1128
      %v1271 = vpop.f32.mrb[0].mxu0
      %v1272 = vadd.f32 0.0, %v1271
      %v1273 = vpop.f32.mrb[0].mxu0
      %1274 = vdwg.mxu0
      %v1275 = vld [vmem:[%s5] sm:$0xff]
      %v1276 = vld [vmem:[%s5 + $0x8] sm:$0xf]
      %vm1277 = vcmask 97280
      %v1279 = vsel %vm1277, %v1197, 0
      %v1282 = vsel %vm1277, %v1202, 0
      %v1285 = vsel %vm1277, %v1207, 0
      %v1288 = vsel %vm1277, %v1212, 0
      %v1291 = vsel %vm1277, %v1217, 0
      %v1294 = vsel %vm1277, %v1222, 0
      %v1297 = vsel %vm1277, %v1227, 0
      %v1300 = vsel %vm1277, %v1232, 0
      %v1303 = vsel %vm1277, %v1237, 0
      %v1306 = vsel %vm1277, %v1242, 0
      %v1309 = vsel %vm1277, %v1247, 0
      %v1312 = vsel %vm1277, %v1252, 0
      %v1315 = vsel %vm1277, %v1257, 0
      %v1318 = vsel %vm1277, %v1262, 0
      %v1321 = vsel %vm1277, %v1267, 0
      %v1324 = vsel %vm1277, %v1272, 0
      %vm1326 = vcmask 1043456
      %v1328 = vsel %vm1326, %v1276, 0
      %1330 = vmatprep.subr.mxu0 0.0
      %1331 = vmatpush1.msra.mxu0 %v1275
      %1332 = vmatprep.subr.mxu0 0.0
      %1333 = vmatpush1.msra.mxu0 %v1328
      %1334 = vmatprep.subr.mxu0 0.0
      %1335 = vmatpush1.msra.mxu0 0.0
      %1336 = vmatprep.subr.mxu0 0.0
      %1337 = vmatpush1.msra.mxu0 0.0
      %1338 = vmatprep.subr.mxu0 0.0
      %1339 = vmatpush1.msra.mxu0 0.0
      %1340 = vmatprep.subr.mxu0 0.0
      %1341 = vmatpush1.msra.mxu0 0.0
      %1342 = vmatprep.subr.mxu0 0.0
      %1343 = vmatpush1.msra.mxu0 0.0
      %1344 = vmatprep.subr.mxu0 0.0
      %1345 = vmatpush1.msra.mxu0 0.0
      %1346 = vmatprep.subr.mxu0 0.0
      %1347 = vmatpush1.msra.mxu0 0.0
      %1348 = vmatprep.subr.mxu0 0.0
      %1349 = vmatpush1.msra.mxu0 0.0
      %1350 = vmatprep.subr.mxu0 0.0
      %1351 = vmatpush1.msra.mxu0 0.0
      %1352 = vmatprep.subr.mxu0 0.0
      %1353 = vmatpush1.msra.mxu0 0.0
      %1354 = vmatprep.subr.mxu0 0.0
      %1355 = vmatpush1.msra.mxu0 0.0
      %1356 = vmatprep.subr.mxu0 0.0
      %1357 = vmatpush1.msra.mxu0 0.0
      %1358 = vmatprep.subr.mxu0 0.0
      %1359 = vmatpush1.msra.mxu0 0.0
      %1360 = vmatprep.subr.mxu0 0.0
      %1361 = vmatpush1.msra.mxu0 0.0
      %1362 = vmatprep.subr.mxu0 0.0
      %1363 = vmatpush1.msra.mxu0 0.0
      %1364 = vmatprep.subr.mxu0 0.0
      %1365 = vmatpush1.msra.mxu0 0.0
      %1366 = vmatprep.subr.mxu0 0.0
      %1367 = vmatpush1.msra.mxu0 0.0
      %1368 = vmatprep.subr.mxu0 0.0
      %1369 = vmatpush1.msra.mxu0 0.0
      %1370 = vmatprep.subr.mxu0 0.0
      %1371 = vmatpush1.msra.mxu0 0.0
      %1372 = vmatprep.subr.mxu0 0.0
      %1373 = vmatpush1.msra.mxu0 0.0
      %1374 = vmatprep.subr.mxu0 0.0
      %1375 = vmatpush1.msra.mxu0 0.0
      %1376 = vmatprep.subr.mxu0 0.0
      %1377 = vmatpush1.msra.mxu0 0.0
      %1378 = vmatprep.subr.mxu0 0.0
      %1379 = vmatpush1.msra.mxu0 0.0
      %1380 = vmatprep.subr.mxu0 0.0
      %1381 = vmatpush1.msra.mxu0 0.0
      %1382 = vmatprep.subr.mxu0 0.0
      %1383 = vmatpush1.msra.mxu0 0.0
      %1384 = vmatprep.subr.mxu0 0.0
      %1385 = vmatpush1.msra.mxu0 0.0
      %1386 = vmatprep.subr.mxu0 0.0
      %1387 = vmatpush1.msra.mxu0 0.0
      %1388 = vmatprep.subr.mxu0 0.0
      %1389 = vmatpush1.msra.mxu0 0.0
      %1390 = vmatprep.subr.mxu0 0.0
      %1391 = vmatpush1.msra.mxu0 0.0
      %1392 = vmatprep.subr.mxu0 0.0
      %1393 = vmatpush1.msra.mxu0 0.0
      %1394 = vmatprep.mubr.f32.mxu0 0.0
      %1395 = vmatmul.mubr.f32.gmra.mrb[0].mxu0 %v1279
      %v1396 = vpop.f32.mrb[0].mxu0
      %v1397 = vadd.f32 0.0, %v1396
      %v1398 = vpop.f32.mrb[0].mxu0
      %1399 = vmatprep.mubr.f32.mxu0 0.0
      %1400 = vmatmul.mubr.f32.gmra.mrb[0].mxu0 %v1282
      %v1401 = vpop.f32.mrb[0].mxu0
      %v1402 = vadd.f32 0.0, %v1401
      %v1403 = vpop.f32.mrb[0].mxu0
      %1404 = vmatprep.mubr.f32.mxu0 0.0
      %1405 = vmatmul.mubr.f32.gmra.mrb[0].mxu0 %v1285
      %v1406 = vpop.f32.mrb[0].mxu0
      %v1407 = vadd.f32 0.0, %v1406
      %v1408 = vpop.f32.mrb[0].mxu0
      %1409 = vmatprep.mubr.f32.mxu0 0.0
      %1410 = vmatmul.mubr.f32.gmra.mrb[0].mxu0 %v1288
      %v1411 = vpop.f32.mrb[0].mxu0
      %v1412 = vadd.f32 0.0, %v1411
      %v1413 = vpop.f32.mrb[0].mxu0
      %1414 = vmatprep.mubr.f32.mxu0 0.0
      %1415 = vmatmul.mubr.f32.gmra.mrb[0].mxu0 %v1291
      %v1416 = vpop.f32.mrb[0].mxu0
      %v1417 = vadd.f32 0.0, %v1416
      %v1418 = vpop.f32.mrb[0].mxu0
      %1419 = vmatprep.mubr.f32.mxu0 0.0
      %1420 = vmatmul.mubr.f32.gmra.mrb[0].mxu0 %v1294
      %v1421 = vpop.f32.mrb[0].mxu0
      %v1422 = vadd.f32 0.0, %v1421
      %v1423 = vpop.f32.mrb[0].mxu0
      %1424 = vmatprep.mubr.f32.mxu0 0.0
      %1425 = vmatmul.mubr.f32.gmra.mrb[0].mxu0 %v1297
      %v1426 = vpop.f32.mrb[0].mxu0
      %v1427 = vadd.f32 0.0, %v1426
      %v1428 = vpop.f32.mrb[0].mxu0
      %1429 = vmatprep.mubr.f32.mxu0 0.0
      %1430 = vmatmul.mubr.f32.gmra.mrb[0].mxu0 %v1300
      %v1431 = vpop.f32.mrb[0].mxu0
      %v1432 = vadd.f32 0.0, %v1431
      %v1433 = vpop.f32.mrb[0].mxu0
      %1434 = vmatprep.mubr.f32.mxu0 0.0
      %1435 = vmatmul.mubr.f32.gmra.mrb[0].mxu0 %v1303
      %v1436 = vpop.f32.mrb[0].mxu0
      %v1437 = vadd.f32 0.0, %v1436
      %v1438 = vpop.f32.mrb[0].mxu0
      %1439 = vmatprep.mubr.f32.mxu0 0.0
      %1440 = vmatmul.mubr.f32.gmra.mrb[0].mxu0 %v1306
      %v1441 = vpop.f32.mrb[0].mxu0
      %v1442 = vadd.f32 0.0, %v1441
      %v1443 = vpop.f32.mrb[0].mxu0
      %1444 = vmatprep.mubr.f32.mxu0 0.0
      %1445 = vmatmul.mubr.f32.gmra.mrb[0].mxu0 %v1309
      %v1446 = vpop.f32.mrb[0].mxu0
      %v1447 = vadd.f32 0.0, %v1446
      %v1448 = vpop.f32.mrb[0].mxu0
      %1449 = vmatprep.mubr.f32.mxu0 0.0
      %1450 = vmatmul.mubr.f32.gmra.mrb[0].mxu0 %v1312
      %v1451 = vpop.f32.mrb[0].mxu0
      %v1452 = vadd.f32 0.0, %v1451
      %v1453 = vpop.f32.mrb[0].mxu0
      %1454 = vmatprep.mubr.f32.mxu0 0.0
      %1455 = vmatmul.mubr.f32.gmra.mrb[0].mxu0 %v1315
      %v1456 = vpop.f32.mrb[0].mxu0
      %v1457 = vadd.f32 0.0, %v1456
      %v1458 = vpop.f32.mrb[0].mxu0
      %1459 = vmatprep.mubr.f32.mxu0 0.0
      %1460 = vmatmul.mubr.f32.gmra.mrb[0].mxu0 %v1318
      %v1461 = vpop.f32.mrb[0].mxu0
      %v1462 = vadd.f32 0.0, %v1461
      %v1463 = vpop.f32.mrb[0].mxu0
      %1464 = vmatprep.mubr.f32.mxu0 0.0
      %1465 = vmatmul.mubr.f32.gmra.mrb[0].mxu0 %v1321
      %v1466 = vpop.f32.mrb[0].mxu0
      %v1467 = vadd.f32 0.0, %v1466
      %v1468 = vpop.f32.mrb[0].mxu0
      %1469 = vmatprep.mubr.f32.mxu0 0.0
      %1470 = vmatmul.mubr.f32.gmra.mrb[0].mxu0 %v1324
      %v1471 = vpop.f32.mrb[0].mxu0
      %v1472 = vadd.f32 0.0, %v1471
      %v1473 = vpop.f32.mrb[0].mxu0
      %1474 = vdwg.mxu0
      %v1475 = vadd.f32 %v1049, %v1397
      %v1476 = vadd.f32 %v1050, %v1402
      %v1477 = vadd.f32 %v1051, %v1407
      %v1478 = vadd.f32 %v1052, %v1412
      %v1479 = vadd.f32 %v1053, %v1417
      %v1480 = vadd.f32 %v1054, %v1422
      %v1481 = vadd.f32 %v1055, %v1427
      %v1482 = vadd.f32 %v1056, %v1432
      %v1483 = vadd.f32 %v1057, %v1437
      %v1484 = vadd.f32 %v1058, %v1442
      %v1485 = vadd.f32 %v1059, %v1447
      %v1486 = vadd.f32 %v1060, %v1452
      %v1487 = vadd.f32 %v1061, %v1457
      %v1488 = vadd.f32 %v1062, %v1462
      %v1489 = vadd.f32 %v1063, %v1467
      %v1490 = vadd.f32 %v1064, %v1472
      %s1491 = scalar_lea.vmem %s3, 128
      %v1492 = vld [vmem:[%s1491] sm:$0xff]
      %v1493 = vld [vmem:[%s1491 + $0x8] sm:$0xff]
      %v1494 = vld [vmem:[%s1491 + $0x10] sm:$0xff]
      %v1495 = vld [vmem:[%s1491 + $0x18] sm:$0xff]
      %v1496 = vld [vmem:[%s1491 + $0x20] sm:$0xff]
      %v1497 = vld [vmem:[%s1491 + $0x28] sm:$0xff]
      %v1498 = vld [vmem:[%s1491 + $0x30] sm:$0xff]
      %v1499 = vld [vmem:[%s1491 + $0x38] sm:$0xff]
      %v1500 = vld [vmem:[%s1491 + $0x40] sm:$0xff]
      %v1501 = vld [vmem:[%s1491 + $0x48] sm:$0xff]
      %v1502 = vld [vmem:[%s1491 + $0x50] sm:$0xff]
      %v1503 = vld [vmem:[%s1491 + $0x58] sm:$0xff]
      %v1504 = vld [vmem:[%s1491 + $0x60] sm:$0xff]
      %v1505 = vld [vmem:[%s1491 + $0x68] sm:$0xff]
      %v1506 = vld [vmem:[%s1491 + $0x70] sm:$0xff]
      %v1507 = vld [vmem:[%s1491 + $0x78] sm:$0xff]
      %v1509 = vsel %vm1081, %v1492, 0
      %v1512 = vsel %vm1081, %v1493, 0
      %v1515 = vsel %vm1081, %v1494, 0
      %v1518 = vsel %vm1081, %v1495, 0
      %v1521 = vsel %vm1081, %v1496, 0
      %v1524 = vsel %vm1081, %v1497, 0
      %v1527 = vsel %vm1081, %v1498, 0
      %v1530 = vsel %vm1081, %v1499, 0
      %v1533 = vsel %vm1081, %v1500, 0
      %v1536 = vsel %vm1081, %v1501, 0
      %v1539 = vsel %vm1081, %v1502, 0
      %v1542 = vsel %vm1081, %v1503, 0
      %v1545 = vsel %vm1081, %v1504, 0
      %v1548 = vsel %vm1081, %v1505, 0
      %v1551 = vsel %vm1081, %v1506, 0
      %v1554 = vsel %vm1081, %v1507, 0
      %1556 = vmatprep.subr.mxu0 0.0
      %1557 = vmatpush1.msra.mxu0 %v1040
      %1558 = vmatprep.subr.mxu0 0.0
      %1559 = vmatpush1.msra.mxu0 %v1041
      %1560 = vmatprep.subr.mxu0 0.0
      %1561 = vmatpush1.msra.mxu0 %v1042
      %1562 = vmatprep.subr.mxu0 0.0
      %1563 = vmatpush1.msra.mxu0 %v1043
      %1564 = vmatprep.subr.mxu0 0.0
      %1565 = vmatpush1.msra.mxu0 %v1044
      %1566 = vmatprep.subr.mxu0 0.0
      %1567 = vmatpush1.msra.mxu0 %v1045
      %1568 = vmatprep.subr.mxu0 0.0
      %1569 = vmatpush1.msra.mxu0 %v1046
      %1570 = vmatprep.subr.mxu0 0.0
      %1571 = vmatpush1.msra.mxu0 %v1047
      %1572 = vmatprep.subr.mxu0 0.0
      %1573 = vmatpush1.msra.mxu0 %v1048
      %1574 = vmatprep.subr.mxu0 0.0
      %1575 = vmatpush1.msra.mxu0 0.0
      %1576 = vmatprep.subr.mxu0 0.0
      %1577 = vmatpush1.msra.mxu0 0.0
      %1578 = vmatprep.subr.mxu0 0.0
      %1579 = vmatpush1.msra.mxu0 0.0
      %1580 = vmatprep.subr.mxu0 0.0
      %1581 = vmatpush1.msra.mxu0 0.0
      %1582 = vmatprep.subr.mxu0 0.0
      %1583 = vmatpush1.msra.mxu0 0.0
      %1584 = vmatprep.subr.mxu0 0.0
      %1585 = vmatpush1.msra.mxu0 0.0
      %1586 = vmatprep.subr.mxu0 0.0
      %1587 = vmatpush1.msra.mxu0 0.0
      %1588 = vmatprep.subr.mxu0 0.0
      %1589 = vmatpush1.msra.mxu0 0.0
      %1590 = vmatprep.subr.mxu0 0.0
      %1591 = vmatpush1.msra.mxu0 0.0
      %1592 = vmatprep.subr.mxu0 0.0
      %1593 = vmatpush1.msra.mxu0 0.0
      %1594 = vmatprep.subr.mxu0 0.0
      %1595 = vmatpush1.msra.mxu0 0.0
      %1596 = vmatprep.subr.mxu0 0.0
      %1597 = vmatpush1.msra.mxu0 0.0
      %1598 = vmatprep.subr.mxu0 0.0
      %1599 = vmatpush1.msra.mxu0 0.0
      %1600 = vmatprep.subr.mxu0 0.0
      %1601 = vmatpush1.msra.mxu0 0.0
      %1602 = vmatprep.subr.mxu0 0.0
      %1603 = vmatpush1.msra.mxu0 0.0
      %1604 = vmatprep.subr.mxu0 0.0
      %1605 = vmatpush1.msra.mxu0 0.0
      %1606 = vmatprep.subr.mxu0 0.0
      %1607 = vmatpush1.msra.mxu0 0.0
      %1608 = vmatprep.subr.mxu0 0.0
      %1609 = vmatpush1.msra.mxu0 0.0
      %1610 = vmatprep.subr.mxu0 0.0
      %1611 = vmatpush1.msra.mxu0 0.0
      %1612 = vmatprep.subr.mxu0 0.0
      %1613 = vmatpush1.msra.mxu0 0.0
      %1614 = vmatprep.subr.mxu0 0.0
      %1615 = vmatpush1.msra.mxu0 0.0
      %1616 = vmatprep.subr.mxu0 0.0
      %1617 = vmatpush1.msra.mxu0 0.0
      %1618 = vmatprep.subr.mxu0 0.0
      %1619 = vmatpush1.msra.mxu0 0.0
      %1620 = vmatprep.mubr.f32.mxu0 0.0
      %1621 = vmatmul.mubr.f32.gmra.mrb[0].mxu0 %v1509
      %v1622 = vpop.f32.mrb[0].mxu0
      %v1623 = vadd.f32 0.0, %v1622
      %v1624 = vpop.f32.mrb[0].mxu0
      %1625 = vmatprep.mubr.f32.mxu0 0.0
      %1626 = vmatmul.mubr.f32.gmra.mrb[0].mxu0 %v1512
      %v1627 = vpop.f32.mrb[0].mxu0
      %v1628 = vadd.f32 0.0, %v1627
      %v1629 = vpop.f32.mrb[0].mxu0
      %1630 = vmatprep.mubr.f32.mxu0 0.0
      %1631 = vmatmul.mubr.f32.gmra.mrb[0].mxu0 %v1515
      %v1632 = vpop.f32.mrb[0].mxu0
      %v1633 = vadd.f32 0.0, %v1632
      %v1634 = vpop.f32.mrb[0].mxu0
      %1635 = vmatprep.mubr.f32.mxu0 0.0
      %1636 = vmatmul.mubr.f32.gmra.mrb[0].mxu0 %v1518
      %v1637 = vpop.f32.mrb[0].mxu0
      %v1638 = vadd.f32 0.0, %v1637
      %v1639 = vpop.f32.mrb[0].mxu0
      %1640 = vmatprep.mubr.f32.mxu0 0.0
      %1641 = vmatmul.mubr.f32.gmra.mrb[0].mxu0 %v1521
      %v1642 = vpop.f32.mrb[0].mxu0
      %v1643 = vadd.f32 0.0, %v1642
      %v1644 = vpop.f32.mrb[0].mxu0
      %1645 = vmatprep.mubr.f32.mxu0 0.0
      %1646 = vmatmul.mubr.f32.gmra.mrb[0].mxu0 %v1524
      %v1647 = vpop.f32.mrb[0].mxu0
      %v1648 = vadd.f32 0.0, %v1647
      %v1649 = vpop.f32.mrb[0].mxu0
      %1650 = vmatprep.mubr.f32.mxu0 0.0
      %1651 = vmatmul.mubr.f32.gmra.mrb[0].mxu0 %v1527
      %v1652 = vpop.f32.mrb[0].mxu0
      %v1653 = vadd.f32 0.0, %v1652
      %v1654 = vpop.f32.mrb[0].mxu0
      %1655 = vmatprep.mubr.f32.mxu0 0.0
      %1656 = vmatmul.mubr.f32.gmra.mrb[0].mxu0 %v1530
      %v1657 = vpop.f32.mrb[0].mxu0
      %v1658 = vadd.f32 0.0, %v1657
      %v1659 = vpop.f32.mrb[0].mxu0
      %1660 = vmatprep.mubr.f32.mxu0 0.0
      %1661 = vmatmul.mubr.f32.gmra.mrb[0].mxu0 %v1533
      %v1662 = vpop.f32.mrb[0].mxu0
      %v1663 = vadd.f32 0.0, %v1662
      %v1664 = vpop.f32.mrb[0].mxu0
      %1665 = vmatprep.mubr.f32.mxu0 0.0
      %1666 = vmatmul.mubr.f32.gmra.mrb[0].mxu0 %v1536
      %v1667 = vpop.f32.mrb[0].mxu0
      %v1668 = vadd.f32 0.0, %v1667
      %v1669 = vpop.f32.mrb[0].mxu0
      %1670 = vmatprep.mubr.f32.mxu0 0.0
      %1671 = vmatmul.mubr.f32.gmra.mrb[0].mxu0 %v1539
      %v1672 = vpop.f32.mrb[0].mxu0
      %v1673 = vadd.f32 0.0, %v1672
      %v1674 = vpop.f32.mrb[0].mxu0
      %1675 = vmatprep.mubr.f32.mxu0 0.0
      %1676 = vmatmul.mubr.f32.gmra.mrb[0].mxu0 %v1542
      %v1677 = vpop.f32.mrb[0].mxu0
      %v1678 = vadd.f32 0.0, %v1677
      %v1679 = vpop.f32.mrb[0].mxu0
      %1680 = vmatprep.mubr.f32.mxu0 0.0
      %1681 = vmatmul.mubr.f32.gmra.mrb[0].mxu0 %v1545
      %v1682 = vpop.f32.mrb[0].mxu0
      %v1683 = vadd.f32 0.0, %v1682
      %v1684 = vpop.f32.mrb[0].mxu0
      %1685 = vmatprep.mubr.f32.mxu0 0.0
      %1686 = vmatmul.mubr.f32.gmra.mrb[0].mxu0 %v1548
      %v1687 = vpop.f32.mrb[0].mxu0
      %v1688 = vadd.f32 0.0, %v1687
      %v1689 = vpop.f32.mrb[0].mxu0
      %1690 = vmatprep.mubr.f32.mxu0 0.0
      %1691 = vmatmul.mubr.f32.gmra.mrb[0].mxu0 %v1551
      %v1692 = vpop.f32.mrb[0].mxu0
      %v1693 = vadd.f32 0.0, %v1692
      %v1694 = vpop.f32.mrb[0].mxu0
      %1695 = vmatprep.mubr.f32.mxu0 0.0
      %1696 = vmatmul.mubr.f32.gmra.mrb[0].mxu0 %v1554
      %v1697 = vpop.f32.mrb[0].mxu0
      %v1698 = vadd.f32 0.0, %v1697
      %v1699 = vpop.f32.mrb[0].mxu0
      %1700 = vdwg.mxu0
      %s1701 = scalar_lea.vmem %s5, 16
      %v1702 = vld [vmem:[%s1701] sm:$0xff]
      %v1703 = vld [vmem:[%s1701 + $0x8] sm:$0xf]
      %v1705 = vsel %vm1277, %v1623, 0
      %v1708 = vsel %vm1277, %v1628, 0
      %v1711 = vsel %vm1277, %v1633, 0
      %v1714 = vsel %vm1277, %v1638, 0
      %v1717 = vsel %vm1277, %v1643, 0
      %v1720 = vsel %vm1277, %v1648, 0
      %v1723 = vsel %vm1277, %v1653, 0
      %v1726 = vsel %vm1277, %v1658, 0
      %v1729 = vsel %vm1277, %v1663, 0
      %v1732 = vsel %vm1277, %v1668, 0
      %v1735 = vsel %vm1277, %v1673, 0
      %v1738 = vsel %vm1277, %v1678, 0
      %v1741 = vsel %vm1277, %v1683, 0
      %v1744 = vsel %vm1277, %v1688, 0
      %v1747 = vsel %vm1277, %v1693, 0
      %v1750 = vsel %vm1277, %v1698, 0
      %v1753 = vsel %vm1326, %v1703, 0
      %1755 = vmatprep.subr.mxu0 0.0
      %1756 = vmatpush1.msra.mxu0 %v1702
      %1757 = vmatprep.subr.mxu0 0.0
      %1758 = vmatpush1.msra.mxu0 %v1753
      %1759 = vmatprep.subr.mxu0 0.0
      %1760 = vmatpush1.msra.mxu0 0.0
      %1761 = vmatprep.subr.mxu0 0.0
      %1762 = vmatpush1.msra.mxu0 0.0
      %1763 = vmatprep.subr.mxu0 0.0
      %1764 = vmatpush1.msra.mxu0 0.0
      %1765 = vmatprep.subr.mxu0 0.0
      %1766 = vmatpush1.msra.mxu0 0.0
      %1767 = vmatprep.subr.mxu0 0.0
      %1768 = vmatpush1.msra.mxu0 0.0
      %1769 = vmatprep.subr.mxu0 0.0
      %1770 = vmatpush1.msra.mxu0 0.0
      %1771 = vmatprep.subr.mxu0 0.0
      %1772 = vmatpush1.msra.mxu0 0.0
      %1773 = vmatprep.subr.mxu0 0.0
      %1774 = vmatpush1.msra.mxu0 0.0
      %1775 = vmatprep.subr.mxu0 0.0
      %1776 = vmatpush1.msra.mxu0 0.0
      %1777 = vmatprep.subr.mxu0 0.0
      %1778 = vmatpush1.msra.mxu0 0.0
      %1779 = vmatprep.subr.mxu0 0.0
      %1780 = vmatpush1.msra.mxu0 0.0
      %1781 = vmatprep.subr.mxu0 0.0
      %1782 = vmatpush1.msra.mxu0 0.0
      %1783 = vmatprep.subr.mxu0 0.0
      %1784 = vmatpush1.msra.mxu0 0.0
      %1785 = vmatprep.subr.mxu0 0.0
      %1786 = vmatpush1.msra.mxu0 0.0
      %1787 = vmatprep.subr.mxu0 0.0
      %1788 = vmatpush1.msra.mxu0 0.0
      %1789 = vmatprep.subr.mxu0 0.0
      %1790 = vmatpush1.msra.mxu0 0.0
      %1791 = vmatprep.subr.mxu0 0.0
      %1792 = vmatpush1.msra.mxu0 0.0
      %1793 = vmatprep.subr.mxu0 0.0
      %1794 = vmatpush1.msra.mxu0 0.0
      %1795 = vmatprep.subr.mxu0 0.0
      %1796 = vmatpush1.msra.mxu0 0.0
      %1797 = vmatprep.subr.mxu0 0.0
      %1798 = vmatpush1.msra.mxu0 0.0
      %1799 = vmatprep.subr.mxu0 0.0
      %1800 = vmatpush1.msra.mxu0 0.0
      %1801 = vmatprep.subr.mxu0 0.0
      %1802 = vmatpush1.msra.mxu0 0.0
      %1803 = vmatprep.subr.mxu0 0.0
      %1804 = vmatpush1.msra.mxu0 0.0
      %1805 = vmatprep.subr.mxu0 0.0
      %1806 = vmatpush1.msra.mxu0 0.0
      %1807 = vmatprep.subr.mxu0 0.0
      %1808 = vmatpush1.msra.mxu0 0.0
      %1809 = vmatprep.subr.mxu0 0.0
      %1810 = vmatpush1.msra.mxu0 0.0
      %1811 = vmatprep.subr.mxu0 0.0
      %1812 = vmatpush1.msra.mxu0 0.0
      %1813 = vmatprep.subr.mxu0 0.0
      %1814 = vmatpush1.msra.mxu0 0.0
      %1815 = vmatprep.subr.mxu0 0.0
      %1816 = vmatpush1.msra.mxu0 0.0
      %1817 = vmatprep.subr.mxu0 0.0
      %1818 = vmatpush1.msra.mxu0 0.0
      %1819 = vmatprep.mubr.f32.mxu0 0.0
      %1820 = vmatmul.mubr.f32.gmra.mrb[0].mxu0 %v1705
      %v1821 = vpop.f32.mrb[0].mxu0
      %v1822 = vadd.f32 0.0, %v1821
      %v1823 = vpop.f32.mrb[0].mxu0
      %1824 = vmatprep.mubr.f32.mxu0 0.0
      %1825 = vmatmul.mubr.f32.gmra.mrb[0].mxu0 %v1708
      %v1826 = vpop.f32.mrb[0].mxu0
      %v1827 = vadd.f32 0.0, %v1826
      %v1828 = vpop.f32.mrb[0].mxu0
      %1829 = vmatprep.mubr.f32.mxu0 0.0
      %1830 = vmatmul.mubr.f32.gmra.mrb[0].mxu0 %v1711
      %v1831 = vpop.f32.mrb[0].mxu0
      %v1832 = vadd.f32 0.0, %v1831
      %v1833 = vpop.f32.mrb[0].mxu0
      %1834 = vmatprep.mubr.f32.mxu0 0.0
      %1835 = vmatmul.mubr.f32.gmra.mrb[0].mxu0 %v1714
      %v1836 = vpop.f32.mrb[0].mxu0
      %v1837 = vadd.f32 0.0, %v1836
      %v1838 = vpop.f32.mrb[0].mxu0
      %1839 = vmatprep.mubr.f32.mxu0 0.0
      %1840 = vmatmul.mubr.f32.gmra.mrb[0].mxu0 %v1717
      %v1841 = vpop.f32.mrb[0].mxu0
      %v1842 = vadd.f32 0.0, %v1841
      %v1843 = vpop.f32.mrb[0].mxu0
      %1844 = vmatprep.mubr.f32.mxu0 0.0
      %1845 = vmatmul.mubr.f32.gmra.mrb[0].mxu0 %v1720
      %v1846 = vpop.f32.mrb[0].mxu0
      %v1847 = vadd.f32 0.0, %v1846
      %v1848 = vpop.f32.mrb[0].mxu0
      %1849 = vmatprep.mubr.f32.mxu0 0.0
      %1850 = vmatmul.mubr.f32.gmra.mrb[0].mxu0 %v1723
      %v1851 = vpop.f32.mrb[0].mxu0
      %v1852 = vadd.f32 0.0, %v1851
      %v1853 = vpop.f32.mrb[0].mxu0
      %1854 = vmatprep.mubr.f32.mxu0 0.0
      %1855 = vmatmul.mubr.f32.gmra.mrb[0].mxu0 %v1726
      %v1856 = vpop.f32.mrb[0].mxu0
      %v1857 = vadd.f32 0.0, %v1856
      %v1858 = vpop.f32.mrb[0].mxu0
      %1859 = vmatprep.mubr.f32.mxu0 0.0
      %1860 = vmatmul.mubr.f32.gmra.mrb[0].mxu0 %v1729
      %v1861 = vpop.f32.mrb[0].mxu0
      %v1862 = vadd.f32 0.0, %v1861
      %v1863 = vpop.f32.mrb[0].mxu0
      %1864 = vmatprep.mubr.f32.mxu0 0.0
      %1865 = vmatmul.mubr.f32.gmra.mrb[0].mxu0 %v1732
      %v1866 = vpop.f32.mrb[0].mxu0
      %v1867 = vadd.f32 0.0, %v1866
      %v1868 = vpop.f32.mrb[0].mxu0
      %1869 = vmatprep.mubr.f32.mxu0 0.0
      %1870 = vmatmul.mubr.f32.gmra.mrb[0].mxu0 %v1735
      %v1871 = vpop.f32.mrb[0].mxu0
      %v1872 = vadd.f32 0.0, %v1871
      %v1873 = vpop.f32.mrb[0].mxu0
      %1874 = vmatprep.mubr.f32.mxu0 0.0
      %1875 = vmatmul.mubr.f32.gmra.mrb[0].mxu0 %v1738
      %v1876 = vpop.f32.mrb[0].mxu0
      %v1877 = vadd.f32 0.0, %v1876
      %v1878 = vpop.f32.mrb[0].mxu0
      %1879 = vmatprep.mubr.f32.mxu0 0.0
      %1880 = vmatmul.mubr.f32.gmra.mrb[0].mxu0 %v1741
      %v1881 = vpop.f32.mrb[0].mxu0
      %v1882 = vadd.f32 0.0, %v1881
      %v1883 = vpop.f32.mrb[0].mxu0
      %1884 = vmatprep.mubr.f32.mxu0 0.0
      %1885 = vmatmul.mubr.f32.gmra.mrb[0].mxu0 %v1744
      %v1886 = vpop.f32.mrb[0].mxu0
      %v1887 = vadd.f32 0.0, %v1886
      %v1888 = vpop.f32.mrb[0].mxu0
      %1889 = vmatprep.mubr.f32.mxu0 0.0
      %1890 = vmatmul.mubr.f32.gmra.mrb[0].mxu0 %v1747
      %v1891 = vpop.f32.mrb[0].mxu0
      %v1892 = vadd.f32 0.0, %v1891
      %v1893 = vpop.f32.mrb[0].mxu0
      %1894 = vmatprep.mubr.f32.mxu0 0.0
      %1895 = vmatmul.mubr.f32.gmra.mrb[0].mxu0 %v1750
      %v1896 = vpop.f32.mrb[0].mxu0
      %v1897 = vadd.f32 0.0, %v1896
      %v1898 = vpop.f32.mrb[0].mxu0
      %1899 = vdwg.mxu0
      %v1900 = vadd.f32 %v1475, %v1822
      %v1901 = vadd.f32 %v1476, %v1827
      %v1902 = vadd.f32 %v1477, %v1832
      %v1903 = vadd.f32 %v1478, %v1837
      %v1904 = vadd.f32 %v1479, %v1842
      %v1905 = vadd.f32 %v1480, %v1847
      %v1906 = vadd.f32 %v1481, %v1852
      %v1907 = vadd.f32 %v1482, %v1857
      %v1908 = vadd.f32 %v1483, %v1862
      %v1909 = vadd.f32 %v1484, %v1867
      %v1910 = vadd.f32 %v1485, %v1872
      %v1911 = vadd.f32 %v1486, %v1877
      %v1912 = vadd.f32 %v1487, %v1882
      %v1913 = vadd.f32 %v1488, %v1887
      %v1914 = vadd.f32 %v1489, %v1892
      %v1915 = vadd.f32 %v1490, %v1897
      %s1916 = scalar_lea.vmem %s3, 256
      %v1917 = vld [vmem:[%s1916] sm:$0xff]
      %v1918 = vld [vmem:[%s1916 + $0x8] sm:$0xff]
      %v1919 = vld [vmem:[%s1916 + $0x10] sm:$0xff]
      %v1920 = vld [vmem:[%s1916 + $0x18] sm:$0xff]
      %v1921 = vld [vmem:[%s1916 + $0x20] sm:$0xff]
      %v1922 = vld [vmem:[%s1916 + $0x28] sm:$0xff]
      %v1923 = vld [vmem:[%s1916 + $0x30] sm:$0xff]
      %v1924 = vld [vmem:[%s1916 + $0x38] sm:$0xff]
      %v1925 = vld [vmem:[%s1916 + $0x40] sm:$0xff]
      %v1926 = vld [vmem:[%s1916 + $0x48] sm:$0xff]
      %v1927 = vld [vmem:[%s1916 + $0x50] sm:$0xff]
      %v1928 = vld [vmem:[%s1916 + $0x58] sm:$0xff]
      %v1929 = vld [vmem:[%s1916 + $0x60] sm:$0xff]
      %v1930 = vld [vmem:[%s1916 + $0x68] sm:$0xff]
      %v1931 = vld [vmem:[%s1916 + $0x70] sm:$0xff]
      %v1932 = vld [vmem:[%s1916 + $0x78] sm:$0xff]
      %v1934 = vsel %vm1081, %v1917, 0
      %v1937 = vsel %vm1081, %v1918, 0
      %v1940 = vsel %vm1081, %v1919, 0
      %v1943 = vsel %vm1081, %v1920, 0
      %v1946 = vsel %vm1081, %v1921, 0
      %v1949 = vsel %vm1081, %v1922, 0
      %v1952 = vsel %vm1081, %v1923, 0
      %v1955 = vsel %vm1081, %v1924, 0
      %v1958 = vsel %vm1081, %v1925, 0
      %v1961 = vsel %vm1081, %v1926, 0
      %v1964 = vsel %vm1081, %v1927, 0
      %v1967 = vsel %vm1081, %v1928, 0
      %v1970 = vsel %vm1081, %v1929, 0
      %v1973 = vsel %vm1081, %v1930, 0
      %v1976 = vsel %vm1081, %v1931, 0
      %v1979 = vsel %vm1081, %v1932, 0
      %1981 = vmatprep.subr.mxu0 0.0
      %1982 = vmatpush1.msra.mxu0 %v1040
      %1983 = vmatprep.subr.mxu0 0.0
      %1984 = vmatpush1.msra.mxu0 %v1041
      %1985 = vmatprep.subr.mxu0 0.0
      %1986 = vmatpush1.msra.mxu0 %v1042
      %1987 = vmatprep.subr.mxu0 0.0
      %1988 = vmatpush1.msra.mxu0 %v1043
      %1989 = vmatprep.subr.mxu0 0.0
      %1990 = vmatpush1.msra.mxu0 %v1044
      %1991 = vmatprep.subr.mxu0 0.0
      %1992 = vmatpush1.msra.mxu0 %v1045
      %1993 = vmatprep.subr.mxu0 0.0
      %1994 = vmatpush1.msra.mxu0 %v1046
      %1995 = vmatprep.subr.mxu0 0.0
      %1996 = vmatpush1.msra.mxu0 %v1047
      %1997 = vmatprep.subr.mxu0 0.0
      %1998 = vmatpush1.msra.mxu0 %v1048
      %1999 = vmatprep.subr.mxu0 0.0
      %2000 = vmatpush1.msra.mxu0 0.0
      %2001 = vmatprep.subr.mxu0 0.0
      %2002 = vmatpush1.msra.mxu0 0.0
      %2003 = vmatprep.subr.mxu0 0.0
      %2004 = vmatpush1.msra.mxu0 0.0
      %2005 = vmatprep.subr.mxu0 0.0
      %2006 = vmatpush1.msra.mxu0 0.0
      %2007 = vmatprep.subr.mxu0 0.0
      %2008 = vmatpush1.msra.mxu0 0.0
      %2009 = vmatprep.subr.mxu0 0.0
      %2010 = vmatpush1.msra.mxu0 0.0
      %2011 = vmatprep.subr.mxu0 0.0
      %2012 = vmatpush1.msra.mxu0 0.0
      %2013 = vmatprep.subr.mxu0 0.0
      %2014 = vmatpush1.msra.mxu0 0.0
      %2015 = vmatprep.subr.mxu0 0.0
      %2016 = vmatpush1.msra.mxu0 0.0
      %2017 = vmatprep.subr.mxu0 0.0
      %2018 = vmatpush1.msra.mxu0 0.0
      %2019 = vmatprep.subr.mxu0 0.0
      %2020 = vmatpush1.msra.mxu0 0.0
      %2021 = vmatprep.subr.mxu0 0.0
      %2022 = vmatpush1.msra.mxu0 0.0
      %2023 = vmatprep.subr.mxu0 0.0
      %2024 = vmatpush1.msra.mxu0 0.0
      %2025 = vmatprep.subr.mxu0 0.0
      %2026 = vmatpush1.msra.mxu0 0.0
      %2027 = vmatprep.subr.mxu0 0.0
      %2028 = vmatpush1.msra.mxu0 0.0
      %2029 = vmatprep.subr.mxu0 0.0
      %2030 = vmatpush1.msra.mxu0 0.0
      %2031 = vmatprep.subr.mxu0 0.0
      %2032 = vmatpush1.msra.mxu0 0.0
      %2033 = vmatprep.subr.mxu0 0.0
      %2034 = vmatpush1.msra.mxu0 0.0
      %2035 = vmatprep.subr.mxu0 0.0
      %2036 = vmatpush1.msra.mxu0 0.0
      %2037 = vmatprep.subr.mxu0 0.0
      %2038 = vmatpush1.msra.mxu0 0.0
      %2039 = vmatprep.subr.mxu0 0.0
      %2040 = vmatpush1.msra.mxu0 0.0
      %2041 = vmatprep.subr.mxu0 0.0
      %2042 = vmatpush1.msra.mxu0 0.0
      %2043 = vmatprep.subr.mxu0 0.0
      %2044 = vmatpush1.msra.mxu0 0.0
      %2045 = vmatprep.mubr.f32.mxu0 0.0
      %2046 = vmatmul.mubr.f32.gmra.mrb[0].mxu0 %v1934
      %v2047 = vpop.f32.mrb[0].mxu0
      %v2048 = vadd.f32 0.0, %v2047
      %v2049 = vpop.f32.mrb[0].mxu0
      %2050 = vmatprep.mubr.f32.mxu0 0.0
      %2051 = vmatmul.mubr.f32.gmra.mrb[0].mxu0 %v1937
      %v2052 = vpop.f32.mrb[0].mxu0
      %v2053 = vadd.f32 0.0, %v2052
      %v2054 = vpop.f32.mrb[0].mxu0
      %2055 = vmatprep.mubr.f32.mxu0 0.0
      %2056 = vmatmul.mubr.f32.gmra.mrb[0].mxu0 %v1940
      %v2057 = vpop.f32.mrb[0].mxu0
      %v2058 = vadd.f32 0.0, %v2057
      %v2059 = vpop.f32.mrb[0].mxu0
      %2060 = vmatprep.mubr.f32.mxu0 0.0
      %2061 = vmatmul.mubr.f32.gmra.mrb[0].mxu0 %v1943
      %v2062 = vpop.f32.mrb[0].mxu0
      %v2063 = vadd.f32 0.0, %v2062
      %v2064 = vpop.f32.mrb[0].mxu0
      %2065 = vmatprep.mubr.f32.mxu0 0.0
      %2066 = vmatmul.mubr.f32.gmra.mrb[0].mxu0 %v1946
      %v2067 = vpop.f32.mrb[0].mxu0
      %v2068 = vadd.f32 0.0, %v2067
      %v2069 = vpop.f32.mrb[0].mxu0
      %2070 = vmatprep.mubr.f32.mxu0 0.0
      %2071 = vmatmul.mubr.f32.gmra.mrb[0].mxu0 %v1949
      %v2072 = vpop.f32.mrb[0].mxu0
      %v2073 = vadd.f32 0.0, %v2072
      %v2074 = vpop.f32.mrb[0].mxu0
      %2075 = vmatprep.mubr.f32.mxu0 0.0
      %2076 = vmatmul.mubr.f32.gmra.mrb[0].mxu0 %v1952
      %v2077 = vpop.f32.mrb[0].mxu0
      %v2078 = vadd.f32 0.0, %v2077
      %v2079 = vpop.f32.mrb[0].mxu0
      %2080 = vmatprep.mubr.f32.mxu0 0.0
      %2081 = vmatmul.mubr.f32.gmra.mrb[0].mxu0 %v1955
      %v2082 = vpop.f32.mrb[0].mxu0
      %v2083 = vadd.f32 0.0, %v2082
      %v2084 = vpop.f32.mrb[0].mxu0
      %2085 = vmatprep.mubr.f32.mxu0 0.0
      %2086 = vmatmul.mubr.f32.gmra.mrb[0].mxu0 %v1958
      %v2087 = vpop.f32.mrb[0].mxu0
      %v2088 = vadd.f32 0.0, %v2087
      %v2089 = vpop.f32.mrb[0].mxu0
      %2090 = vmatprep.mubr.f32.mxu0 0.0
      %2091 = vmatmul.mubr.f32.gmra.mrb[0].mxu0 %v1961
      %v2092 = vpop.f32.mrb[0].mxu0
      %v2093 = vadd.f32 0.0, %v2092
      %v2094 = vpop.f32.mrb[0].mxu0
      %2095 = vmatprep.mubr.f32.mxu0 0.0
      %2096 = vmatmul.mubr.f32.gmra.mrb[0].mxu0 %v1964
      %v2097 = vpop.f32.mrb[0].mxu0
      %v2098 = vadd.f32 0.0, %v2097
      %v2099 = vpop.f32.mrb[0].mxu0
      %2100 = vmatprep.mubr.f32.mxu0 0.0
      %2101 = vmatmul.mubr.f32.gmra.mrb[0].mxu0 %v1967
      %v2102 = vpop.f32.mrb[0].mxu0
      %v2103 = vadd.f32 0.0, %v2102
      %v2104 = vpop.f32.mrb[0].mxu0
      %2105 = vmatprep.mubr.f32.mxu0 0.0
      %2106 = vmatmul.mubr.f32.gmra.mrb[0].mxu0 %v1970
      %v2107 = vpop.f32.mrb[0].mxu0
      %v2108 = vadd.f32 0.0, %v2107
      %v2109 = vpop.f32.mrb[0].mxu0
      %2110 = vmatprep.mubr.f32.mxu0 0.0
      %2111 = vmatmul.mubr.f32.gmra.mrb[0].mxu0 %v1973
      %v2112 = vpop.f32.mrb[0].mxu0
      %v2113 = vadd.f32 0.0, %v2112
      %v2114 = vpop.f32.mrb[0].mxu0
      %2115 = vmatprep.mubr.f32.mxu0 0.0
      %2116 = vmatmul.mubr.f32.gmra.mrb[0].mxu0 %v1976
      %v2117 = vpop.f32.mrb[0].mxu0
      %v2118 = vadd.f32 0.0, %v2117
      %v2119 = vpop.f32.mrb[0].mxu0
      %2120 = vmatprep.mubr.f32.mxu0 0.0
      %2121 = vmatmul.mubr.f32.gmra.mrb[0].mxu0 %v1979
      %v2122 = vpop.f32.mrb[0].mxu0
      %v2123 = vadd.f32 0.0, %v2122
      %v2124 = vpop.f32.mrb[0].mxu0
      %2125 = vdwg.mxu0
      %s2126 = scalar_lea.vmem %s5, 32
      %v2127 = vld [vmem:[%s2126] sm:$0xff]
      %v2128 = vld [vmem:[%s2126 + $0x8] sm:$0xf]
      %v2130 = vsel %vm1277, %v2048, 0
      %v2133 = vsel %vm1277, %v2053, 0
      %v2136 = vsel %vm1277, %v2058, 0
      %v2139 = vsel %vm1277, %v2063, 0
      %v2142 = vsel %vm1277, %v2068, 0
      %v2145 = vsel %vm1277, %v2073, 0
      %v2148 = vsel %vm1277, %v2078, 0
      %v2151 = vsel %vm1277, %v2083, 0
      %v2154 = vsel %vm1277, %v2088, 0
      %v2157 = vsel %vm1277, %v2093, 0
      %v2160 = vsel %vm1277, %v2098, 0
      %v2163 = vsel %vm1277, %v2103, 0
      %v2166 = vsel %vm1277, %v2108, 0
      %v2169 = vsel %vm1277, %v2113, 0
      %v2172 = vsel %vm1277, %v2118, 0
      %v2175 = vsel %vm1277, %v2123, 0
      %v2178 = vsel %vm1326, %v2128, 0
      %2180 = vmatprep.subr.mxu0 0.0
      %2181 = vmatpush1.msra.mxu0 %v2127
      %2182 = vmatprep.subr.mxu0 0.0
      %2183 = vmatpush1.msra.mxu0 %v2178
      %2184 = vmatprep.subr.mxu0 0.0
      %2185 = vmatpush1.msra.mxu0 0.0
      %2186 = vmatprep.subr.mxu0 0.0
      %2187 = vmatpush1.msra.mxu0 0.0
      %2188 = vmatprep.subr.mxu0 0.0
      %2189 = vmatpush1.msra.mxu0 0.0
      %2190 = vmatprep.subr.mxu0 0.0
      %2191 = vmatpush1.msra.mxu0 0.0
      %2192 = vmatprep.subr.mxu0 0.0
      %2193 = vmatpush1.msra.mxu0 0.0
      %2194 = vmatprep.subr.mxu0 0.0
      %2195 = vmatpush1.msra.mxu0 0.0
      %2196 = vmatprep.subr.mxu0 0.0
      %2197 = vmatpush1.msra.mxu0 0.0
      %2198 = vmatprep.subr.mxu0 0.0
      %2199 = vmatpush1.msra.mxu0 0.0
      %2200 = vmatprep.subr.mxu0 0.0
      %2201 = vmatpush1.msra.mxu0 0.0
      %2202 = vmatprep.subr.mxu0 0.0
      %2203 = vmatpush1.msra.mxu0 0.0
      %2204 = vmatprep.subr.mxu0 0.0
      %2205 = vmatpush1.msra.mxu0 0.0
      %2206 = vmatprep.subr.mxu0 0.0
      %2207 = vmatpush1.msra.mxu0 0.0
      %2208 = vmatprep.subr.mxu0 0.0
      %2209 = vmatpush1.msra.mxu0 0.0
      %2210 = vmatprep.subr.mxu0 0.0
      %2211 = vmatpush1.msra.mxu0 0.0
      %2212 = vmatprep.subr.mxu0 0.0
      %2213 = vmatpush1.msra.mxu0 0.0
      %2214 = vmatprep.subr.mxu0 0.0
      %2215 = vmatpush1.msra.mxu0 0.0
      %2216 = vmatprep.subr.mxu0 0.0
      %2217 = vmatpush1.msra.mxu0 0.0
      %2218 = vmatprep.subr.mxu0 0.0
      %2219 = vmatpush1.msra.mxu0 0.0
      %2220 = vmatprep.subr.mxu0 0.0
      %2221 = vmatpush1.msra.mxu0 0.0
      %2222 = vmatprep.subr.mxu0 0.0
      %2223 = vmatpush1.msra.mxu0 0.0
      %2224 = vmatprep.subr.mxu0 0.0
      %2225 = vmatpush1.msra.mxu0 0.0
      %2226 = vmatprep.subr.mxu0 0.0
      %2227 = vmatpush1.msra.mxu0 0.0
      %2228 = vmatprep.subr.mxu0 0.0
      %2229 = vmatpush1.msra.mxu0 0.0
      %2230 = vmatprep.subr.mxu0 0.0
      %2231 = vmatpush1.msra.mxu0 0.0
      %2232 = vmatprep.subr.mxu0 0.0
      %2233 = vmatpush1.msra.mxu0 0.0
      %2234 = vmatprep.subr.mxu0 0.0
      %2235 = vmatpush1.msra.mxu0 0.0
      %2236 = vmatprep.subr.mxu0 0.0
      %2237 = vmatpush1.msra.mxu0 0.0
      %2238 = vmatprep.subr.mxu0 0.0
      %2239 = vmatpush1.msra.mxu0 0.0
      %2240 = vmatprep.subr.mxu0 0.0
      %2241 = vmatpush1.msra.mxu0 0.0
      %2242 = vmatprep.subr.mxu0 0.0
      %2243 = vmatpush1.msra.mxu0 0.0
      %2244 = vmatprep.mubr.f32.mxu0 0.0
      %2245 = vmatmul.mubr.f32.gmra.mrb[0].mxu0 %v2130
      %v2246 = vpop.f32.mrb[0].mxu0
      %v2247 = vadd.f32 0.0, %v2246
      %v2248 = vpop.f32.mrb[0].mxu0
      %2249 = vmatprep.mubr.f32.mxu0 0.0
      %2250 = vmatmul.mubr.f32.gmra.mrb[0].mxu0 %v2133
      %v2251 = vpop.f32.mrb[0].mxu0
      %v2252 = vadd.f32 0.0, %v2251
      %v2253 = vpop.f32.mrb[0].mxu0
      %2254 = vmatprep.mubr.f32.mxu0 0.0
      %2255 = vmatmul.mubr.f32.gmra.mrb[0].mxu0 %v2136
      %v2256 = vpop.f32.mrb[0].mxu0
      %v2257 = vadd.f32 0.0, %v2256
      %v2258 = vpop.f32.mrb[0].mxu0
      %2259 = vmatprep.mubr.f32.mxu0 0.0
      %2260 = vmatmul.mubr.f32.gmra.mrb[0].mxu0 %v2139
      %v2261 = vpop.f32.mrb[0].mxu0
      %v2262 = vadd.f32 0.0, %v2261
      %v2263 = vpop.f32.mrb[0].mxu0
      %2264 = vmatprep.mubr.f32.mxu0 0.0
      %2265 = vmatmul.mubr.f32.gmra.mrb[0].mxu0 %v2142
      %v2266 = vpop.f32.mrb[0].mxu0
      %v2267 = vadd.f32 0.0, %v2266
      %v2268 = vpop.f32.mrb[0].mxu0
      %2269 = vmatprep.mubr.f32.mxu0 0.0
      %2270 = vmatmul.mubr.f32.gmra.mrb[0].mxu0 %v2145
      %v2271 = vpop.f32.mrb[0].mxu0
      %v2272 = vadd.f32 0.0, %v2271
      %v2273 = vpop.f32.mrb[0].mxu0
      %2274 = vmatprep.mubr.f32.mxu0 0.0
      %2275 = vmatmul.mubr.f32.gmra.mrb[0].mxu0 %v2148
      %v2276 = vpop.f32.mrb[0].mxu0
      %v2277 = vadd.f32 0.0, %v2276
      %v2278 = vpop.f32.mrb[0].mxu0
      %2279 = vmatprep.mubr.f32.mxu0 0.0
      %2280 = vmatmul.mubr.f32.gmra.mrb[0].mxu0 %v2151
      %v2281 = vpop.f32.mrb[0].mxu0
      %v2282 = vadd.f32 0.0, %v2281
      %v2283 = vpop.f32.mrb[0].mxu0
      %2284 = vmatprep.mubr.f32.mxu0 0.0
      %2285 = vmatmul.mubr.f32.gmra.mrb[0].mxu0 %v2154
      %v2286 = vpop.f32.mrb[0].mxu0
      %v2287 = vadd.f32 0.0, %v2286
      %v2288 = vpop.f32.mrb[0].mxu0
      %2289 = vmatprep.mubr.f32.mxu0 0.0
      %2290 = vmatmul.mubr.f32.gmra.mrb[0].mxu0 %v2157
      %v2291 = vpop.f32.mrb[0].mxu0
      %v2292 = vadd.f32 0.0, %v2291
      %v2293 = vpop.f32.mrb[0].mxu0
      %2294 = vmatprep.mubr.f32.mxu0 0.0
      %2295 = vmatmul.mubr.f32.gmra.mrb[0].mxu0 %v2160
      %v2296 = vpop.f32.mrb[0].mxu0
      %v2297 = vadd.f32 0.0, %v2296
      %v2298 = vpop.f32.mrb[0].mxu0
      %2299 = vmatprep.mubr.f32.mxu0 0.0
      %2300 = vmatmul.mubr.f32.gmra.mrb[0].mxu0 %v2163
      %v2301 = vpop.f32.mrb[0].mxu0
      %v2302 = vadd.f32 0.0, %v2301
      %v2303 = vpop.f32.mrb[0].mxu0
      %2304 = vmatprep.mubr.f32.mxu0 0.0
      %2305 = vmatmul.mubr.f32.gmra.mrb[0].mxu0 %v2166
      %v2306 = vpop.f32.mrb[0].mxu0
      %v2307 = vadd.f32 0.0, %v2306
      %v2308 = vpop.f32.mrb[0].mxu0
      %2309 = vmatprep.mubr.f32.mxu0 0.0
      %2310 = vmatmul.mubr.f32.gmra.mrb[0].mxu0 %v2169
      %v2311 = vpop.f32.mrb[0].mxu0
      %v2312 = vadd.f32 0.0, %v2311
      %v2313 = vpop.f32.mrb[0].mxu0
      %2314 = vmatprep.mubr.f32.mxu0 0.0
      %2315 = vmatmul.mubr.f32.gmra.mrb[0].mxu0 %v2172
      %v2316 = vpop.f32.mrb[0].mxu0
      %v2317 = vadd.f32 0.0, %v2316
      %v2318 = vpop.f32.mrb[0].mxu0
      %2319 = vmatprep.mubr.f32.mxu0 0.0
      %2320 = vmatmul.mubr.f32.gmra.mrb[0].mxu0 %v2175
      %v2321 = vpop.f32.mrb[0].mxu0
      %v2322 = vadd.f32 0.0, %v2321
      %v2323 = vpop.f32.mrb[0].mxu0
      %2324 = vdwg.mxu0
      %v2325 = vadd.f32 %v1900, %v2247
      %v2326 = vadd.f32 %v1901, %v2252
      %v2327 = vadd.f32 %v1902, %v2257
      %v2328 = vadd.f32 %v1903, %v2262
      %v2329 = vadd.f32 %v1904, %v2267
      %v2330 = vadd.f32 %v1905, %v2272
      %v2331 = vadd.f32 %v1906, %v2277
      %v2332 = vadd.f32 %v1907, %v2282
      %v2333 = vadd.f32 %v1908, %v2287
      %v2334 = vadd.f32 %v1909, %v2292
      %v2335 = vadd.f32 %v1910, %v2297
      %v2336 = vadd.f32 %v1911, %v2302
      %v2337 = vadd.f32 %v1912, %v2307
      %v2338 = vadd.f32 %v1913, %v2312
      %v2339 = vadd.f32 %v1914, %v2317
      %v2340 = vadd.f32 %v1915, %v2322
      %s2341 = scalar_lea.vmem %s3, 384
      %v2342 = vld [vmem:[%s2341] sm:$0xff]
      %v2343 = vld [vmem:[%s2341 + $0x8] sm:$0xff]
      %v2344 = vld [vmem:[%s2341 + $0x10] sm:$0xff]
      %v2345 = vld [vmem:[%s2341 + $0x18] sm:$0xff]
      %v2346 = vld [vmem:[%s2341 + $0x20] sm:$0xff]
      %v2347 = vld [vmem:[%s2341 + $0x28] sm:$0xff]
      %v2348 = vld [vmem:[%s2341 + $0x30] sm:$0xff]
      %v2349 = vld [vmem:[%s2341 + $0x38] sm:$0xff]
      %v2350 = vld [vmem:[%s2341 + $0x40] sm:$0xff]
      %v2351 = vld [vmem:[%s2341 + $0x48] sm:$0xff]
      %v2352 = vld [vmem:[%s2341 + $0x50] sm:$0xff]
      %v2353 = vld [vmem:[%s2341 + $0x58] sm:$0xff]
      %v2354 = vld [vmem:[%s2341 + $0x60] sm:$0xff]
      %v2355 = vld [vmem:[%s2341 + $0x68] sm:$0xff]
      %v2356 = vld [vmem:[%s2341 + $0x70] sm:$0xff]
      %v2357 = vld [vmem:[%s2341 + $0x78] sm:$0xff]
      %v2359 = vsel %vm1081, %v2342, 0
      %v2362 = vsel %vm1081, %v2343, 0
      %v2365 = vsel %vm1081, %v2344, 0
      %v2368 = vsel %vm1081, %v2345, 0
      %v2371 = vsel %vm1081, %v2346, 0
      %v2374 = vsel %vm1081, %v2347, 0
      %v2377 = vsel %vm1081, %v2348, 0
      %v2380 = vsel %vm1081, %v2349, 0
      %v2383 = vsel %vm1081, %v2350, 0
      %v2386 = vsel %vm1081, %v2351, 0
      %v2389 = vsel %vm1081, %v2352, 0
      %v2392 = vsel %vm1081, %v2353, 0
      %v2395 = vsel %vm1081, %v2354, 0
      %v2398 = vsel %vm1081, %v2355, 0
      %v2401 = vsel %vm1081, %v2356, 0
      %v2404 = vsel %vm1081, %v2357, 0
      %2406 = vmatprep.subr.mxu0 0.0
      %2407 = vmatpush1.msra.mxu0 %v1040
      %2408 = vmatprep.subr.mxu0 0.0
      %2409 = vmatpush1.msra.mxu0 %v1041
      %2410 = vmatprep.subr.mxu0 0.0
      %2411 = vmatpush1.msra.mxu0 %v1042
      %2412 = vmatprep.subr.mxu0 0.0
      %2413 = vmatpush1.msra.mxu0 %v1043
      %2414 = vmatprep.subr.mxu0 0.0
      %2415 = vmatpush1.msra.mxu0 %v1044
      %2416 = vmatprep.subr.mxu0 0.0
      %2417 = vmatpush1.msra.mxu0 %v1045
      %2418 = vmatprep.subr.mxu0 0.0
      %2419 = vmatpush1.msra.mxu0 %v1046
      %2420 = vmatprep.subr.mxu0 0.0
      %2421 = vmatpush1.msra.mxu0 %v1047
      %2422 = vmatprep.subr.mxu0 0.0
      %2423 = vmatpush1.msra.mxu0 %v1048
      %2424 = vmatprep.subr.mxu0 0.0
      %2425 = vmatpush1.msra.mxu0 0.0
      %2426 = vmatprep.subr.mxu0 0.0
      %2427 = vmatpush1.msra.mxu0 0.0
      %2428 = vmatprep.subr.mxu0 0.0
      %2429 = vmatpush1.msra.mxu0 0.0
      %2430 = vmatprep.subr.mxu0 0.0
      %2431 = vmatpush1.msra.mxu0 0.0
      %2432 = vmatprep.subr.mxu0 0.0
      %2433 = vmatpush1.msra.mxu0 0.0
      %2434 = vmatprep.subr.mxu0 0.0
      %2435 = vmatpush1.msra.mxu0 0.0
      %2436 = vmatprep.subr.mxu0 0.0
      %2437 = vmatpush1.msra.mxu0 0.0
      %2438 = vmatprep.subr.mxu0 0.0
      %2439 = vmatpush1.msra.mxu0 0.0
      %2440 = vmatprep.subr.mxu0 0.0
      %2441 = vmatpush1.msra.mxu0 0.0
      %2442 = vmatprep.subr.mxu0 0.0
      %2443 = vmatpush1.msra.mxu0 0.0
      %2444 = vmatprep.subr.mxu0 0.0
      %2445 = vmatpush1.msra.mxu0 0.0
      %2446 = vmatprep.subr.mxu0 0.0
      %2447 = vmatpush1.msra.mxu0 0.0
      %2448 = vmatprep.subr.mxu0 0.0
      %2449 = vmatpush1.msra.mxu0 0.0
      %2450 = vmatprep.subr.mxu0 0.0
      %2451 = vmatpush1.msra.mxu0 0.0
      %2452 = vmatprep.subr.mxu0 0.0
      %2453 = vmatpush1.msra.mxu0 0.0
      %2454 = vmatprep.subr.mxu0 0.0
      %2455 = vmatpush1.msra.mxu0 0.0
      %2456 = vmatprep.subr.mxu0 0.0
      %2457 = vmatpush1.msra.mxu0 0.0
      %2458 = vmatprep.subr.mxu0 0.0
      %2459 = vmatpush1.msra.mxu0 0.0
      %2460 = vmatprep.subr.mxu0 0.0
      %2461 = vmatpush1.msra.mxu0 0.0
      %2462 = vmatprep.subr.mxu0 0.0
      %2463 = vmatpush1.msra.mxu0 0.0
      %2464 = vmatprep.subr.mxu0 0.0
      %2465 = vmatpush1.msra.mxu0 0.0
      %2466 = vmatprep.subr.mxu0 0.0
      %2467 = vmatpush1.msra.mxu0 0.0
      %2468 = vmatprep.subr.mxu0 0.0
      %2469 = vmatpush1.msra.mxu0 0.0
      %2470 = vmatprep.mubr.f32.mxu0 0.0
      %2471 = vmatmul.mubr.f32.gmra.mrb[0].mxu0 %v2359
      %v2472 = vpop.f32.mrb[0].mxu0
      %v2473 = vadd.f32 0.0, %v2472
      %v2474 = vpop.f32.mrb[0].mxu0
      %2475 = vmatprep.mubr.f32.mxu0 0.0
      %2476 = vmatmul.mubr.f32.gmra.mrb[0].mxu0 %v2362
      %v2477 = vpop.f32.mrb[0].mxu0
      %v2478 = vadd.f32 0.0, %v2477
      %v2479 = vpop.f32.mrb[0].mxu0
      %2480 = vmatprep.mubr.f32.mxu0 0.0
      %2481 = vmatmul.mubr.f32.gmra.mrb[0].mxu0 %v2365
      %v2482 = vpop.f32.mrb[0].mxu0
      %v2483 = vadd.f32 0.0, %v2482
      %v2484 = vpop.f32.mrb[0].mxu0
      %2485 = vmatprep.mubr.f32.mxu0 0.0
      %2486 = vmatmul.mubr.f32.gmra.mrb[0].mxu0 %v2368
      %v2487 = vpop.f32.mrb[0].mxu0
      %v2488 = vadd.f32 0.0, %v2487
      %v2489 = vpop.f32.mrb[0].mxu0
      %2490 = vmatprep.mubr.f32.mxu0 0.0
      %2491 = vmatmul.mubr.f32.gmra.mrb[0].mxu0 %v2371
      %v2492 = vpop.f32.mrb[0].mxu0
      %v2493 = vadd.f32 0.0, %v2492
      %v2494 = vpop.f32.mrb[0].mxu0
      %2495 = vmatprep.mubr.f32.mxu0 0.0
      %2496 = vmatmul.mubr.f32.gmra.mrb[0].mxu0 %v2374
      %v2497 = vpop.f32.mrb[0].mxu0
      %v2498 = vadd.f32 0.0, %v2497
      %v2499 = vpop.f32.mrb[0].mxu0
      %2500 = vmatprep.mubr.f32.mxu0 0.0
      %2501 = vmatmul.mubr.f32.gmra.mrb[0].mxu0 %v2377
      %v2502 = vpop.f32.mrb[0].mxu0
      %v2503 = vadd.f32 0.0, %v2502
      %v2504 = vpop.f32.mrb[0].mxu0
      %2505 = vmatprep.mubr.f32.mxu0 0.0
      %2506 = vmatmul.mubr.f32.gmra.mrb[0].mxu0 %v2380
      %v2507 = vpop.f32.mrb[0].mxu0
      %v2508 = vadd.f32 0.0, %v2507
      %v2509 = vpop.f32.mrb[0].mxu0
      %2510 = vmatprep.mubr.f32.mxu0 0.0
      %2511 = vmatmul.mubr.f32.gmra.mrb[0].mxu0 %v2383
      %v2512 = vpop.f32.mrb[0].mxu0
      %v2513 = vadd.f32 0.0, %v2512
      %v2514 = vpop.f32.mrb[0].mxu0
      %2515 = vmatprep.mubr.f32.mxu0 0.0
      %2516 = vmatmul.mubr.f32.gmra.mrb[0].mxu0 %v2386
      %v2517 = vpop.f32.mrb[0].mxu0
      %v2518 = vadd.f32 0.0, %v2517
      %v2519 = vpop.f32.mrb[0].mxu0
      %2520 = vmatprep.mubr.f32.mxu0 0.0
      %2521 = vmatmul.mubr.f32.gmra.mrb[0].mxu0 %v2389
      %v2522 = vpop.f32.mrb[0].mxu0
      %v2523 = vadd.f32 0.0, %v2522
      %v2524 = vpop.f32.mrb[0].mxu0
      %2525 = vmatprep.mubr.f32.mxu0 0.0
      %2526 = vmatmul.mubr.f32.gmra.mrb[0].mxu0 %v2392
      %v2527 = vpop.f32.mrb[0].mxu0
      %v2528 = vadd.f32 0.0, %v2527
      %v2529 = vpop.f32.mrb[0].mxu0
      %2530 = vmatprep.mubr.f32.mxu0 0.0
      %2531 = vmatmul.mubr.f32.gmra.mrb[0].mxu0 %v2395
      %v2532 = vpop.f32.mrb[0].mxu0
      %v2533 = vadd.f32 0.0, %v2532
      %v2534 = vpop.f32.mrb[0].mxu0
      %2535 = vmatprep.mubr.f32.mxu0 0.0
      %2536 = vmatmul.mubr.f32.gmra.mrb[0].mxu0 %v2398
      %v2537 = vpop.f32.mrb[0].mxu0
      %v2538 = vadd.f32 0.0, %v2537
      %v2539 = vpop.f32.mrb[0].mxu0
      %2540 = vmatprep.mubr.f32.mxu0 0.0
      %2541 = vmatmul.mubr.f32.gmra.mrb[0].mxu0 %v2401
      %v2542 = vpop.f32.mrb[0].mxu0
      %v2543 = vadd.f32 0.0, %v2542
      %v2544 = vpop.f32.mrb[0].mxu0
      %2545 = vmatprep.mubr.f32.mxu0 0.0
      %2546 = vmatmul.mubr.f32.gmra.mrb[0].mxu0 %v2404
      %v2547 = vpop.f32.mrb[0].mxu0
      %v2548 = vadd.f32 0.0, %v2547
      %v2549 = vpop.f32.mrb[0].mxu0
      %2550 = vdwg.mxu0
      %s2551 = scalar_lea.vmem %s5, 48
      %v2552 = vld [vmem:[%s2551] sm:$0xff]
      %v2553 = vld [vmem:[%s2551 + $0x8] sm:$0xf]
      %v2555 = vsel %vm1277, %v2473, 0
      %v2558 = vsel %vm1277, %v2478, 0
      %v2561 = vsel %vm1277, %v2483, 0
      %v2564 = vsel %vm1277, %v2488, 0
      %v2567 = vsel %vm1277, %v2493, 0
      %v2570 = vsel %vm1277, %v2498, 0
      %v2573 = vsel %vm1277, %v2503, 0
      %v2576 = vsel %vm1277, %v2508, 0
      %v2579 = vsel %vm1277, %v2513, 0
      %v2582 = vsel %vm1277, %v2518, 0
      %v2585 = vsel %vm1277, %v2523, 0
      %v2588 = vsel %vm1277, %v2528, 0
      %v2591 = vsel %vm1277, %v2533, 0
      %v2594 = vsel %vm1277, %v2538, 0
      %v2597 = vsel %vm1277, %v2543, 0
      %v2600 = vsel %vm1277, %v2548, 0
      %v2603 = vsel %vm1326, %v2553, 0
      %2605 = vmatprep.subr.mxu0 0.0
      %2606 = vmatpush1.msra.mxu0 %v2552
      %2607 = vmatprep.subr.mxu0 0.0
      %2608 = vmatpush1.msra.mxu0 %v2603
      %2609 = vmatprep.subr.mxu0 0.0
      %2610 = vmatpush1.msra.mxu0 0.0
      %2611 = vmatprep.subr.mxu0 0.0
      %2612 = vmatpush1.msra.mxu0 0.0
      %2613 = vmatprep.subr.mxu0 0.0
      %2614 = vmatpush1.msra.mxu0 0.0
      %2615 = vmatprep.subr.mxu0 0.0
      %2616 = vmatpush1.msra.mxu0 0.0
      %2617 = vmatprep.subr.mxu0 0.0
      %2618 = vmatpush1.msra.mxu0 0.0
      %2619 = vmatprep.subr.mxu0 0.0
      %2620 = vmatpush1.msra.mxu0 0.0
      %2621 = vmatprep.subr.mxu0 0.0
      %2622 = vmatpush1.msra.mxu0 0.0
      %2623 = vmatprep.subr.mxu0 0.0
      %2624 = vmatpush1.msra.mxu0 0.0
      %2625 = vmatprep.subr.mxu0 0.0
      %2626 = vmatpush1.msra.mxu0 0.0
      %2627 = vmatprep.subr.mxu0 0.0
      %2628 = vmatpush1.msra.mxu0 0.0
      %2629 = vmatprep.subr.mxu0 0.0
      %2630 = vmatpush1.msra.mxu0 0.0
      %2631 = vmatprep.subr.mxu0 0.0
      %2632 = vmatpush1.msra.mxu0 0.0
      %2633 = vmatprep.subr.mxu0 0.0
      %2634 = vmatpush1.msra.mxu0 0.0
      %2635 = vmatprep.subr.mxu0 0.0
      %2636 = vmatpush1.msra.mxu0 0.0
      %2637 = vmatprep.subr.mxu0 0.0
      %2638 = vmatpush1.msra.mxu0 0.0
      %2639 = vmatprep.subr.mxu0 0.0
      %2640 = vmatpush1.msra.mxu0 0.0
      %2641 = vmatprep.subr.mxu0 0.0
      %2642 = vmatpush1.msra.mxu0 0.0
      %2643 = vmatprep.subr.mxu0 0.0
      %2644 = vmatpush1.msra.mxu0 0.0
      %2645 = vmatprep.subr.mxu0 0.0
      %2646 = vmatpush1.msra.mxu0 0.0
      %2647 = vmatprep.subr.mxu0 0.0
      %2648 = vmatpush1.msra.mxu0 0.0
      %2649 = vmatprep.subr.mxu0 0.0
      %2650 = vmatpush1.msra.mxu0 0.0
      %2651 = vmatprep.subr.mxu0 0.0
      %2652 = vmatpush1.msra.mxu0 0.0
      %2653 = vmatprep.subr.mxu0 0.0
      %2654 = vmatpush1.msra.mxu0 0.0
      %2655 = vmatprep.subr.mxu0 0.0
      %2656 = vmatpush1.msra.mxu0 0.0
      %2657 = vmatprep.subr.mxu0 0.0
      %2658 = vmatpush1.msra.mxu0 0.0
      %2659 = vmatprep.subr.mxu0 0.0
      %2660 = vmatpush1.msra.mxu0 0.0
      %2661 = vmatprep.subr.mxu0 0.0
      %2662 = vmatpush1.msra.mxu0 0.0
      %2663 = vmatprep.subr.mxu0 0.0
      %2664 = vmatpush1.msra.mxu0 0.0
      %2665 = vmatprep.subr.mxu0 0.0
      %2666 = vmatpush1.msra.mxu0 0.0
      %2667 = vmatprep.subr.mxu0 0.0
      %2668 = vmatpush1.msra.mxu0 0.0
      %2669 = vmatprep.mubr.f32.mxu0 0.0
      %2670 = vmatmul.mubr.f32.gmra.mrb[0].mxu0 %v2555
      %v2671 = vpop.f32.mrb[0].mxu0
      %v2672 = vadd.f32 0.0, %v2671
      %v2673 = vpop.f32.mrb[0].mxu0
      %2674 = vmatprep.mubr.f32.mxu0 0.0
      %2675 = vmatmul.mubr.f32.gmra.mrb[0].mxu0 %v2558
      %v2676 = vpop.f32.mrb[0].mxu0
      %v2677 = vadd.f32 0.0, %v2676
      %v2678 = vpop.f32.mrb[0].mxu0
      %2679 = vmatprep.mubr.f32.mxu0 0.0
      %2680 = vmatmul.mubr.f32.gmra.mrb[0].mxu0 %v2561
      %v2681 = vpop.f32.mrb[0].mxu0
      %v2682 = vadd.f32 0.0, %v2681
      %v2683 = vpop.f32.mrb[0].mxu0
      %2684 = vmatprep.mubr.f32.mxu0 0.0
      %2685 = vmatmul.mubr.f32.gmra.mrb[0].mxu0 %v2564
      %v2686 = vpop.f32.mrb[0].mxu0
      %v2687 = vadd.f32 0.0, %v2686
      %v2688 = vpop.f32.mrb[0].mxu0
      %2689 = vmatprep.mubr.f32.mxu0 0.0
      %2690 = vmatmul.mubr.f32.gmra.mrb[0].mxu0 %v2567
      %v2691 = vpop.f32.mrb[0].mxu0
      %v2692 = vadd.f32 0.0, %v2691
      %v2693 = vpop.f32.mrb[0].mxu0
      %2694 = vmatprep.mubr.f32.mxu0 0.0
      %2695 = vmatmul.mubr.f32.gmra.mrb[0].mxu0 %v2570
      %v2696 = vpop.f32.mrb[0].mxu0
      %v2697 = vadd.f32 0.0, %v2696
      %v2698 = vpop.f32.mrb[0].mxu0
      %2699 = vmatprep.mubr.f32.mxu0 0.0
      %2700 = vmatmul.mubr.f32.gmra.mrb[0].mxu0 %v2573
      %v2701 = vpop.f32.mrb[0].mxu0
      %v2702 = vadd.f32 0.0, %v2701
      %v2703 = vpop.f32.mrb[0].mxu0
      %2704 = vmatprep.mubr.f32.mxu0 0.0
      %2705 = vmatmul.mubr.f32.gmra.mrb[0].mxu0 %v2576
      %v2706 = vpop.f32.mrb[0].mxu0
      %v2707 = vadd.f32 0.0, %v2706
      %v2708 = vpop.f32.mrb[0].mxu0
      %2709 = vmatprep.mubr.f32.mxu0 0.0
      %2710 = vmatmul.mubr.f32.gmra.mrb[0].mxu0 %v2579
      %v2711 = vpop.f32.mrb[0].mxu0
      %v2712 = vadd.f32 0.0, %v2711
      %v2713 = vpop.f32.mrb[0].mxu0
      %2714 = vmatprep.mubr.f32.mxu0 0.0
      %2715 = vmatmul.mubr.f32.gmra.mrb[0].mxu0 %v2582
      %v2716 = vpop.f32.mrb[0].mxu0
      %v2717 = vadd.f32 0.0, %v2716
      %v2718 = vpop.f32.mrb[0].mxu0
      %2719 = vmatprep.mubr.f32.mxu0 0.0
      %2720 = vmatmul.mubr.f32.gmra.mrb[0].mxu0 %v2585
      %v2721 = vpop.f32.mrb[0].mxu0
      %v2722 = vadd.f32 0.0, %v2721
      %v2723 = vpop.f32.mrb[0].mxu0
      %2724 = vmatprep.mubr.f32.mxu0 0.0
      %2725 = vmatmul.mubr.f32.gmra.mrb[0].mxu0 %v2588
      %v2726 = vpop.f32.mrb[0].mxu0
      %v2727 = vadd.f32 0.0, %v2726
      %v2728 = vpop.f32.mrb[0].mxu0
      %2729 = vmatprep.mubr.f32.mxu0 0.0
      %2730 = vmatmul.mubr.f32.gmra.mrb[0].mxu0 %v2591
      %v2731 = vpop.f32.mrb[0].mxu0
      %v2732 = vadd.f32 0.0, %v2731
      %v2733 = vpop.f32.mrb[0].mxu0
      %2734 = vmatprep.mubr.f32.mxu0 0.0
      %2735 = vmatmul.mubr.f32.gmra.mrb[0].mxu0 %v2594
      %v2736 = vpop.f32.mrb[0].mxu0
      %v2737 = vadd.f32 0.0, %v2736
      %v2738 = vpop.f32.mrb[0].mxu0
      %2739 = vmatprep.mubr.f32.mxu0 0.0
      %2740 = vmatmul.mubr.f32.gmra.mrb[0].mxu0 %v2597
      %v2741 = vpop.f32.mrb[0].mxu0
      %v2742 = vadd.f32 0.0, %v2741
      %v2743 = vpop.f32.mrb[0].mxu0
      %2744 = vmatprep.mubr.f32.mxu0 0.0
      %2745 = vmatmul.mubr.f32.gmra.mrb[0].mxu0 %v2600
      %v2746 = vpop.f32.mrb[0].mxu0
      %v2747 = vadd.f32 0.0, %v2746
      %v2748 = vpop.f32.mrb[0].mxu0
      %2749 = vdwg.mxu0
      %v2750 = vadd.f32 %v2325, %v2672
      %v2751 = vadd.f32 %v2326, %v2677
      %v2752 = vadd.f32 %v2327, %v2682
      %v2753 = vadd.f32 %v2328, %v2687
      %v2754 = vadd.f32 %v2329, %v2692
      %v2755 = vadd.f32 %v2330, %v2697
      %v2756 = vadd.f32 %v2331, %v2702
      %v2757 = vadd.f32 %v2332, %v2707
      %v2758 = vadd.f32 %v2333, %v2712
      %v2759 = vadd.f32 %v2334, %v2717
      %v2760 = vadd.f32 %v2335, %v2722
      %v2761 = vadd.f32 %v2336, %v2727
      %v2762 = vadd.f32 %v2337, %v2732
      %v2763 = vadd.f32 %v2338, %v2737
      %v2764 = vadd.f32 %v2339, %v2742
      %v2765 = vadd.f32 %v2340, %v2747
      %s2766 = scalar_lea.vmem %s3, 512
      %v2767 = vld [vmem:[%s2766] sm:$0xff]
      %v2768 = vld [vmem:[%s2766 + $0x8] sm:$0xff]
      %v2769 = vld [vmem:[%s2766 + $0x10] sm:$0xff]
      %v2770 = vld [vmem:[%s2766 + $0x18] sm:$0xff]
      %v2771 = vld [vmem:[%s2766 + $0x20] sm:$0xff]
      %v2772 = vld [vmem:[%s2766 + $0x28] sm:$0xff]
      %v2773 = vld [vmem:[%s2766 + $0x30] sm:$0xff]
      %v2774 = vld [vmem:[%s2766 + $0x38] sm:$0xff]
      %v2775 = vld [vmem:[%s2766 + $0x40] sm:$0xff]
      %v2776 = vld [vmem:[%s2766 + $0x48] sm:$0xff]
      %v2777 = vld [vmem:[%s2766 + $0x50] sm:$0xff]
      %v2778 = vld [vmem:[%s2766 + $0x58] sm:$0xff]
      %v2779 = vld [vmem:[%s2766 + $0x60] sm:$0xff]
      %v2780 = vld [vmem:[%s2766 + $0x68] sm:$0xff]
      %v2781 = vld [vmem:[%s2766 + $0x70] sm:$0xff]
      %v2782 = vld [vmem:[%s2766 + $0x78] sm:$0xff]
      %v2784 = vsel %vm1081, %v2767, 0
      %v2787 = vsel %vm1081, %v2768, 0
      %v2790 = vsel %vm1081, %v2769, 0
      %v2793 = vsel %vm1081, %v2770, 0
      %v2796 = vsel %vm1081, %v2771, 0
      %v2799 = vsel %vm1081, %v2772, 0
      %v2802 = vsel %vm1081, %v2773, 0
      %v2805 = vsel %vm1081, %v2774, 0
      %v2808 = vsel %vm1081, %v2775, 0
      %v2811 = vsel %vm1081, %v2776, 0
      %v2814 = vsel %vm1081, %v2777, 0
      %v2817 = vsel %vm1081, %v2778, 0
      %v2820 = vsel %vm1081, %v2779, 0
      %v2823 = vsel %vm1081, %v2780, 0
      %v2826 = vsel %vm1081, %v2781, 0
      %v2829 = vsel %vm1081, %v2782, 0
      %2831 = vmatprep.subr.mxu0 0.0
      %2832 = vmatpush1.msra.mxu0 %v1040
      %2833 = vmatprep.subr.mxu0 0.0
      %2834 = vmatpush1.msra.mxu0 %v1041
      %2835 = vmatprep.subr.mxu0 0.0
      %2836 = vmatpush1.msra.mxu0 %v1042
      %2837 = vmatprep.subr.mxu0 0.0
      %2838 = vmatpush1.msra.mxu0 %v1043
      %2839 = vmatprep.subr.mxu0 0.0
      %2840 = vmatpush1.msra.mxu0 %v1044
      %2841 = vmatprep.subr.mxu0 0.0
      %2842 = vmatpush1.msra.mxu0 %v1045
      %2843 = vmatprep.subr.mxu0 0.0
      %2844 = vmatpush1.msra.mxu0 %v1046
      %2845 = vmatprep.subr.mxu0 0.0
      %2846 = vmatpush1.msra.mxu0 %v1047
      %2847 = vmatprep.subr.mxu0 0.0
      %2848 = vmatpush1.msra.mxu0 %v1048
      %2849 = vmatprep.subr.mxu0 0.0
      %2850 = vmatpush1.msra.mxu0 0.0
      %2851 = vmatprep.subr.mxu0 0.0
      %2852 = vmatpush1.msra.mxu0 0.0
      %2853 = vmatprep.subr.mxu0 0.0
      %2854 = vmatpush1.msra.mxu0 0.0
      %2855 = vmatprep.subr.mxu0 0.0
      %2856 = vmatpush1.msra.mxu0 0.0
      %2857 = vmatprep.subr.mxu0 0.0
      %2858 = vmatpush1.msra.mxu0 0.0
      %2859 = vmatprep.subr.mxu0 0.0
      %2860 = vmatpush1.msra.mxu0 0.0
      %2861 = vmatprep.subr.mxu0 0.0
      %2862 = vmatpush1.msra.mxu0 0.0
      %2863 = vmatprep.subr.mxu0 0.0
      %2864 = vmatpush1.msra.mxu0 0.0
      %2865 = vmatprep.subr.mxu0 0.0
      %2866 = vmatpush1.msra.mxu0 0.0
      %2867 = vmatprep.subr.mxu0 0.0
      %2868 = vmatpush1.msra.mxu0 0.0
      %2869 = vmatprep.subr.mxu0 0.0
      %2870 = vmatpush1.msra.mxu0 0.0
      %2871 = vmatprep.subr.mxu0 0.0
      %2872 = vmatpush1.msra.mxu0 0.0
      %2873 = vmatprep.subr.mxu0 0.0
      %2874 = vmatpush1.msra.mxu0 0.0
      %2875 = vmatprep.subr.mxu0 0.0
      %2876 = vmatpush1.msra.mxu0 0.0
      %2877 = vmatprep.subr.mxu0 0.0
      %2878 = vmatpush1.msra.mxu0 0.0
      %2879 = vmatprep.subr.mxu0 0.0
      %2880 = vmatpush1.msra.mxu0 0.0
      %2881 = vmatprep.subr.mxu0 0.0
      %2882 = vmatpush1.msra.mxu0 0.0
      %2883 = vmatprep.subr.mxu0 0.0
      %2884 = vmatpush1.msra.mxu0 0.0
      %2885 = vmatprep.subr.mxu0 0.0
      %2886 = vmatpush1.msra.mxu0 0.0
      %2887 = vmatprep.subr.mxu0 0.0
      %2888 = vmatpush1.msra.mxu0 0.0
      %2889 = vmatprep.subr.mxu0 0.0
      %2890 = vmatpush1.msra.mxu0 0.0
      %2891 = vmatprep.subr.mxu0 0.0
      %2892 = vmatpush1.msra.mxu0 0.0
      %2893 = vmatprep.subr.mxu0 0.0
      %2894 = vmatpush1.msra.mxu0 0.0
      %2895 = vmatprep.mubr.f32.mxu0 0.0
      %2896 = vmatmul.mubr.f32.gmra.mrb[0].mxu0 %v2784
      %v2897 = vpop.f32.mrb[0].mxu0
      %v2898 = vadd.f32 0.0, %v2897
      %v2899 = vpop.f32.mrb[0].mxu0
      %2900 = vmatprep.mubr.f32.mxu0 0.0
      %2901 = vmatmul.mubr.f32.gmra.mrb[0].mxu0 %v2787
      %v2902 = vpop.f32.mrb[0].mxu0
      %v2903 = vadd.f32 0.0, %v2902
      %v2904 = vpop.f32.mrb[0].mxu0
      %2905 = vmatprep.mubr.f32.mxu0 0.0
      %2906 = vmatmul.mubr.f32.gmra.mrb[0].mxu0 %v2790
      %v2907 = vpop.f32.mrb[0].mxu0
      %v2908 = vadd.f32 0.0, %v2907
      %v2909 = vpop.f32.mrb[0].mxu0
      %2910 = vmatprep.mubr.f32.mxu0 0.0
      %2911 = vmatmul.mubr.f32.gmra.mrb[0].mxu0 %v2793
      %v2912 = vpop.f32.mrb[0].mxu0
      %v2913 = vadd.f32 0.0, %v2912
      %v2914 = vpop.f32.mrb[0].mxu0
      %2915 = vmatprep.mubr.f32.mxu0 0.0
      %2916 = vmatmul.mubr.f32.gmra.mrb[0].mxu0 %v2796
      %v2917 = vpop.f32.mrb[0].mxu0
      %v2918 = vadd.f32 0.0, %v2917
      %v2919 = vpop.f32.mrb[0].mxu0
      %2920 = vmatprep.mubr.f32.mxu0 0.0
      %2921 = vmatmul.mubr.f32.gmra.mrb[0].mxu0 %v2799
      %v2922 = vpop.f32.mrb[0].mxu0
      %v2923 = vadd.f32 0.0, %v2922
      %v2924 = vpop.f32.mrb[0].mxu0
      %2925 = vmatprep.mubr.f32.mxu0 0.0
      %2926 = vmatmul.mubr.f32.gmra.mrb[0].mxu0 %v2802
      %v2927 = vpop.f32.mrb[0].mxu0
      %v2928 = vadd.f32 0.0, %v2927
      %v2929 = vpop.f32.mrb[0].mxu0
      %2930 = vmatprep.mubr.f32.mxu0 0.0
      %2931 = vmatmul.mubr.f32.gmra.mrb[0].mxu0 %v2805
      %v2932 = vpop.f32.mrb[0].mxu0
      %v2933 = vadd.f32 0.0, %v2932
      %v2934 = vpop.f32.mrb[0].mxu0
      %2935 = vmatprep.mubr.f32.mxu0 0.0
      %2936 = vmatmul.mubr.f32.gmra.mrb[0].mxu0 %v2808
      %v2937 = vpop.f32.mrb[0].mxu0
      %v2938 = vadd.f32 0.0, %v2937
      %v2939 = vpop.f32.mrb[0].mxu0
      %2940 = vmatprep.mubr.f32.mxu0 0.0
      %2941 = vmatmul.mubr.f32.gmra.mrb[0].mxu0 %v2811
      %v2942 = vpop.f32.mrb[0].mxu0
      %v2943 = vadd.f32 0.0, %v2942
      %v2944 = vpop.f32.mrb[0].mxu0
      %2945 = vmatprep.mubr.f32.mxu0 0.0
      %2946 = vmatmul.mubr.f32.gmra.mrb[0].mxu0 %v2814
      %v2947 = vpop.f32.mrb[0].mxu0
      %v2948 = vadd.f32 0.0, %v2947
      %v2949 = vpop.f32.mrb[0].mxu0
      %2950 = vmatprep.mubr.f32.mxu0 0.0
      %2951 = vmatmul.mubr.f32.gmra.mrb[0].mxu0 %v2817
      %v2952 = vpop.f32.mrb[0].mxu0
      %v2953 = vadd.f32 0.0, %v2952
      %v2954 = vpop.f32.mrb[0].mxu0
      %2955 = vmatprep.mubr.f32.mxu0 0.0
      %2956 = vmatmul.mubr.f32.gmra.mrb[0].mxu0 %v2820
      %v2957 = vpop.f32.mrb[0].mxu0
      %v2958 = vadd.f32 0.0, %v2957
      %v2959 = vpop.f32.mrb[0].mxu0
      %2960 = vmatprep.mubr.f32.mxu0 0.0
      %2961 = vmatmul.mubr.f32.gmra.mrb[0].mxu0 %v2823
      %v2962 = vpop.f32.mrb[0].mxu0
      %v2963 = vadd.f32 0.0, %v2962
      %v2964 = vpop.f32.mrb[0].mxu0
      %2965 = vmatprep.mubr.f32.mxu0 0.0
      %2966 = vmatmul.mubr.f32.gmra.mrb[0].mxu0 %v2826
      %v2967 = vpop.f32.mrb[0].mxu0
      %v2968 = vadd.f32 0.0, %v2967
      %v2969 = vpop.f32.mrb[0].mxu0
      %2970 = vmatprep.mubr.f32.mxu0 0.0
      %2971 = vmatmul.mubr.f32.gmra.mrb[0].mxu0 %v2829
      %v2972 = vpop.f32.mrb[0].mxu0
      %v2973 = vadd.f32 0.0, %v2972
      %v2974 = vpop.f32.mrb[0].mxu0
      %2975 = vdwg.mxu0
      %s2976 = scalar_lea.vmem %s5, 64
      %v2977 = vld [vmem:[%s2976] sm:$0xff]
      %v2978 = vld [vmem:[%s2976 + $0x8] sm:$0xf]
      %v2980 = vsel %vm1277, %v2898, 0
      %v2983 = vsel %vm1277, %v2903, 0
      %v2986 = vsel %vm1277, %v2908, 0
      %v2989 = vsel %vm1277, %v2913, 0
      %v2992 = vsel %vm1277, %v2918, 0
      %v2995 = vsel %vm1277, %v2923, 0
      %v2998 = vsel %vm1277, %v2928, 0
      %v3001 = vsel %vm1277, %v2933, 0
      %v3004 = vsel %vm1277, %v2938, 0
      %v3007 = vsel %vm1277, %v2943, 0
      %v3010 = vsel %vm1277, %v2948, 0
      %v3013 = vsel %vm1277, %v2953, 0
      %v3016 = vsel %vm1277, %v2958, 0
      %v3019 = vsel %vm1277, %v2963, 0
      %v3022 = vsel %vm1277, %v2968, 0
      %v3025 = vsel %vm1277, %v2973, 0
      %v3028 = vsel %vm1326, %v2978, 0
      %3030 = vmatprep.subr.mxu0 0.0
      %3031 = vmatpush1.msra.mxu0 %v2977
      %3032 = vmatprep.subr.mxu0 0.0
      %3033 = vmatpush1.msra.mxu0 %v3028
      %3034 = vmatprep.subr.mxu0 0.0
      %3035 = vmatpush1.msra.mxu0 0.0
      %3036 = vmatprep.subr.mxu0 0.0
      %3037 = vmatpush1.msra.mxu0 0.0
      %3038 = vmatprep.subr.mxu0 0.0
      %3039 = vmatpush1.msra.mxu0 0.0
      %3040 = vmatprep.subr.mxu0 0.0
      %3041 = vmatpush1.msra.mxu0 0.0
      %3042 = vmatprep.subr.mxu0 0.0
      %3043 = vmatpush1.msra.mxu0 0.0
      %3044 = vmatprep.subr.mxu0 0.0
      %3045 = vmatpush1.msra.mxu0 0.0
      %3046 = vmatprep.subr.mxu0 0.0
      %3047 = vmatpush1.msra.mxu0 0.0
      %3048 = vmatprep.subr.mxu0 0.0
      %3049 = vmatpush1.msra.mxu0 0.0
      %3050 = vmatprep.subr.mxu0 0.0
      %3051 = vmatpush1.msra.mxu0 0.0
      %3052 = vmatprep.subr.mxu0 0.0
      %3053 = vmatpush1.msra.mxu0 0.0
      %3054 = vmatprep.subr.mxu0 0.0
      %3055 = vmatpush1.msra.mxu0 0.0
      %3056 = vmatprep.subr.mxu0 0.0
      %3057 = vmatpush1.msra.mxu0 0.0
      %3058 = vmatprep.subr.mxu0 0.0
      %3059 = vmatpush1.msra.mxu0 0.0
      %3060 = vmatprep.subr.mxu0 0.0
      %3061 = vmatpush1.msra.mxu0 0.0
      %3062 = vmatprep.subr.mxu0 0.0
      %3063 = vmatpush1.msra.mxu0 0.0
      %3064 = vmatprep.subr.mxu0 0.0
      %3065 = vmatpush1.msra.mxu0 0.0
      %3066 = vmatprep.subr.mxu0 0.0
      %3067 = vmatpush1.msra.mxu0 0.0
      %3068 = vmatprep.subr.mxu0 0.0
      %3069 = vmatpush1.msra.mxu0 0.0
      %3070 = vmatprep.subr.mxu0 0.0
      %3071 = vmatpush1.msra.mxu0 0.0
      %3072 = vmatprep.subr.mxu0 0.0
      %3073 = vmatpush1.msra.mxu0 0.0
      %3074 = vmatprep.subr.mxu0 0.0
      %3075 = vmatpush1.msra.mxu0 0.0
      %3076 = vmatprep.subr.mxu0 0.0
      %3077 = vmatpush1.msra.mxu0 0.0
      %3078 = vmatprep.subr.mxu0 0.0
      %3079 = vmatpush1.msra.mxu0 0.0
      %3080 = vmatprep.subr.mxu0 0.0
      %3081 = vmatpush1.msra.mxu0 0.0
      %3082 = vmatprep.subr.mxu0 0.0
      %3083 = vmatpush1.msra.mxu0 0.0
      %3084 = vmatprep.subr.mxu0 0.0
      %3085 = vmatpush1.msra.mxu0 0.0
      %3086 = vmatprep.subr.mxu0 0.0
      %3087 = vmatpush1.msra.mxu0 0.0
      %3088 = vmatprep.subr.mxu0 0.0
      %3089 = vmatpush1.msra.mxu0 0.0
      %3090 = vmatprep.subr.mxu0 0.0
      %3091 = vmatpush1.msra.mxu0 0.0
      %3092 = vmatprep.subr.mxu0 0.0
      %3093 = vmatpush1.msra.mxu0 0.0
      %3094 = vmatprep.mubr.f32.mxu0 0.0
      %3095 = vmatmul.mubr.f32.gmra.mrb[0].mxu0 %v2980
      %v3096 = vpop.f32.mrb[0].mxu0
      %v3097 = vadd.f32 0.0, %v3096
      %v3098 = vpop.f32.mrb[0].mxu0
      %3099 = vmatprep.mubr.f32.mxu0 0.0
      %3100 = vmatmul.mubr.f32.gmra.mrb[0].mxu0 %v2983
      %v3101 = vpop.f32.mrb[0].mxu0
      %v3102 = vadd.f32 0.0, %v3101
      %v3103 = vpop.f32.mrb[0].mxu0
      %3104 = vmatprep.mubr.f32.mxu0 0.0
      %3105 = vmatmul.mubr.f32.gmra.mrb[0].mxu0 %v2986
      %v3106 = vpop.f32.mrb[0].mxu0
      %v3107 = vadd.f32 0.0, %v3106
      %v3108 = vpop.f32.mrb[0].mxu0
      %3109 = vmatprep.mubr.f32.mxu0 0.0
      %3110 = vmatmul.mubr.f32.gmra.mrb[0].mxu0 %v2989
      %v3111 = vpop.f32.mrb[0].mxu0
      %v3112 = vadd.f32 0.0, %v3111
      %v3113 = vpop.f32.mrb[0].mxu0
      %3114 = vmatprep.mubr.f32.mxu0 0.0
      %3115 = vmatmul.mubr.f32.gmra.mrb[0].mxu0 %v2992
      %v3116 = vpop.f32.mrb[0].mxu0
      %v3117 = vadd.f32 0.0, %v3116
      %v3118 = vpop.f32.mrb[0].mxu0
      %3119 = vmatprep.mubr.f32.mxu0 0.0
      %3120 = vmatmul.mubr.f32.gmra.mrb[0].mxu0 %v2995
      %v3121 = vpop.f32.mrb[0].mxu0
      %v3122 = vadd.f32 0.0, %v3121
      %v3123 = vpop.f32.mrb[0].mxu0
      %3124 = vmatprep.mubr.f32.mxu0 0.0
      %3125 = vmatmul.mubr.f32.gmra.mrb[0].mxu0 %v2998
      %v3126 = vpop.f32.mrb[0].mxu0
      %v3127 = vadd.f32 0.0, %v3126
      %v3128 = vpop.f32.mrb[0].mxu0
      %3129 = vmatprep.mubr.f32.mxu0 0.0
      %3130 = vmatmul.mubr.f32.gmra.mrb[0].mxu0 %v3001
      %v3131 = vpop.f32.mrb[0].mxu0
      %v3132 = vadd.f32 0.0, %v3131
      %v3133 = vpop.f32.mrb[0].mxu0
      %3134 = vmatprep.mubr.f32.mxu0 0.0
      %3135 = vmatmul.mubr.f32.gmra.mrb[0].mxu0 %v3004
      %v3136 = vpop.f32.mrb[0].mxu0
      %v3137 = vadd.f32 0.0, %v3136
      %v3138 = vpop.f32.mrb[0].mxu0
      %3139 = vmatprep.mubr.f32.mxu0 0.0
      %3140 = vmatmul.mubr.f32.gmra.mrb[0].mxu0 %v3007
      %v3141 = vpop.f32.mrb[0].mxu0
      %v3142 = vadd.f32 0.0, %v3141
      %v3143 = vpop.f32.mrb[0].mxu0
      %3144 = vmatprep.mubr.f32.mxu0 0.0
      %3145 = vmatmul.mubr.f32.gmra.mrb[0].mxu0 %v3010
      %v3146 = vpop.f32.mrb[0].mxu0
      %v3147 = vadd.f32 0.0, %v3146
      %v3148 = vpop.f32.mrb[0].mxu0
      %3149 = vmatprep.mubr.f32.mxu0 0.0
      %3150 = vmatmul.mubr.f32.gmra.mrb[0].mxu0 %v3013
      %v3151 = vpop.f32.mrb[0].mxu0
      %v3152 = vadd.f32 0.0, %v3151
      %v3153 = vpop.f32.mrb[0].mxu0
      %3154 = vmatprep.mubr.f32.mxu0 0.0
      %3155 = vmatmul.mubr.f32.gmra.mrb[0].mxu0 %v3016
      %v3156 = vpop.f32.mrb[0].mxu0
      %v3157 = vadd.f32 0.0, %v3156
      %v3158 = vpop.f32.mrb[0].mxu0
      %3159 = vmatprep.mubr.f32.mxu0 0.0
      %3160 = vmatmul.mubr.f32.gmra.mrb[0].mxu0 %v3019
      %v3161 = vpop.f32.mrb[0].mxu0
      %v3162 = vadd.f32 0.0, %v3161
      %v3163 = vpop.f32.mrb[0].mxu0
      %3164 = vmatprep.mubr.f32.mxu0 0.0
      %3165 = vmatmul.mubr.f32.gmra.mrb[0].mxu0 %v3022
      %v3166 = vpop.f32.mrb[0].mxu0
      %v3167 = vadd.f32 0.0, %v3166
      %v3168 = vpop.f32.mrb[0].mxu0
      %3169 = vmatprep.mubr.f32.mxu0 0.0
      %3170 = vmatmul.mubr.f32.gmra.mrb[0].mxu0 %v3025
      %v3171 = vpop.f32.mrb[0].mxu0
      %v3172 = vadd.f32 0.0, %v3171
      %v3173 = vpop.f32.mrb[0].mxu0
      %3174 = vdwg.mxu0
      %v3175 = vadd.f32 %v2750, %v3097
      %v3176 = vadd.f32 %v2751, %v3102
      %v3177 = vadd.f32 %v2752, %v3107
      %v3178 = vadd.f32 %v2753, %v3112
      %v3179 = vadd.f32 %v2754, %v3117
      %v3180 = vadd.f32 %v2755, %v3122
      %v3181 = vadd.f32 %v2756, %v3127
      %v3182 = vadd.f32 %v2757, %v3132
      %v3183 = vadd.f32 %v2758, %v3137
      %v3184 = vadd.f32 %v2759, %v3142
      %v3185 = vadd.f32 %v2760, %v3147
      %v3186 = vadd.f32 %v2761, %v3152
      %v3187 = vadd.f32 %v2762, %v3157
      %v3188 = vadd.f32 %v2763, %v3162
      %v3189 = vadd.f32 %v2764, %v3167
      %v3190 = vadd.f32 %v2765, %v3172
      %v3191 = vmax.f32 %v3175, 0.0
      %v3192 = vmax.f32 %v3176, 0.0
      %v3193 = vmax.f32 %v3177, 0.0
      %v3194 = vmax.f32 %v3178, 0.0
      %v3195 = vmax.f32 %v3179, 0.0
      %v3196 = vmax.f32 %v3180, 0.0
      %v3197 = vmax.f32 %v3181, 0.0
      %v3198 = vmax.f32 %v3182, 0.0
      %v3199 = vmax.f32 %v3183, 0.0
      %v3200 = vmax.f32 %v3184, 0.0
      %v3201 = vmax.f32 %v3185, 0.0
      %v3202 = vmax.f32 %v3186, 0.0
      %v3203 = vmax.f32 %v3187, 0.0
      %v3204 = vmax.f32 %v3188, 0.0
      %v3205 = vmax.f32 %v3189, 0.0
      %v3206 = vmax.f32 %v3190, 0.0
      %v3207 = vld [vmem:[%s6] sm:$0xff]
      %v3208 = vld [vmem:[%s6 + $0x8] sm:$0xff]
      %v3209 = vld [vmem:[%s6 + $0x10] sm:$0xff]
      %v3210 = vld [vmem:[%s6 + $0x18] sm:$0xff]
      %v3211 = vld [vmem:[%s6 + $0x20] sm:$0xff]
      %v3212 = vld [vmem:[%s6 + $0x28] sm:$0xff]
      %v3213 = vld [vmem:[%s6 + $0x30] sm:$0xff]
      %v3214 = vld [vmem:[%s6 + $0x38] sm:$0xff]
      %3215 = vmatprep.subr.mxu0 0.0
      %3216 = vmatpush1.msra.mxu0 %v3191
      %3217 = vmatprep.subr.mxu0 0.0
      %3218 = vmatpush1.msra.mxu0 %v3192
      %3219 = vmatprep.subr.mxu0 0.0
      %3220 = vmatpush1.msra.mxu0 %v3193
      %3221 = vmatprep.subr.mxu0 0.0
      %3222 = vmatpush1.msra.mxu0 %v3194
      %3223 = vmatprep.subr.mxu0 0.0
      %3224 = vmatpush1.msra.mxu0 %v3195
      %3225 = vmatprep.subr.mxu0 0.0
      %3226 = vmatpush1.msra.mxu0 %v3196
      %3227 = vmatprep.subr.mxu0 0.0
      %3228 = vmatpush1.msra.mxu0 %v3197
      %3229 = vmatprep.subr.mxu0 0.0
      %3230 = vmatpush1.msra.mxu0 %v3198
      %3231 = vmatprep.subr.mxu0 0.0
      %3232 = vmatpush1.msra.mxu0 %v3199
      %3233 = vmatprep.subr.mxu0 0.0
      %3234 = vmatpush1.msra.mxu0 %v3200
      %3235 = vmatprep.subr.mxu0 0.0
      %3236 = vmatpush1.msra.mxu0 %v3201
      %3237 = vmatprep.subr.mxu0 0.0
      %3238 = vmatpush1.msra.mxu0 %v3202
      %3239 = vmatprep.subr.mxu0 0.0
      %3240 = vmatpush1.msra.mxu0 %v3203
      %3241 = vmatprep.subr.mxu0 0.0
      %3242 = vmatpush1.msra.mxu0 %v3204
      %3243 = vmatprep.subr.mxu0 0.0
      %3244 = vmatpush1.msra.mxu0 %v3205
      %3245 = vmatprep.subr.mxu0 0.0
      %3246 = vmatpush1.msra.mxu0 %v3206
      %3247 = vmatprep.subr.mxu0 0.0
      %3248 = vmatpush1.msra.mxu0 0.0
      %3249 = vmatprep.subr.mxu0 0.0
      %3250 = vmatpush1.msra.mxu0 0.0
      %3251 = vmatprep.subr.mxu0 0.0
      %3252 = vmatpush1.msra.mxu0 0.0
      %3253 = vmatprep.subr.mxu0 0.0
      %3254 = vmatpush1.msra.mxu0 0.0
      %3255 = vmatprep.subr.mxu0 0.0
      %3256 = vmatpush1.msra.mxu0 0.0
      %3257 = vmatprep.subr.mxu0 0.0
      %3258 = vmatpush1.msra.mxu0 0.0
      %3259 = vmatprep.subr.mxu0 0.0
      %3260 = vmatpush1.msra.mxu0 0.0
      %3261 = vmatprep.subr.mxu0 0.0
      %3262 = vmatpush1.msra.mxu0 0.0
      %3263 = vmatprep.subr.mxu0 0.0
      %3264 = vmatpush1.msra.mxu0 0.0
      %3265 = vmatprep.subr.mxu0 0.0
      %3266 = vmatpush1.msra.mxu0 0.0
      %3267 = vmatprep.subr.mxu0 0.0
      %3268 = vmatpush1.msra.mxu0 0.0
      %3269 = vmatprep.subr.mxu0 0.0
      %3270 = vmatpush1.msra.mxu0 0.0
      %3271 = vmatprep.subr.mxu0 0.0
      %3272 = vmatpush1.msra.mxu0 0.0
      %3273 = vmatprep.subr.mxu0 0.0
      %3274 = vmatpush1.msra.mxu0 0.0
      %3275 = vmatprep.subr.mxu0 0.0
      %3276 = vmatpush1.msra.mxu0 0.0
      %3277 = vmatprep.subr.mxu0 0.0
      %3278 = vmatpush1.msra.mxu0 0.0
      %3279 = vmatprep.mubr.f32.mxu0 0.0
      %3280 = vmatmul.mubr.f32.gmra.mrb[0].mxu0 %v3207
      %v3281 = vpop.f32.mrb[0].mxu0
      %v3282 = vadd.f32 0.0, %v3281
      %v3283 = vpop.f32.mrb[0].mxu0
      %3284 = vmatprep.mubr.f32.mxu0 0.0
      %3285 = vmatmul.mubr.f32.gmra.mrb[0].mxu0 %v3208
      %v3286 = vpop.f32.mrb[0].mxu0
      %v3287 = vadd.f32 0.0, %v3286
      %v3288 = vpop.f32.mrb[0].mxu0
      %3289 = vmatprep.mubr.f32.mxu0 0.0
      %3290 = vmatmul.mubr.f32.gmra.mrb[0].mxu0 %v3209
      %v3291 = vpop.f32.mrb[0].mxu0
      %v3292 = vadd.f32 0.0, %v3291
      %v3293 = vpop.f32.mrb[0].mxu0
      %3294 = vmatprep.mubr.f32.mxu0 0.0
      %3295 = vmatmul.mubr.f32.gmra.mrb[0].mxu0 %v3210
      %v3296 = vpop.f32.mrb[0].mxu0
      %v3297 = vadd.f32 0.0, %v3296
      %v3298 = vpop.f32.mrb[0].mxu0
      %3299 = vmatprep.mubr.f32.mxu0 0.0
      %3300 = vmatmul.mubr.f32.gmra.mrb[0].mxu0 %v3211
      %v3301 = vpop.f32.mrb[0].mxu0
      %v3302 = vadd.f32 0.0, %v3301
      %v3303 = vpop.f32.mrb[0].mxu0
      %3304 = vmatprep.mubr.f32.mxu0 0.0
      %3305 = vmatmul.mubr.f32.gmra.mrb[0].mxu0 %v3212
      %v3306 = vpop.f32.mrb[0].mxu0
      %v3307 = vadd.f32 0.0, %v3306
      %v3308 = vpop.f32.mrb[0].mxu0
      %3309 = vmatprep.mubr.f32.mxu0 0.0
      %3310 = vmatmul.mubr.f32.gmra.mrb[0].mxu0 %v3213
      %v3311 = vpop.f32.mrb[0].mxu0
      %v3312 = vadd.f32 0.0, %v3311
      %v3313 = vpop.f32.mrb[0].mxu0
      %3314 = vmatprep.mubr.f32.mxu0 0.0
      %3315 = vmatmul.mubr.f32.gmra.mrb[0].mxu0 %v3214
      %v3316 = vpop.f32.mrb[0].mxu0
      %v3317 = vadd.f32 0.0, %v3316
      %v3318 = vpop.f32.mrb[0].mxu0
      %3319 = vdwg.mxu0
      %s3320 = scalar_lea.vmem %s6, 64
      %v3321 = vld [vmem:[%s3320] sm:$0xff]
      %v3322 = vld [vmem:[%s3320 + $0x8] sm:$0xff]
      %v3323 = vld [vmem:[%s3320 + $0x10] sm:$0xff]
      %v3324 = vld [vmem:[%s3320 + $0x18] sm:$0xff]
      %v3325 = vld [vmem:[%s3320 + $0x20] sm:$0xff]
      %v3326 = vld [vmem:[%s3320 + $0x28] sm:$0xff]
      %v3327 = vld [vmem:[%s3320 + $0x30] sm:$0xff]
      %v3328 = vld [vmem:[%s3320 + $0x38] sm:$0xff]
      %3329 = vmatprep.subr.mxu0 0.0
      %3330 = vmatpush1.msra.mxu0 %v3191
      %3331 = vmatprep.subr.mxu0 0.0
      %3332 = vmatpush1.msra.mxu0 %v3192
      %3333 = vmatprep.subr.mxu0 0.0
      %3334 = vmatpush1.msra.mxu0 %v3193
      %3335 = vmatprep.subr.mxu0 0.0
      %3336 = vmatpush1.msra.mxu0 %v3194
      %3337 = vmatprep.subr.mxu0 0.0
      %3338 = vmatpush1.msra.mxu0 %v3195
      %3339 = vmatprep.subr.mxu0 0.0
      %3340 = vmatpush1.msra.mxu0 %v3196
      %3341 = vmatprep.subr.mxu0 0.0
      %3342 = vmatpush1.msra.mxu0 %v3197
      %3343 = vmatprep.subr.mxu0 0.0
      %3344 = vmatpush1.msra.mxu0 %v3198
      %3345 = vmatprep.subr.mxu0 0.0
      %3346 = vmatpush1.msra.mxu0 %v3199
      %3347 = vmatprep.subr.mxu0 0.0
      %3348 = vmatpush1.msra.mxu0 %v3200
      %3349 = vmatprep.subr.mxu0 0.0
      %3350 = vmatpush1.msra.mxu0 %v3201
      %3351 = vmatprep.subr.mxu0 0.0
      %3352 = vmatpush1.msra.mxu0 %v3202
      %3353 = vmatprep.subr.mxu0 0.0
      %3354 = vmatpush1.msra.mxu0 %v3203
      %3355 = vmatprep.subr.mxu0 0.0
      %3356 = vmatpush1.msra.mxu0 %v3204
      %3357 = vmatprep.subr.mxu0 0.0
      %3358 = vmatpush1.msra.mxu0 %v3205
      %3359 = vmatprep.subr.mxu0 0.0
      %3360 = vmatpush1.msra.mxu0 %v3206
      %3361 = vmatprep.subr.mxu0 0.0
      %3362 = vmatpush1.msra.mxu0 0.0
      %3363 = vmatprep.subr.mxu0 0.0
      %3364 = vmatpush1.msra.mxu0 0.0
      %3365 = vmatprep.subr.mxu0 0.0
      %3366 = vmatpush1.msra.mxu0 0.0
      %3367 = vmatprep.subr.mxu0 0.0
      %3368 = vmatpush1.msra.mxu0 0.0
      %3369 = vmatprep.subr.mxu0 0.0
      %3370 = vmatpush1.msra.mxu0 0.0
      %3371 = vmatprep.subr.mxu0 0.0
      %3372 = vmatpush1.msra.mxu0 0.0
      %3373 = vmatprep.subr.mxu0 0.0
      %3374 = vmatpush1.msra.mxu0 0.0
      %3375 = vmatprep.subr.mxu0 0.0
      %3376 = vmatpush1.msra.mxu0 0.0
      %3377 = vmatprep.subr.mxu0 0.0
      %3378 = vmatpush1.msra.mxu0 0.0
      %3379 = vmatprep.subr.mxu0 0.0
      %3380 = vmatpush1.msra.mxu0 0.0
      %3381 = vmatprep.subr.mxu0 0.0
      %3382 = vmatpush1.msra.mxu0 0.0
      %3383 = vmatprep.subr.mxu0 0.0
      %3384 = vmatpush1.msra.mxu0 0.0
      %3385 = vmatprep.subr.mxu0 0.0
      %3386 = vmatpush1.msra.mxu0 0.0
      %3387 = vmatprep.subr.mxu0 0.0
      %3388 = vmatpush1.msra.mxu0 0.0
      %3389 = vmatprep.subr.mxu0 0.0
      %3390 = vmatpush1.msra.mxu0 0.0
      %3391 = vmatprep.subr.mxu0 0.0
      %3392 = vmatpush1.msra.mxu0 0.0
      %3393 = vmatprep.mubr.f32.mxu0 0.0
      %3394 = vmatmul.mubr.f32.gmra.mrb[0].mxu0 %v3321
      %v3395 = vpop.f32.mrb[0].mxu0
      %v3396 = vadd.f32 0.0, %v3395
      %v3397 = vpop.f32.mrb[0].mxu0
      %3398 = vmatprep.mubr.f32.mxu0 0.0
      %3399 = vmatmul.mubr.f32.gmra.mrb[0].mxu0 %v3322
      %v3400 = vpop.f32.mrb[0].mxu0
      %v3401 = vadd.f32 0.0, %v3400
      %v3402 = vpop.f32.mrb[0].mxu0
      %3403 = vmatprep.mubr.f32.mxu0 0.0
      %3404 = vmatmul.mubr.f32.gmra.mrb[0].mxu0 %v3323
      %v3405 = vpop.f32.mrb[0].mxu0
      %v3406 = vadd.f32 0.0, %v3405
      %v3407 = vpop.f32.mrb[0].mxu0
      %3408 = vmatprep.mubr.f32.mxu0 0.0
      %3409 = vmatmul.mubr.f32.gmra.mrb[0].mxu0 %v3324
      %v3410 = vpop.f32.mrb[0].mxu0
      %v3411 = vadd.f32 0.0, %v3410
      %v3412 = vpop.f32.mrb[0].mxu0
      %3413 = vmatprep.mubr.f32.mxu0 0.0
      %3414 = vmatmul.mubr.f32.gmra.mrb[0].mxu0 %v3325
      %v3415 = vpop.f32.mrb[0].mxu0
      %v3416 = vadd.f32 0.0, %v3415
      %v3417 = vpop.f32.mrb[0].mxu0
      %3418 = vmatprep.mubr.f32.mxu0 0.0
      %3419 = vmatmul.mubr.f32.gmra.mrb[0].mxu0 %v3326
      %v3420 = vpop.f32.mrb[0].mxu0
      %v3421 = vadd.f32 0.0, %v3420
      %v3422 = vpop.f32.mrb[0].mxu0
      %3423 = vmatprep.mubr.f32.mxu0 0.0
      %3424 = vmatmul.mubr.f32.gmra.mrb[0].mxu0 %v3327
      %v3425 = vpop.f32.mrb[0].mxu0
      %v3426 = vadd.f32 0.0, %v3425
      %v3427 = vpop.f32.mrb[0].mxu0
      %3428 = vmatprep.mubr.f32.mxu0 0.0
      %3429 = vmatmul.mubr.f32.gmra.mrb[0].mxu0 %v3328
      %v3430 = vpop.f32.mrb[0].mxu0
      %v3431 = vadd.f32 0.0, %v3430
      %v3432 = vpop.f32.mrb[0].mxu0
      %3433 = vdwg.mxu0
      %v3434 = vmax.f32 %v3282, %v3396
      %v3435 = vmax.f32 %v3287, %v3401
      %v3436 = vmax.f32 %v3292, %v3406
      %v3437 = vmax.f32 %v3297, %v3411
      %v3438 = vmax.f32 %v3302, %v3416
      %v3439 = vmax.f32 %v3307, %v3421
      %v3440 = vmax.f32 %v3312, %v3426
      %v3441 = vmax.f32 %v3317, %v3431
      %v3442 = vld [vmem:[%s7] sm:$0xff]
      %vm3443 = vcmask 64512
      %v3445 = vsel %vm3443, %v3434, 0
      %v3448 = vsel %vm3443, %v3435, 0
      %v3451 = vsel %vm3443, %v3436, 0
      %v3454 = vsel %vm3443, %v3437, 0
      %v3457 = vsel %vm3443, %v3438, 0
      %v3460 = vsel %vm3443, %v3439, 0
      %v3463 = vsel %vm3443, %v3440, 0
      %v3466 = vsel %vm3443, %v3441, 0
      %3468 = vmatprep.subr.mxu0 0.0
      %3469 = vmatpush1.msra.mxu0 %v3442
      %3470 = vmatprep.subr.mxu0 0.0
      %3471 = vmatpush1.msra.mxu0 0.0
      %3472 = vmatprep.subr.mxu0 0.0
      %3473 = vmatpush1.msra.mxu0 0.0
      %3474 = vmatprep.subr.mxu0 0.0
      %3475 = vmatpush1.msra.mxu0 0.0
      %3476 = vmatprep.subr.mxu0 0.0
      %3477 = vmatpush1.msra.mxu0 0.0
      %3478 = vmatprep.subr.mxu0 0.0
      %3479 = vmatpush1.msra.mxu0 0.0
      %3480 = vmatprep.subr.mxu0 0.0
      %3481 = vmatpush1.msra.mxu0 0.0
      %3482 = vmatprep.subr.mxu0 0.0
      %3483 = vmatpush1.msra.mxu0 0.0
      %3484 = vmatprep.subr.mxu0 0.0
      %3485 = vmatpush1.msra.mxu0 0.0
      %3486 = vmatprep.subr.mxu0 0.0
      %3487 = vmatpush1.msra.mxu0 0.0
      %3488 = vmatprep.subr.mxu0 0.0
      %3489 = vmatpush1.msra.mxu0 0.0
      %3490 = vmatprep.subr.mxu0 0.0
      %3491 = vmatpush1.msra.mxu0 0.0
      %3492 = vmatprep.subr.mxu0 0.0
      %3493 = vmatpush1.msra.mxu0 0.0
      %3494 = vmatprep.subr.mxu0 0.0
      %3495 = vmatpush1.msra.mxu0 0.0
      %3496 = vmatprep.subr.mxu0 0.0
      %3497 = vmatpush1.msra.mxu0 0.0
      %3498 = vmatprep.subr.mxu0 0.0
      %3499 = vmatpush1.msra.mxu0 0.0
      %3500 = vmatprep.subr.mxu0 0.0
      %3501 = vmatpush1.msra.mxu0 0.0
      %3502 = vmatprep.subr.mxu0 0.0
      %3503 = vmatpush1.msra.mxu0 0.0
      %3504 = vmatprep.subr.mxu0 0.0
      %3505 = vmatpush1.msra.mxu0 0.0
      %3506 = vmatprep.subr.mxu0 0.0
      %3507 = vmatpush1.msra.mxu0 0.0
      %3508 = vmatprep.subr.mxu0 0.0
      %3509 = vmatpush1.msra.mxu0 0.0
      %3510 = vmatprep.subr.mxu0 0.0
      %3511 = vmatpush1.msra.mxu0 0.0
      %3512 = vmatprep.subr.mxu0 0.0
      %3513 = vmatpush1.msra.mxu0 0.0
      %3514 = vmatprep.subr.mxu0 0.0
      %3515 = vmatpush1.msra.mxu0 0.0
      %3516 = vmatprep.subr.mxu0 0.0
      %3517 = vmatpush1.msra.mxu0 0.0
      %3518 = vmatprep.subr.mxu0 0.0
      %3519 = vmatpush1.msra.mxu0 0.0
      %3520 = vmatprep.subr.mxu0 0.0
      %3521 = vmatpush1.msra.mxu0 0.0
      %3522 = vmatprep.subr.mxu0 0.0
      %3523 = vmatpush1.msra.mxu0 0.0
      %3524 = vmatprep.subr.mxu0 0.0
      %3525 = vmatpush1.msra.mxu0 0.0
      %3526 = vmatprep.subr.mxu0 0.0
      %3527 = vmatpush1.msra.mxu0 0.0
      %3528 = vmatprep.subr.mxu0 0.0
      %3529 = vmatpush1.msra.mxu0 0.0
      %3530 = vmatprep.subr.mxu0 0.0
      %3531 = vmatpush1.msra.mxu0 0.0
      %3532 = vmatprep.mubr.f32.mxu0 0.0
      %3533 = vmatmul.mubr.f32.gmra.mrb[0].mxu0 %v3445
      %v3534 = vpop.f32.mrb[0].mxu0
      %v3535 = vadd.f32 0.0, %v3534
      %v3536 = vpop.f32.mrb[0].mxu0
      %3537 = vmatprep.mubr.f32.mxu0 0.0
      %3538 = vmatmul.mubr.f32.gmra.mrb[0].mxu0 %v3448
      %v3539 = vpop.f32.mrb[0].mxu0
      %v3540 = vadd.f32 0.0, %v3539
      %v3541 = vpop.f32.mrb[0].mxu0
      %3542 = vmatprep.mubr.f32.mxu0 0.0
      %3543 = vmatmul.mubr.f32.gmra.mrb[0].mxu0 %v3451
      %v3544 = vpop.f32.mrb[0].mxu0
      %v3545 = vadd.f32 0.0, %v3544
      %v3546 = vpop.f32.mrb[0].mxu0
      %3547 = vmatprep.mubr.f32.mxu0 0.0
      %3548 = vmatmul.mubr.f32.gmra.mrb[0].mxu0 %v3454
      %v3549 = vpop.f32.mrb[0].mxu0
      %v3550 = vadd.f32 0.0, %v3549
      %v3551 = vpop.f32.mrb[0].mxu0
      %3552 = vmatprep.mubr.f32.mxu0 0.0
      %3553 = vmatmul.mubr.f32.gmra.mrb[0].mxu0 %v3457
      %v3554 = vpop.f32.mrb[0].mxu0
      %v3555 = vadd.f32 0.0, %v3554
      %v3556 = vpop.f32.mrb[0].mxu0
      %3557 = vmatprep.mubr.f32.mxu0 0.0
      %3558 = vmatmul.mubr.f32.gmra.mrb[0].mxu0 %v3460
      %v3559 = vpop.f32.mrb[0].mxu0
      %v3560 = vadd.f32 0.0, %v3559
      %v3561 = vpop.f32.mrb[0].mxu0
      %3562 = vmatprep.mubr.f32.mxu0 0.0
      %3563 = vmatmul.mubr.f32.gmra.mrb[0].mxu0 %v3463
      %v3564 = vpop.f32.mrb[0].mxu0
      %v3565 = vadd.f32 0.0, %v3564
      %v3566 = vpop.f32.mrb[0].mxu0
      %3567 = vmatprep.mubr.f32.mxu0 0.0
      %3568 = vmatmul.mubr.f32.gmra.mrb[0].mxu0 %v3466
      %v3569 = vpop.f32.mrb[0].mxu0
      %v3570 = vadd.f32 0.0, %v3569
      %v3571 = vpop.f32.mrb[0].mxu0
      %3572 = vdwg.mxu0
      %s3573 = scalar_lea.vmem %s7, 8
      %v3574 = vld [vmem:[%s3573] sm:$0xff]
      %3575 = vmatprep.subr.mxu0 0.0
      %3576 = vmatpush1.msra.mxu0 %v3574
      %3577 = vmatprep.subr.mxu0 0.0
      %3578 = vmatpush1.msra.mxu0 0.0
      %3579 = vmatprep.subr.mxu0 0.0
      %3580 = vmatpush1.msra.mxu0 0.0
      %3581 = vmatprep.subr.mxu0 0.0
      %3582 = vmatpush1.msra.mxu0 0.0
      %3583 = vmatprep.subr.mxu0 0.0
      %3584 = vmatpush1.msra.mxu0 0.0
      %3585 = vmatprep.subr.mxu0 0.0
      %3586 = vmatpush1.msra.mxu0 0.0
      %3587 = vmatprep.subr.mxu0 0.0
      %3588 = vmatpush1.msra.mxu0 0.0
      %3589 = vmatprep.subr.mxu0 0.0
      %3590 = vmatpush1.msra.mxu0 0.0
      %3591 = vmatprep.subr.mxu0 0.0
      %3592 = vmatpush1.msra.mxu0 0.0
      %3593 = vmatprep.subr.mxu0 0.0
      %3594 = vmatpush1.msra.mxu0 0.0
      %3595 = vmatprep.subr.mxu0 0.0
      %3596 = vmatpush1.msra.mxu0 0.0
      %3597 = vmatprep.subr.mxu0 0.0
      %3598 = vmatpush1.msra.mxu0 0.0
      %3599 = vmatprep.subr.mxu0 0.0
      %3600 = vmatpush1.msra.mxu0 0.0
      %3601 = vmatprep.subr.mxu0 0.0
      %3602 = vmatpush1.msra.mxu0 0.0
      %3603 = vmatprep.subr.mxu0 0.0
      %3604 = vmatpush1.msra.mxu0 0.0
      %3605 = vmatprep.subr.mxu0 0.0
      %3606 = vmatpush1.msra.mxu0 0.0
      %3607 = vmatprep.subr.mxu0 0.0
      %3608 = vmatpush1.msra.mxu0 0.0
      %3609 = vmatprep.subr.mxu0 0.0
      %3610 = vmatpush1.msra.mxu0 0.0
      %3611 = vmatprep.subr.mxu0 0.0
      %3612 = vmatpush1.msra.mxu0 0.0
      %3613 = vmatprep.subr.mxu0 0.0
      %3614 = vmatpush1.msra.mxu0 0.0
      %3615 = vmatprep.subr.mxu0 0.0
      %3616 = vmatpush1.msra.mxu0 0.0
      %3617 = vmatprep.subr.mxu0 0.0
      %3618 = vmatpush1.msra.mxu0 0.0
      %3619 = vmatprep.subr.mxu0 0.0
      %3620 = vmatpush1.msra.mxu0 0.0
      %3621 = vmatprep.subr.mxu0 0.0
      %3622 = vmatpush1.msra.mxu0 0.0
      %3623 = vmatprep.subr.mxu0 0.0
      %3624 = vmatpush1.msra.mxu0 0.0
      %3625 = vmatprep.subr.mxu0 0.0
      %3626 = vmatpush1.msra.mxu0 0.0
      %3627 = vmatprep.subr.mxu0 0.0
      %3628 = vmatpush1.msra.mxu0 0.0
      %3629 = vmatprep.subr.mxu0 0.0
      %3630 = vmatpush1.msra.mxu0 0.0
      %3631 = vmatprep.subr.mxu0 0.0
      %3632 = vmatpush1.msra.mxu0 0.0
      %3633 = vmatprep.subr.mxu0 0.0
      %3634 = vmatpush1.msra.mxu0 0.0
      %3635 = vmatprep.subr.mxu0 0.0
      %3636 = vmatpush1.msra.mxu0 0.0
      %3637 = vmatprep.subr.mxu0 0.0
      %3638 = vmatpush1.msra.mxu0 0.0
      %3639 = vmatprep.mubr.f32.mxu0 0.0
      %3640 = vmatmul.mubr.f32.gmra.mrb[0].mxu0 %v3445
      %v3641 = vpop.f32.mrb[0].mxu0
      %v3642 = vadd.f32 0.0, %v3641
      %v3643 = vpop.f32.mrb[0].mxu0
      %3644 = vmatprep.mubr.f32.mxu0 0.0
      %3645 = vmatmul.mubr.f32.gmra.mrb[0].mxu0 %v3448
      %v3646 = vpop.f32.mrb[0].mxu0
      %v3647 = vadd.f32 0.0, %v3646
      %v3648 = vpop.f32.mrb[0].mxu0
      %3649 = vmatprep.mubr.f32.mxu0 0.0
      %3650 = vmatmul.mubr.f32.gmra.mrb[0].mxu0 %v3451
      %v3651 = vpop.f32.mrb[0].mxu0
      %v3652 = vadd.f32 0.0, %v3651
      %v3653 = vpop.f32.mrb[0].mxu0
      %3654 = vmatprep.mubr.f32.mxu0 0.0
      %3655 = vmatmul.mubr.f32.gmra.mrb[0].mxu0 %v3454
      %v3656 = vpop.f32.mrb[0].mxu0
      %v3657 = vadd.f32 0.0, %v3656
      %v3658 = vpop.f32.mrb[0].mxu0
      %3659 = vmatprep.mubr.f32.mxu0 0.0
      %3660 = vmatmul.mubr.f32.gmra.mrb[0].mxu0 %v3457
      %v3661 = vpop.f32.mrb[0].mxu0
      %v3662 = vadd.f32 0.0, %v3661
      %v3663 = vpop.f32.mrb[0].mxu0
      %3664 = vmatprep.mubr.f32.mxu0 0.0
      %3665 = vmatmul.mubr.f32.gmra.mrb[0].mxu0 %v3460
      %v3666 = vpop.f32.mrb[0].mxu0
      %v3667 = vadd.f32 0.0, %v3666
      %v3668 = vpop.f32.mrb[0].mxu0
      %3669 = vmatprep.mubr.f32.mxu0 0.0
      %3670 = vmatmul.mubr.f32.gmra.mrb[0].mxu0 %v3463
      %v3671 = vpop.f32.mrb[0].mxu0
      %v3672 = vadd.f32 0.0, %v3671
      %v3673 = vpop.f32.mrb[0].mxu0
      %3674 = vmatprep.mubr.f32.mxu0 0.0
      %3675 = vmatmul.mubr.f32.gmra.mrb[0].mxu0 %v3466
      %v3676 = vpop.f32.mrb[0].mxu0
      %v3677 = vadd.f32 0.0, %v3676
      %v3678 = vpop.f32.mrb[0].mxu0
      %3679 = vdwg.mxu0
      %v3680 = vmax.f32 %v3535, %v3642
      %v3681 = vmax.f32 %v3540, %v3647
      %v3682 = vmax.f32 %v3545, %v3652
      %v3683 = vmax.f32 %v3550, %v3657
      %v3684 = vmax.f32 %v3555, %v3662
      %v3685 = vmax.f32 %v3560, %v3667
      %v3686 = vmax.f32 %v3565, %v3672
      %v3687 = vmax.f32 %v3570, %v3677
      %v3688 = vld [vmem:[%s8] sm:$0xff]
      %v3689 = vld [vmem:[%s8 + $0x8] sm:$0xff]
      %v3690 = vld [vmem:[%s8 + $0x10] sm:$0xff]
      %v3691 = vld [vmem:[%s8 + $0x18] sm:$0xff]
      %v3692 = vld [vmem:[%s8 + $0x20] sm:$0xff]
      %v3693 = vld [vmem:[%s8 + $0x28] sm:$0xff]
      %v3694 = vld [vmem:[%s8 + $0x30] sm:$0xff]
      %v3695 = vld [vmem:[%s8 + $0x38] sm:$0xff]
      %v3696 = vld [vmem:[%s8 + $0x40] sm:$0xff]
      %v3697 = vld [vmem:[%s8 + $0x48] sm:$0xff]
      %v3698 = vld [vmem:[%s8 + $0x50] sm:$0xff]
      %v3699 = vld [vmem:[%s8 + $0x58] sm:$0xff]
      %v3700 = vld [vmem:[%s8 + $0x60] sm:$0xff]
      %v3701 = vld [vmem:[%s8 + $0x68] sm:$0xff]
      %v3702 = vld [vmem:[%s8 + $0x70] sm:$0xff]
      %v3703 = vld [vmem:[%s8 + $0x78] sm:$0xff]
      %v3704 = vld [vmem:[%s8 + $0x80] sm:$0xff]
      %v3705 = vld [vmem:[%s8 + $0x88] sm:$0xff]
      %v3706 = vld [vmem:[%s8 + $0x90] sm:$0xff]
      %v3707 = vld [vmem:[%s8 + $0x98] sm:$0xff]
      %v3708 = vld [vmem:[%s8 + $0xa0] sm:$0xff]
      %v3709 = vld [vmem:[%s8 + $0xa8] sm:$0xff]
      %v3710 = vld [vmem:[%s8 + $0xb0] sm:$0xff]
      %v3711 = vld [vmem:[%s8 + $0xb8] sm:$0xff]
      %v3712 = vld [vmem:[%s8 + $0xc0] sm:$0xff]
      %v3713 = vld [vmem:[%s8 + $0xc8] sm:$0xff]
      %v3714 = vld [vmem:[%s8 + $0xd0] sm:$0xff]
      %v3715 = vld [vmem:[%s8 + $0xd8] sm:$0xff]
      %v3716 = vld [vmem:[%s8 + $0xe0] sm:$0xff]
      %v3717 = vld [vmem:[%s8 + $0xe8] sm:$0xff]
      %v3718 = vld [vmem:[%s8 + $0xf0] sm:$0xff]
      %v3719 = vld [vmem:[%s8 + $0xf8] sm:$0xff]
      %vm3720 = vcmask 523264
      %v3722 = vsel %vm3720, %v3688, 0
      %v3725 = vsel %vm3720, %v3689, 0
      %v3728 = vsel %vm3720, %v3690, 0
      %v3731 = vsel %vm3720, %v3691, 0
      %v3734 = vsel %vm3720, %v3692, 0
      %v3737 = vsel %vm3720, %v3693, 0
      %v3740 = vsel %vm3720, %v3694, 0
      %v3743 = vsel %vm3720, %v3695, 0
      %v3746 = vsel %vm3720, %v3696, 0
      %v3749 = vsel %vm3720, %v3697, 0
      %v3752 = vsel %vm3720, %v3698, 0
      %v3755 = vsel %vm3720, %v3699, 0
      %v3758 = vsel %vm3720, %v3700, 0
      %v3761 = vsel %vm3720, %v3701, 0
      %v3764 = vsel %vm3720, %v3702, 0
      %v3767 = vsel %vm3720, %v3703, 0
      %v3770 = vsel %vm3720, %v3704, 0
      %v3773 = vsel %vm3720, %v3705, 0
      %v3776 = vsel %vm3720, %v3706, 0
      %v3779 = vsel %vm3720, %v3707, 0
      %v3782 = vsel %vm3720, %v3708, 0
      %v3785 = vsel %vm3720, %v3709, 0
      %v3788 = vsel %vm3720, %v3710, 0
      %v3791 = vsel %vm3720, %v3711, 0
      %v3794 = vsel %vm3720, %v3712, 0
      %v3797 = vsel %vm3720, %v3713, 0
      %v3800 = vsel %vm3720, %v3714, 0
      %v3803 = vsel %vm3720, %v3715, 0
      %v3806 = vsel %vm3720, %v3716, 0
      %v3809 = vsel %vm3720, %v3717, 0
      %v3812 = vsel %vm3720, %v3718, 0
      %v3815 = vsel %vm3720, %v3719, 0
      %3817 = vmatprep.subr.mxu0 0.0
      %3818 = vmatpush1.msra.mxu0 %v3680
      %3819 = vmatprep.subr.mxu0 0.0
      %3820 = vmatpush1.msra.mxu0 %v3681
      %3821 = vmatprep.subr.mxu0 0.0
      %3822 = vmatpush1.msra.mxu0 %v3682
      %3823 = vmatprep.subr.mxu0 0.0
      %3824 = vmatpush1.msra.mxu0 %v3683
      %3825 = vmatprep.subr.mxu0 0.0
      %3826 = vmatpush1.msra.mxu0 %v3684
      %3827 = vmatprep.subr.mxu0 0.0
      %3828 = vmatpush1.msra.mxu0 %v3685
      %3829 = vmatprep.subr.mxu0 0.0
      %3830 = vmatpush1.msra.mxu0 %v3686
      %3831 = vmatprep.subr.mxu0 0.0
      %3832 = vmatpush1.msra.mxu0 %v3687
      %3833 = vmatprep.subr.mxu0 0.0
      %3834 = vmatpush1.msra.mxu0 0.0
      %3835 = vmatprep.subr.mxu0 0.0
      %3836 = vmatpush1.msra.mxu0 0.0
      %3837 = vmatprep.subr.mxu0 0.0
      %3838 = vmatpush1.msra.mxu0 0.0
      %3839 = vmatprep.subr.mxu0 0.0
      %3840 = vmatpush1.msra.mxu0 0.0
      %3841 = vmatprep.subr.mxu0 0.0
      %3842 = vmatpush1.msra.mxu0 0.0
      %3843 = vmatprep.subr.mxu0 0.0
      %3844 = vmatpush1.msra.mxu0 0.0
      %3845 = vmatprep.subr.mxu0 0.0
      %3846 = vmatpush1.msra.mxu0 0.0
      %3847 = vmatprep.subr.mxu0 0.0
      %3848 = vmatpush1.msra.mxu0 0.0
      %3849 = vmatprep.subr.mxu0 0.0
      %3850 = vmatpush1.msra.mxu0 0.0
      %3851 = vmatprep.subr.mxu0 0.0
      %3852 = vmatpush1.msra.mxu0 0.0
      %3853 = vmatprep.subr.mxu0 0.0
      %3854 = vmatpush1.msra.mxu0 0.0
      %3855 = vmatprep.subr.mxu0 0.0
      %3856 = vmatpush1.msra.mxu0 0.0
      %3857 = vmatprep.subr.mxu0 0.0
      %3858 = vmatpush1.msra.mxu0 0.0
      %3859 = vmatprep.subr.mxu0 0.0
      %3860 = vmatpush1.msra.mxu0 0.0
      %3861 = vmatprep.subr.mxu0 0.0
      %3862 = vmatpush1.msra.mxu0 0.0
      %3863 = vmatprep.subr.mxu0 0.0
      %3864 = vmatpush1.msra.mxu0 0.0
      %3865 = vmatprep.subr.mxu0 0.0
      %3866 = vmatpush1.msra.mxu0 0.0
      %3867 = vmatprep.subr.mxu0 0.0
      %3868 = vmatpush1.msra.mxu0 0.0
      %3869 = vmatprep.subr.mxu0 0.0
      %3870 = vmatpush1.msra.mxu0 0.0
      %3871 = vmatprep.subr.mxu0 0.0
      %3872 = vmatpush1.msra.mxu0 0.0
      %3873 = vmatprep.subr.mxu0 0.0
      %3874 = vmatpush1.msra.mxu0 0.0
      %3875 = vmatprep.subr.mxu0 0.0
      %3876 = vmatpush1.msra.mxu0 0.0
      %3877 = vmatprep.subr.mxu0 0.0
      %3878 = vmatpush1.msra.mxu0 0.0
      %3879 = vmatprep.subr.mxu0 0.0
      %3880 = vmatpush1.msra.mxu0 0.0
      %3881 = vmatprep.mubr.f32.mxu0 0.0
      %3882 = vmatmul.mubr.f32.gmra.mrb[0].mxu0 %v3722
      %v3883 = vpop.f32.mrb[0].mxu0
      %v3884 = vadd.f32 0.0, %v3883
      %v3885 = vpop.f32.mrb[0].mxu0
      %3886 = vmatprep.mubr.f32.mxu0 0.0
      %3887 = vmatmul.mubr.f32.gmra.mrb[0].mxu0 %v3725
      %v3888 = vpop.f32.mrb[0].mxu0
      %v3889 = vadd.f32 0.0, %v3888
      %v3890 = vpop.f32.mrb[0].mxu0
      %3891 = vmatprep.mubr.f32.mxu0 0.0
      %3892 = vmatmul.mubr.f32.gmra.mrb[0].mxu0 %v3728
      %v3893 = vpop.f32.mrb[0].mxu0
      %v3894 = vadd.f32 0.0, %v3893
      %v3895 = vpop.f32.mrb[0].mxu0
      %3896 = vmatprep.mubr.f32.mxu0 0.0
      %3897 = vmatmul.mubr.f32.gmra.mrb[0].mxu0 %v3731
      %v3898 = vpop.f32.mrb[0].mxu0
      %v3899 = vadd.f32 0.0, %v3898
      %v3900 = vpop.f32.mrb[0].mxu0
      %3901 = vmatprep.mubr.f32.mxu0 0.0
      %3902 = vmatmul.mubr.f32.gmra.mrb[0].mxu0 %v3734
      %v3903 = vpop.f32.mrb[0].mxu0
      %v3904 = vadd.f32 0.0, %v3903
      %v3905 = vpop.f32.mrb[0].mxu0
      %3906 = vmatprep.mubr.f32.mxu0 0.0
      %3907 = vmatmul.mubr.f32.gmra.mrb[0].mxu0 %v3737
      %v3908 = vpop.f32.mrb[0].mxu0
      %v3909 = vadd.f32 0.0, %v3908
      %v3910 = vpop.f32.mrb[0].mxu0
      %3911 = vmatprep.mubr.f32.mxu0 0.0
      %3912 = vmatmul.mubr.f32.gmra.mrb[0].mxu0 %v3740
      %v3913 = vpop.f32.mrb[0].mxu0
      %v3914 = vadd.f32 0.0, %v3913
      %v3915 = vpop.f32.mrb[0].mxu0
      %3916 = vmatprep.mubr.f32.mxu0 0.0
      %3917 = vmatmul.mubr.f32.gmra.mrb[0].mxu0 %v3743
      %v3918 = vpop.f32.mrb[0].mxu0
      %v3919 = vadd.f32 0.0, %v3918
      %v3920 = vpop.f32.mrb[0].mxu0
      %3921 = vmatprep.mubr.f32.mxu0 0.0
      %3922 = vmatmul.mubr.f32.gmra.mrb[0].mxu0 %v3746
      %v3923 = vpop.f32.mrb[0].mxu0
      %v3924 = vadd.f32 0.0, %v3923
      %v3925 = vpop.f32.mrb[0].mxu0
      %3926 = vmatprep.mubr.f32.mxu0 0.0
      %3927 = vmatmul.mubr.f32.gmra.mrb[0].mxu0 %v3749
      %v3928 = vpop.f32.mrb[0].mxu0
      %v3929 = vadd.f32 0.0, %v3928
      %v3930 = vpop.f32.mrb[0].mxu0
      %3931 = vmatprep.mubr.f32.mxu0 0.0
      %3932 = vmatmul.mubr.f32.gmra.mrb[0].mxu0 %v3752
      %v3933 = vpop.f32.mrb[0].mxu0
      %v3934 = vadd.f32 0.0, %v3933
      %v3935 = vpop.f32.mrb[0].mxu0
      %3936 = vmatprep.mubr.f32.mxu0 0.0
      %3937 = vmatmul.mubr.f32.gmra.mrb[0].mxu0 %v3755
      %v3938 = vpop.f32.mrb[0].mxu0
      %v3939 = vadd.f32 0.0, %v3938
      %v3940 = vpop.f32.mrb[0].mxu0
      %3941 = vmatprep.mubr.f32.mxu0 0.0
      %3942 = vmatmul.mubr.f32.gmra.mrb[0].mxu0 %v3758
      %v3943 = vpop.f32.mrb[0].mxu0
      %v3944 = vadd.f32 0.0, %v3943
      %v3945 = vpop.f32.mrb[0].mxu0
      %3946 = vmatprep.mubr.f32.mxu0 0.0
      %3947 = vmatmul.mubr.f32.gmra.mrb[0].mxu0 %v3761
      %v3948 = vpop.f32.mrb[0].mxu0
      %v3949 = vadd.f32 0.0, %v3948
      %v3950 = vpop.f32.mrb[0].mxu0
      %3951 = vmatprep.mubr.f32.mxu0 0.0
      %3952 = vmatmul.mubr.f32.gmra.mrb[0].mxu0 %v3764
      %v3953 = vpop.f32.mrb[0].mxu0
      %v3954 = vadd.f32 0.0, %v3953
      %v3955 = vpop.f32.mrb[0].mxu0
      %3956 = vmatprep.mubr.f32.mxu0 0.0
      %3957 = vmatmul.mubr.f32.gmra.mrb[0].mxu0 %v3767
      %v3958 = vpop.f32.mrb[0].mxu0
      %v3959 = vadd.f32 0.0, %v3958
      %v3960 = vpop.f32.mrb[0].mxu0
      %3961 = vmatprep.mubr.f32.mxu0 0.0
      %3962 = vmatmul.mubr.f32.gmra.mrb[0].mxu0 %v3770
      %v3963 = vpop.f32.mrb[0].mxu0
      %v3964 = vadd.f32 0.0, %v3963
      %v3965 = vpop.f32.mrb[0].mxu0
      %3966 = vmatprep.mubr.f32.mxu0 0.0
      %3967 = vmatmul.mubr.f32.gmra.mrb[0].mxu0 %v3773
      %v3968 = vpop.f32.mrb[0].mxu0
      %v3969 = vadd.f32 0.0, %v3968
      %v3970 = vpop.f32.mrb[0].mxu0
      %3971 = vmatprep.mubr.f32.mxu0 0.0
      %3972 = vmatmul.mubr.f32.gmra.mrb[0].mxu0 %v3776
      %v3973 = vpop.f32.mrb[0].mxu0
      %v3974 = vadd.f32 0.0, %v3973
      %v3975 = vpop.f32.mrb[0].mxu0
      %3976 = vmatprep.mubr.f32.mxu0 0.0
      %3977 = vmatmul.mubr.f32.gmra.mrb[0].mxu0 %v3779
      %v3978 = vpop.f32.mrb[0].mxu0
      %v3979 = vadd.f32 0.0, %v3978
      %v3980 = vpop.f32.mrb[0].mxu0
      %3981 = vmatprep.mubr.f32.mxu0 0.0
      %3982 = vmatmul.mubr.f32.gmra.mrb[0].mxu0 %v3782
      %v3983 = vpop.f32.mrb[0].mxu0
      %v3984 = vadd.f32 0.0, %v3983
      %v3985 = vpop.f32.mrb[0].mxu0
      %3986 = vmatprep.mubr.f32.mxu0 0.0
      %3987 = vmatmul.mubr.f32.gmra.mrb[0].mxu0 %v3785
      %v3988 = vpop.f32.mrb[0].mxu0
      %v3989 = vadd.f32 0.0, %v3988
      %v3990 = vpop.f32.mrb[0].mxu0
      %3991 = vmatprep.mubr.f32.mxu0 0.0
      %3992 = vmatmul.mubr.f32.gmra.mrb[0].mxu0 %v3788
      %v3993 = vpop.f32.mrb[0].mxu0
      %v3994 = vadd.f32 0.0, %v3993
      %v3995 = vpop.f32.mrb[0].mxu0
      %3996 = vmatprep.mubr.f32.mxu0 0.0
      %3997 = vmatmul.mubr.f32.gmra.mrb[0].mxu0 %v3791
      %v3998 = vpop.f32.mrb[0].mxu0
      %v3999 = vadd.f32 0.0, %v3998
      %v4000 = vpop.f32.mrb[0].mxu0
      %4001 = vmatprep.mubr.f32.mxu0 0.0
      %4002 = vmatmul.mubr.f32.gmra.mrb[0].mxu0 %v3794
      %v4003 = vpop.f32.mrb[0].mxu0
      %v4004 = vadd.f32 0.0, %v4003
      %v4005 = vpop.f32.mrb[0].mxu0
      %4006 = vmatprep.mubr.f32.mxu0 0.0
      %4007 = vmatmul.mubr.f32.gmra.mrb[0].mxu0 %v3797
      %v4008 = vpop.f32.mrb[0].mxu0
      %v4009 = vadd.f32 0.0, %v4008
      %v4010 = vpop.f32.mrb[0].mxu0
      %4011 = vmatprep.mubr.f32.mxu0 0.0
      %4012 = vmatmul.mubr.f32.gmra.mrb[0].mxu0 %v3800
      %v4013 = vpop.f32.mrb[0].mxu0
      %v4014 = vadd.f32 0.0, %v4013
      %v4015 = vpop.f32.mrb[0].mxu0
      %4016 = vmatprep.mubr.f32.mxu0 0.0
      %4017 = vmatmul.mubr.f32.gmra.mrb[0].mxu0 %v3803
      %v4018 = vpop.f32.mrb[0].mxu0
      %v4019 = vadd.f32 0.0, %v4018
      %v4020 = vpop.f32.mrb[0].mxu0
      %4021 = vmatprep.mubr.f32.mxu0 0.0
      %4022 = vmatmul.mubr.f32.gmra.mrb[0].mxu0 %v3806
      %v4023 = vpop.f32.mrb[0].mxu0
      %v4024 = vadd.f32 0.0, %v4023
      %v4025 = vpop.f32.mrb[0].mxu0
      %4026 = vmatprep.mubr.f32.mxu0 0.0
      %4027 = vmatmul.mubr.f32.gmra.mrb[0].mxu0 %v3809
      %v4028 = vpop.f32.mrb[0].mxu0
      %v4029 = vadd.f32 0.0, %v4028
      %v4030 = vpop.f32.mrb[0].mxu0
      %4031 = vmatprep.mubr.f32.mxu0 0.0
      %4032 = vmatmul.mubr.f32.gmra.mrb[0].mxu0 %v3812
      %v4033 = vpop.f32.mrb[0].mxu0
      %v4034 = vadd.f32 0.0, %v4033
      %v4035 = vpop.f32.mrb[0].mxu0
      %4036 = vmatprep.mubr.f32.mxu0 0.0
      %4037 = vmatmul.mubr.f32.gmra.mrb[0].mxu0 %v3815
      %v4038 = vpop.f32.mrb[0].mxu0
      %v4039 = vadd.f32 0.0, %v4038
      %v4040 = vpop.f32.mrb[0].mxu0
      %4041 = vdwg.mxu0
      %v4042 = vlaneseq
      %v4043 = vshrl.u32 %v4042, 7
      %v4044 = vadd.s32 %v4043, 8
      %v4045 = vadd.s32 %v4043, 16
      %v4046 = vadd.s32 %v4043, 24
      %v4047 = vadd.s32 %v4043, 32
      %v4048 = vadd.s32 %v4043, 40
      %v4049 = vadd.s32 %v4043, 48
      %v4050 = vadd.s32 %v4043, 56
      %v4051 = vadd.s32 %v4043, 64
      %v4052 = vadd.s32 %v4043, 72
      %v4053 = vadd.s32 %v4043, 80
      %v4054 = vadd.s32 %v4043, 88
      %v4055 = vadd.s32 %v4043, 96
      %v4056 = vadd.s32 %v4043, 104
      %v4057 = vadd.s32 %v4043, 112
      %v4058 = vadd.s32 %v4043, 120
      %v4059 = vadd.s32 %v4043, 128
      %v4060 = vadd.s32 %v4043, 136
      %v4061 = vadd.s32 %v4043, 144
      %v4062 = vadd.s32 %v4043, 152
      %v4063 = vadd.s32 %v4043, 160
      %v4064 = vadd.s32 %v4043, 168
      %v4065 = vadd.s32 %v4043, 176
      %v4066 = vadd.s32 %v4043, 184
      %v4067 = vadd.s32 %v4043, 192
      %v4068 = vadd.s32 %v4043, 200
      %v4069 = vadd.s32 %v4043, 208
      %v4070 = vadd.s32 %v4043, 216
      %v4071 = vadd.s32 %v4043, 224
      %v4072 = vadd.s32 %v4043, 232
      %v4073 = vadd.s32 %v4043, 240
      %v4074 = vadd.s32 %v4043, 248
      %v4075 = vlaneseq
      %v4076 = vand.u32 %v4075, 127
      %vm4077 = vcmp.ge.s32.totalorder %v4043, 64
      %vm4078 = vcmp.ge.s32.totalorder %v4044, 64
      %vm4079 = vcmp.ge.s32.totalorder %v4045, 64
      %vm4080 = vcmp.ge.s32.totalorder %v4046, 64
      %vm4081 = vcmp.ge.s32.totalorder %v4047, 64
      %vm4082 = vcmp.ge.s32.totalorder %v4048, 64
      %vm4083 = vcmp.ge.s32.totalorder %v4049, 64
      %vm4084 = vcmp.ge.s32.totalorder %v4050, 64
      %vm4085 = vcmp.ge.s32.totalorder %v4051, 64
      %vm4086 = vcmp.ge.s32.totalorder %v4052, 64
      %vm4087 = vcmp.ge.s32.totalorder %v4053, 64
      %vm4088 = vcmp.ge.s32.totalorder %v4054, 64
      %vm4089 = vcmp.ge.s32.totalorder %v4055, 64
      %vm4090 = vcmp.ge.s32.totalorder %v4056, 64
      %vm4091 = vcmp.ge.s32.totalorder %v4057, 64
      %vm4092 = vcmp.ge.s32.totalorder %v4058, 64
      %vm4093 = vcmp.ge.s32.totalorder %v4059, 64
      %vm4094 = vcmp.ge.s32.totalorder %v4060, 64
      %vm4095 = vcmp.ge.s32.totalorder %v4061, 64
      %vm4096 = vcmp.ge.s32.totalorder %v4062, 64
      %vm4097 = vcmp.ge.s32.totalorder %v4063, 64
      %vm4098 = vcmp.ge.s32.totalorder %v4064, 64
      %vm4099 = vcmp.ge.s32.totalorder %v4065, 64
      %vm4100 = vcmp.ge.s32.totalorder %v4066, 64
      %vm4101 = vcmp.ge.s32.totalorder %v4067, 64
      %vm4102 = vcmp.ge.s32.totalorder %v4068, 64
      %vm4103 = vcmp.ge.s32.totalorder %v4069, 64
      %vm4104 = vcmp.ge.s32.totalorder %v4070, 64
      %vm4105 = vcmp.ge.s32.totalorder %v4071, 64
      %vm4106 = vcmp.ge.s32.totalorder %v4072, 64
      %vm4107 = vcmp.ge.s32.totalorder %v4073, 64
      %vm4108 = vcmp.ge.s32.totalorder %v4074, 64
      %v4109 = vsel %vm4077, 1, 0
      %v4110 = vsel %vm4078, 1, 0
      %v4111 = vsel %vm4079, 1, 0
      %v4112 = vsel %vm4080, 1, 0
      %v4113 = vsel %vm4081, 1, 0
      %v4114 = vsel %vm4082, 1, 0
      %v4115 = vsel %vm4083, 1, 0
      %v4116 = vsel %vm4084, 1, 0
      %v4117 = vsel %vm4085, 1, 0
      %v4118 = vsel %vm4086, 1, 0
      %v4119 = vsel %vm4087, 1, 0
      %v4120 = vsel %vm4088, 1, 0
      %v4121 = vsel %vm4089, 1, 0
      %v4122 = vsel %vm4090, 1, 0
      %v4123 = vsel %vm4091, 1, 0
      %v4124 = vsel %vm4092, 1, 0
      %v4125 = vsel %vm4093, 1, 0
      %v4126 = vsel %vm4094, 1, 0
      %v4127 = vsel %vm4095, 1, 0
      %v4128 = vsel %vm4096, 1, 0
      %v4129 = vsel %vm4097, 1, 0
      %v4130 = vsel %vm4098, 1, 0
      %v4131 = vsel %vm4099, 1, 0
      %v4132 = vsel %vm4100, 1, 0
      %v4133 = vsel %vm4101, 1, 0
      %v4134 = vsel %vm4102, 1, 0
      %v4135 = vsel %vm4103, 1, 0
      %v4136 = vsel %vm4104, 1, 0
      %v4137 = vsel %vm4105, 1, 0
      %v4138 = vsel %vm4106, 1, 0
      %v4139 = vsel %vm4107, 1, 0
      %v4140 = vsel %vm4108, 1, 0
      %vm4141 = vcmp.ge.s32.totalorder %v4043, 128
      %vm4142 = vcmp.ge.s32.totalorder %v4044, 128
      %vm4143 = vcmp.ge.s32.totalorder %v4045, 128
      %vm4144 = vcmp.ge.s32.totalorder %v4046, 128
      %vm4145 = vcmp.ge.s32.totalorder %v4047, 128
      %vm4146 = vcmp.ge.s32.totalorder %v4048, 128
      %vm4147 = vcmp.ge.s32.totalorder %v4049, 128
      %vm4148 = vcmp.ge.s32.totalorder %v4050, 128
      %vm4149 = vcmp.ge.s32.totalorder %v4051, 128
      %vm4150 = vcmp.ge.s32.totalorder %v4052, 128
      %vm4151 = vcmp.ge.s32.totalorder %v4053, 128
      %vm4152 = vcmp.ge.s32.totalorder %v4054, 128
      %vm4153 = vcmp.ge.s32.totalorder %v4055, 128
      %vm4154 = vcmp.ge.s32.totalorder %v4056, 128
      %vm4155 = vcmp.ge.s32.totalorder %v4057, 128
      %vm4156 = vcmp.ge.s32.totalorder %v4058, 128
      %vm4157 = vcmp.ge.s32.totalorder %v4059, 128
      %vm4158 = vcmp.ge.s32.totalorder %v4060, 128
      %vm4159 = vcmp.ge.s32.totalorder %v4061, 128
      %vm4160 = vcmp.ge.s32.totalorder %v4062, 128
      %vm4161 = vcmp.ge.s32.totalorder %v4063, 128
      %vm4162 = vcmp.ge.s32.totalorder %v4064, 128
      %vm4163 = vcmp.ge.s32.totalorder %v4065, 128
      %vm4164 = vcmp.ge.s32.totalorder %v4066, 128
      %vm4165 = vcmp.ge.s32.totalorder %v4067, 128
      %vm4166 = vcmp.ge.s32.totalorder %v4068, 128
      %vm4167 = vcmp.ge.s32.totalorder %v4069, 128
      %vm4168 = vcmp.ge.s32.totalorder %v4070, 128
      %vm4169 = vcmp.ge.s32.totalorder %v4071, 128
      %vm4170 = vcmp.ge.s32.totalorder %v4072, 128
      %vm4171 = vcmp.ge.s32.totalorder %v4073, 128
      %vm4172 = vcmp.ge.s32.totalorder %v4074, 128
      %v4173 = vsel %vm4141, 1, 0
      %v4174 = vsel %vm4142, 1, 0
      %v4175 = vsel %vm4143, 1, 0
      %v4176 = vsel %vm4144, 1, 0
      %v4177 = vsel %vm4145, 1, 0
      %v4178 = vsel %vm4146, 1, 0
      %v4179 = vsel %vm4147, 1, 0
      %v4180 = vsel %vm4148, 1, 0
      %v4181 = vsel %vm4149, 1, 0
      %v4182 = vsel %vm4150, 1, 0
      %v4183 = vsel %vm4151, 1, 0
      %v4184 = vsel %vm4152, 1, 0
      %v4185 = vsel %vm4153, 1, 0
      %v4186 = vsel %vm4154, 1, 0
      %v4187 = vsel %vm4155, 1, 0
      %v4188 = vsel %vm4156, 1, 0
      %v4189 = vsel %vm4157, 1, 0
      %v4190 = vsel %vm4158, 1, 0
      %v4191 = vsel %vm4159, 1, 0
      %v4192 = vsel %vm4160, 1, 0
      %v4193 = vsel %vm4161, 1, 0
      %v4194 = vsel %vm4162, 1, 0
      %v4195 = vsel %vm4163, 1, 0
      %v4196 = vsel %vm4164, 1, 0
      %v4197 = vsel %vm4165, 1, 0
      %v4198 = vsel %vm4166, 1, 0
      %v4199 = vsel %vm4167, 1, 0
      %v4200 = vsel %vm4168, 1, 0
      %v4201 = vsel %vm4169, 1, 0
      %v4202 = vsel %vm4170, 1, 0
      %v4203 = vsel %vm4171, 1, 0
      %v4204 = vsel %vm4172, 1, 0
      %v4205 = vadd.s32 %v4109, %v4173
      %v4206 = vadd.s32 %v4110, %v4174
      %v4207 = vadd.s32 %v4111, %v4175
      %v4208 = vadd.s32 %v4112, %v4176
      %v4209 = vadd.s32 %v4113, %v4177
      %v4210 = vadd.s32 %v4114, %v4178
      %v4211 = vadd.s32 %v4115, %v4179
      %v4212 = vadd.s32 %v4116, %v4180
      %v4213 = vadd.s32 %v4117, %v4181
      %v4214 = vadd.s32 %v4118, %v4182
      %v4215 = vadd.s32 %v4119, %v4183
      %v4216 = vadd.s32 %v4120, %v4184
      %v4217 = vadd.s32 %v4121, %v4185
      %v4218 = vadd.s32 %v4122, %v4186
      %v4219 = vadd.s32 %v4123, %v4187
      %v4220 = vadd.s32 %v4124, %v4188
      %v4221 = vadd.s32 %v4125, %v4189
      %v4222 = vadd.s32 %v4126, %v4190
      %v4223 = vadd.s32 %v4127, %v4191
      %v4224 = vadd.s32 %v4128, %v4192
      %v4225 = vadd.s32 %v4129, %v4193
      %v4226 = vadd.s32 %v4130, %v4194
      %v4227 = vadd.s32 %v4131, %v4195
      %v4228 = vadd.s32 %v4132, %v4196
      %v4229 = vadd.s32 %v4133, %v4197
      %v4230 = vadd.s32 %v4134, %v4198
      %v4231 = vadd.s32 %v4135, %v4199
      %v4232 = vadd.s32 %v4136, %v4200
      %v4233 = vadd.s32 %v4137, %v4201
      %v4234 = vadd.s32 %v4138, %v4202
      %v4235 = vadd.s32 %v4139, %v4203
      %v4236 = vadd.s32 %v4140, %v4204
      %vm4237 = vcmp.ge.s32.totalorder %v4043, 192
      %vm4238 = vcmp.ge.s32.totalorder %v4044, 192
      %vm4239 = vcmp.ge.s32.totalorder %v4045, 192
      %vm4240 = vcmp.ge.s32.totalorder %v4046, 192
      %vm4241 = vcmp.ge.s32.totalorder %v4047, 192
      %vm4242 = vcmp.ge.s32.totalorder %v4048, 192
      %vm4243 = vcmp.ge.s32.totalorder %v4049, 192
      %vm4244 = vcmp.ge.s32.totalorder %v4050, 192
      %vm4245 = vcmp.ge.s32.totalorder %v4051, 192
      %vm4246 = vcmp.ge.s32.totalorder %v4052, 192
      %vm4247 = vcmp.ge.s32.totalorder %v4053, 192
      %vm4248 = vcmp.ge.s32.totalorder %v4054, 192
      %vm4249 = vcmp.ge.s32.totalorder %v4055, 192
      %vm4250 = vcmp.ge.s32.totalorder %v4056, 192
      %vm4251 = vcmp.ge.s32.totalorder %v4057, 192
      %vm4252 = vcmp.ge.s32.totalorder %v4058, 192
      %vm4253 = vcmp.ge.s32.totalorder %v4059, 192
      %vm4254 = vcmp.ge.s32.totalorder %v4060, 192
      %vm4255 = vcmp.ge.s32.totalorder %v4061, 192
      %vm4256 = vcmp.ge.s32.totalorder %v4062, 192
      %vm4257 = vcmp.ge.s32.totalorder %v4063, 192
      %vm4258 = vcmp.ge.s32.totalorder %v4064, 192
      %vm4259 = vcmp.ge.s32.totalorder %v4065, 192
      %vm4260 = vcmp.ge.s32.totalorder %v4066, 192
      %vm4261 = vcmp.ge.s32.totalorder %v4067, 192
      %vm4262 = vcmp.ge.s32.totalorder %v4068, 192
      %vm4263 = vcmp.ge.s32.totalorder %v4069, 192
      %vm4264 = vcmp.ge.s32.totalorder %v4070, 192
      %vm4265 = vcmp.ge.s32.totalorder %v4071, 192
      %vm4266 = vcmp.ge.s32.totalorder %v4072, 192
      %vm4267 = vcmp.ge.s32.totalorder %v4073, 192
      %vm4268 = vcmp.ge.s32.totalorder %v4074, 192
      %v4269 = vsel %vm4237, 1, 0
      %v4270 = vsel %vm4238, 1, 0
      %v4271 = vsel %vm4239, 1, 0
      %v4272 = vsel %vm4240, 1, 0
      %v4273 = vsel %vm4241, 1, 0
      %v4274 = vsel %vm4242, 1, 0
      %v4275 = vsel %vm4243, 1, 0
      %v4276 = vsel %vm4244, 1, 0
      %v4277 = vsel %vm4245, 1, 0
      %v4278 = vsel %vm4246, 1, 0
      %v4279 = vsel %vm4247, 1, 0
      %v4280 = vsel %vm4248, 1, 0
      %v4281 = vsel %vm4249, 1, 0
      %v4282 = vsel %vm4250, 1, 0
      %v4283 = vsel %vm4251, 1, 0
      %v4284 = vsel %vm4252, 1, 0
      %v4285 = vsel %vm4253, 1, 0
      %v4286 = vsel %vm4254, 1, 0
      %v4287 = vsel %vm4255, 1, 0
      %v4288 = vsel %vm4256, 1, 0
      %v4289 = vsel %vm4257, 1, 0
      %v4290 = vsel %vm4258, 1, 0
      %v4291 = vsel %vm4259, 1, 0
      %v4292 = vsel %vm4260, 1, 0
      %v4293 = vsel %vm4261, 1, 0
      %v4294 = vsel %vm4262, 1, 0
      %v4295 = vsel %vm4263, 1, 0
      %v4296 = vsel %vm4264, 1, 0
      %v4297 = vsel %vm4265, 1, 0
      %v4298 = vsel %vm4266, 1, 0
      %v4299 = vsel %vm4267, 1, 0
      %v4300 = vsel %vm4268, 1, 0
      %v4301 = vadd.s32 %v4205, %v4269
      %v4302 = vadd.s32 %v4206, %v4270
      %v4303 = vadd.s32 %v4207, %v4271
      %v4304 = vadd.s32 %v4208, %v4272
      %v4305 = vadd.s32 %v4209, %v4273
      %v4306 = vadd.s32 %v4210, %v4274
      %v4307 = vadd.s32 %v4211, %v4275
      %v4308 = vadd.s32 %v4212, %v4276
      %v4309 = vadd.s32 %v4213, %v4277
      %v4310 = vadd.s32 %v4214, %v4278
      %v4311 = vadd.s32 %v4215, %v4279
      %v4312 = vadd.s32 %v4216, %v4280
      %v4313 = vadd.s32 %v4217, %v4281
      %v4314 = vadd.s32 %v4218, %v4282
      %v4315 = vadd.s32 %v4219, %v4283
      %v4316 = vadd.s32 %v4220, %v4284
      %v4317 = vadd.s32 %v4221, %v4285
      %v4318 = vadd.s32 %v4222, %v4286
      %v4319 = vadd.s32 %v4223, %v4287
      %v4320 = vadd.s32 %v4224, %v4288
      %v4321 = vadd.s32 %v4225, %v4289
      %v4322 = vadd.s32 %v4226, %v4290
      %v4323 = vadd.s32 %v4227, %v4291
      %v4324 = vadd.s32 %v4228, %v4292
      %v4325 = vadd.s32 %v4229, %v4293
      %v4326 = vadd.s32 %v4230, %v4294
      %v4327 = vadd.s32 %v4231, %v4295
      %v4328 = vadd.s32 %v4232, %v4296
      %v4329 = vadd.s32 %v4233, %v4297
      %v4330 = vadd.s32 %v4234, %v4298
      %v4331 = vadd.s32 %v4235, %v4299
      %v4332 = vadd.s32 %v4236, %v4300
      %vm4333 = vcmp.eq.s32.totalorder %v4301, %v4076
      %vm4334 = vcmp.eq.s32.totalorder %v4302, %v4076
      %vm4335 = vcmp.eq.s32.totalorder %v4303, %v4076
      %vm4336 = vcmp.eq.s32.totalorder %v4304, %v4076
      %vm4337 = vcmp.eq.s32.totalorder %v4305, %v4076
      %vm4338 = vcmp.eq.s32.totalorder %v4306, %v4076
      %vm4339 = vcmp.eq.s32.totalorder %v4307, %v4076
      %vm4340 = vcmp.eq.s32.totalorder %v4308, %v4076
      %vm4341 = vcmp.eq.s32.totalorder %v4309, %v4076
      %vm4342 = vcmp.eq.s32.totalorder %v4310, %v4076
      %vm4343 = vcmp.eq.s32.totalorder %v4311, %v4076
      %vm4344 = vcmp.eq.s32.totalorder %v4312, %v4076
      %vm4345 = vcmp.eq.s32.totalorder %v4313, %v4076
      %vm4346 = vcmp.eq.s32.totalorder %v4314, %v4076
      %vm4347 = vcmp.eq.s32.totalorder %v4315, %v4076
      %vm4348 = vcmp.eq.s32.totalorder %v4316, %v4076
      %vm4349 = vcmp.eq.s32.totalorder %v4317, %v4076
      %vm4350 = vcmp.eq.s32.totalorder %v4318, %v4076
      %vm4351 = vcmp.eq.s32.totalorder %v4319, %v4076
      %vm4352 = vcmp.eq.s32.totalorder %v4320, %v4076
      %vm4353 = vcmp.eq.s32.totalorder %v4321, %v4076
      %vm4354 = vcmp.eq.s32.totalorder %v4322, %v4076
      %vm4355 = vcmp.eq.s32.totalorder %v4323, %v4076
      %vm4356 = vcmp.eq.s32.totalorder %v4324, %v4076
      %vm4357 = vcmp.eq.s32.totalorder %v4325, %v4076
      %vm4358 = vcmp.eq.s32.totalorder %v4326, %v4076
      %vm4359 = vcmp.eq.s32.totalorder %v4327, %v4076
      %vm4360 = vcmp.eq.s32.totalorder %v4328, %v4076
      %vm4361 = vcmp.eq.s32.totalorder %v4329, %v4076
      %vm4362 = vcmp.eq.s32.totalorder %v4330, %v4076
      %vm4363 = vcmp.eq.s32.totalorder %v4331, %v4076
      %vm4364 = vcmp.eq.s32.totalorder %v4332, %v4076
      %v4365 = vsel %vm4333, %v3884, 0.0
      %v4366 = vsel %vm4334, %v3889, 0.0
      %v4367 = vsel %vm4335, %v3894, 0.0
      %v4368 = vsel %vm4336, %v3899, 0.0
      %v4369 = vsel %vm4337, %v3904, 0.0
      %v4370 = vsel %vm4338, %v3909, 0.0
      %v4371 = vsel %vm4339, %v3914, 0.0
      %v4372 = vsel %vm4340, %v3919, 0.0
      %v4373 = vsel %vm4341, %v3924, 0.0
      %v4374 = vsel %vm4342, %v3929, 0.0
      %v4375 = vsel %vm4343, %v3934, 0.0
      %v4376 = vsel %vm4344, %v3939, 0.0
      %v4377 = vsel %vm4345, %v3944, 0.0
      %v4378 = vsel %vm4346, %v3949, 0.0
      %v4379 = vsel %vm4347, %v3954, 0.0
      %v4380 = vsel %vm4348, %v3959, 0.0
      %v4381 = vsel %vm4349, %v3964, 0.0
      %v4382 = vsel %vm4350, %v3969, 0.0
      %v4383 = vsel %vm4351, %v3974, 0.0
      %v4384 = vsel %vm4352, %v3979, 0.0
      %v4385 = vsel %vm4353, %v3984, 0.0
      %v4386 = vsel %vm4354, %v3989, 0.0
      %v4387 = vsel %vm4355, %v3994, 0.0
      %v4388 = vsel %vm4356, %v3999, 0.0
      %v4389 = vsel %vm4357, %v4004, 0.0
      %v4390 = vsel %vm4358, %v4009, 0.0
      %v4391 = vsel %vm4359, %v4014, 0.0
      %v4392 = vsel %vm4360, %v4019, 0.0
      %v4393 = vsel %vm4361, %v4024, 0.0
      %v4394 = vsel %vm4362, %v4029, 0.0
      %v4395 = vsel %vm4363, %v4034, 0.0
      %v4396 = vsel %vm4364, %v4039, 0.0
      %vm4397 = vcmask 31744
      %v4398 = vsel %vm4397, %v4365, 0.0
      %4399 = vadd.xlane.f32.xlu0 %v4398
      %v4400 = vpop.xlane.xlu0 %4399
      %v4401 = vsel %vm4397, %v4366, 0.0
      %4402 = vadd.xlane.f32.xlu0 %v4401
      %v4403 = vpop.xlane.xlu0 %4402
      %v4404 = vsel %vm4397, %v4367, 0.0
      %4405 = vadd.xlane.f32.xlu0 %v4404
      %v4406 = vpop.xlane.xlu0 %4405
      %v4407 = vsel %vm4397, %v4368, 0.0
      %4408 = vadd.xlane.f32.xlu0 %v4407
      %v4409 = vpop.xlane.xlu0 %4408
      %v4410 = vsel %vm4397, %v4369, 0.0
      %4411 = vadd.xlane.f32.xlu0 %v4410
      %v4412 = vpop.xlane.xlu0 %4411
      %v4413 = vsel %vm4397, %v4370, 0.0
      %4414 = vadd.xlane.f32.xlu0 %v4413
      %v4415 = vpop.xlane.xlu0 %4414
      %v4416 = vsel %vm4397, %v4371, 0.0
      %4417 = vadd.xlane.f32.xlu0 %v4416
      %v4418 = vpop.xlane.xlu0 %4417
      %v4419 = vsel %vm4397, %v4372, 0.0
      %4420 = vadd.xlane.f32.xlu0 %v4419
      %v4421 = vpop.xlane.xlu0 %4420
      %v4422 = vsel %vm4397, %v4373, 0.0
      %4423 = vadd.xlane.f32.xlu0 %v4422
      %v4424 = vpop.xlane.xlu0 %4423
      %v4425 = vsel %vm4397, %v4374, 0.0
      %4426 = vadd.xlane.f32.xlu0 %v4425
      %v4427 = vpop.xlane.xlu0 %4426
      %v4428 = vsel %vm4397, %v4375, 0.0
      %4429 = vadd.xlane.f32.xlu0 %v4428
      %v4430 = vpop.xlane.xlu0 %4429
      %v4431 = vsel %vm4397, %v4376, 0.0
      %4432 = vadd.xlane.f32.xlu0 %v4431
      %v4433 = vpop.xlane.xlu0 %4432
      %v4434 = vsel %vm4397, %v4377, 0.0
      %4435 = vadd.xlane.f32.xlu0 %v4434
      %v4436 = vpop.xlane.xlu0 %4435
      %v4437 = vsel %vm4397, %v4378, 0.0
      %4438 = vadd.xlane.f32.xlu0 %v4437
      %v4439 = vpop.xlane.xlu0 %4438
      %v4440 = vsel %vm4397, %v4379, 0.0
      %4441 = vadd.xlane.f32.xlu0 %v4440
      %v4442 = vpop.xlane.xlu0 %4441
      %v4443 = vsel %vm4397, %v4380, 0.0
      %4444 = vadd.xlane.f32.xlu0 %v4443
      %v4445 = vpop.xlane.xlu0 %4444
      %v4446 = vsel %vm4397, %v4381, 0.0
      %4447 = vadd.xlane.f32.xlu0 %v4446
      %v4448 = vpop.xlane.xlu0 %4447
      %v4449 = vsel %vm4397, %v4382, 0.0
      %4450 = vadd.xlane.f32.xlu0 %v4449
      %v4451 = vpop.xlane.xlu0 %4450
      %v4452 = vsel %vm4397, %v4383, 0.0
      %4453 = vadd.xlane.f32.xlu0 %v4452
      %v4454 = vpop.xlane.xlu0 %4453
      %v4455 = vsel %vm4397, %v4384, 0.0
      %4456 = vadd.xlane.f32.xlu0 %v4455
      %v4457 = vpop.xlane.xlu0 %4456
      %v4458 = vsel %vm4397, %v4385, 0.0
      %4459 = vadd.xlane.f32.xlu0 %v4458
      %v4460 = vpop.xlane.xlu0 %4459
      %v4461 = vsel %vm4397, %v4386, 0.0
      %4462 = vadd.xlane.f32.xlu0 %v4461
      %v4463 = vpop.xlane.xlu0 %4462
      %v4464 = vsel %vm4397, %v4387, 0.0
      %4465 = vadd.xlane.f32.xlu0 %v4464
      %v4466 = vpop.xlane.xlu0 %4465
      %v4467 = vsel %vm4397, %v4388, 0.0
      %4468 = vadd.xlane.f32.xlu0 %v4467
      %v4469 = vpop.xlane.xlu0 %4468
      %v4470 = vsel %vm4397, %v4389, 0.0
      %4471 = vadd.xlane.f32.xlu0 %v4470
      %v4472 = vpop.xlane.xlu0 %4471
      %v4473 = vsel %vm4397, %v4390, 0.0
      %4474 = vadd.xlane.f32.xlu0 %v4473
      %v4475 = vpop.xlane.xlu0 %4474
      %v4476 = vsel %vm4397, %v4391, 0.0
      %4477 = vadd.xlane.f32.xlu0 %v4476
      %v4478 = vpop.xlane.xlu0 %4477
      %v4479 = vsel %vm4397, %v4392, 0.0
      %4480 = vadd.xlane.f32.xlu0 %v4479
      %v4481 = vpop.xlane.xlu0 %4480
      %v4482 = vsel %vm4397, %v4393, 0.0
      %4483 = vadd.xlane.f32.xlu0 %v4482
      %v4484 = vpop.xlane.xlu0 %4483
      %v4485 = vsel %vm4397, %v4394, 0.0
      %4486 = vadd.xlane.f32.xlu0 %v4485
      %v4487 = vpop.xlane.xlu0 %4486
      %v4488 = vsel %vm4397, %v4395, 0.0
      %4489 = vadd.xlane.f32.xlu0 %v4488
      %v4490 = vpop.xlane.xlu0 %4489
      %v4491 = vsel %vm4397, %v4396, 0.0
      %4492 = vadd.xlane.f32.xlu0 %v4491
      %v4493 = vpop.xlane.xlu0 %4492
      %v4494 = vld [vmem:[%s9] sm:$0xff]
      %v4495 = vld [vmem:[%s9 + $0x8] sm:$0xff]
      %v4496 = vld [vmem:[%s9 + $0x10] sm:$0xff]
      %v4497 = vld [vmem:[%s9 + $0x18] sm:$0xff]
      %v4498 = vld [vmem:[%s9 + $0x20] sm:$0xff]
      %v4499 = vld [vmem:[%s9 + $0x28] sm:$0xff]
      %v4500 = vld [vmem:[%s9 + $0x30] sm:$0xff]
      %v4501 = vld [vmem:[%s9 + $0x38] sm:$0xff]
      %v4502 = vld [vmem:[%s9 + $0x40] sm:$0xff]
      %v4503 = vld [vmem:[%s9 + $0x48] sm:$0xff]
      %v4504 = vld [vmem:[%s9 + $0x50] sm:$0xff]
      %v4505 = vld [vmem:[%s9 + $0x58] sm:$0xff]
      %v4506 = vld [vmem:[%s9 + $0x60] sm:$0xff]
      %v4507 = vld [vmem:[%s9 + $0x68] sm:$0xff]
      %v4508 = vld [vmem:[%s9 + $0x70] sm:$0xff]
      %v4509 = vld [vmem:[%s9 + $0x78] sm:$0xff]
      %v4510 = vld [vmem:[%s10] sm:$0xff]
      %v4511 = vld [vmem:[%s10 + $0x8] sm:$0xff]
      %v4512 = vld [vmem:[%s10 + $0x10] sm:$0xff]
      %v4513 = vld [vmem:[%s10 + $0x18] sm:$0xff]
      %v4514 = vld [vmem:[%s10 + $0x20] sm:$0xff]
      %v4515 = vld [vmem:[%s10 + $0x28] sm:$0xff]
      %v4516 = vld [vmem:[%s10 + $0x30] sm:$0xff]
      %v4517 = vld [vmem:[%s10 + $0x38] sm:$0xff]
      %4518 = vmatprep.subr.mxu0 0.0
      %4519 = vmatpush1.msra.mxu0 %v4400
      %4520 = vmatprep.subr.mxu0 0.0
      %4521 = vmatpush1.msra.mxu0 %v4403
      %4522 = vmatprep.subr.mxu0 0.0
      %4523 = vmatpush1.msra.mxu0 %v4406
      %4524 = vmatprep.subr.mxu0 0.0
      %4525 = vmatpush1.msra.mxu0 %v4409
      %4526 = vmatprep.subr.mxu0 0.0
      %4527 = vmatpush1.msra.mxu0 %v4412
      %4528 = vmatprep.subr.mxu0 0.0
      %4529 = vmatpush1.msra.mxu0 %v4415
      %4530 = vmatprep.subr.mxu0 0.0
      %4531 = vmatpush1.msra.mxu0 %v4418
      %4532 = vmatprep.subr.mxu0 0.0
      %4533 = vmatpush1.msra.mxu0 %v4421
      %4534 = vmatprep.subr.mxu0 0.0
      %4535 = vmatpush1.msra.mxu0 %v4424
      %4536 = vmatprep.subr.mxu0 0.0
      %4537 = vmatpush1.msra.mxu0 %v4427
      %4538 = vmatprep.subr.mxu0 0.0
      %4539 = vmatpush1.msra.mxu0 %v4430
      %4540 = vmatprep.subr.mxu0 0.0
      %4541 = vmatpush1.msra.mxu0 %v4433
      %4542 = vmatprep.subr.mxu0 0.0
      %4543 = vmatpush1.msra.mxu0 %v4436
      %4544 = vmatprep.subr.mxu0 0.0
      %4545 = vmatpush1.msra.mxu0 %v4439
      %4546 = vmatprep.subr.mxu0 0.0
      %4547 = vmatpush1.msra.mxu0 %v4442
      %4548 = vmatprep.subr.mxu0 0.0
      %4549 = vmatpush1.msra.mxu0 %v4445
      %4550 = vmatprep.subr.mxu0 0.0
      %4551 = vmatpush1.msra.mxu0 %v4448
      %4552 = vmatprep.subr.mxu0 0.0
      %4553 = vmatpush1.msra.mxu0 %v4451
      %4554 = vmatprep.subr.mxu0 0.0
      %4555 = vmatpush1.msra.mxu0 %v4454
      %4556 = vmatprep.subr.mxu0 0.0
      %4557 = vmatpush1.msra.mxu0 %v4457
      %4558 = vmatprep.subr.mxu0 0.0
      %4559 = vmatpush1.msra.mxu0 %v4460
      %4560 = vmatprep.subr.mxu0 0.0
      %4561 = vmatpush1.msra.mxu0 %v4463
      %4562 = vmatprep.subr.mxu0 0.0
      %4563 = vmatpush1.msra.mxu0 %v4466
      %4564 = vmatprep.subr.mxu0 0.0
      %4565 = vmatpush1.msra.mxu0 %v4469
      %4566 = vmatprep.subr.mxu0 0.0
      %4567 = vmatpush1.msra.mxu0 %v4472
      %4568 = vmatprep.subr.mxu0 0.0
      %4569 = vmatpush1.msra.mxu0 %v4475
      %4570 = vmatprep.subr.mxu0 0.0
      %4571 = vmatpush1.msra.mxu0 %v4478
      %4572 = vmatprep.subr.mxu0 0.0
      %4573 = vmatpush1.msra.mxu0 %v4481
      %4574 = vmatprep.subr.mxu0 0.0
      %4575 = vmatpush1.msra.mxu0 %v4484
      %4576 = vmatprep.subr.mxu0 0.0
      %4577 = vmatpush1.msra.mxu0 %v4487
      %4578 = vmatprep.subr.mxu0 0.0
      %4579 = vmatpush1.msra.mxu0 %v4490
      %4580 = vmatprep.subr.mxu0 0.0
      %4581 = vmatpush1.msra.mxu0 %v4493
      %4582 = vmatprep.mubr.f32.mxu0 %v4495
      %4583 = vmatmul.mubr.f32.gmra.mrb[0].mxu0 %v4494
      %v4584 = vpop.f32.mrb[0].mxu0
      %v4585 = vadd.f32 %v4510, %v4584
      %v4586 = vpop.f32.mrb[0].mxu0
      %4587 = vmatprep.mubr.f32.mxu0 %v4497
      %4588 = vmatmul.mubr.f32.gmra.mrb[0].mxu0 %v4496
      %v4589 = vpop.f32.mrb[0].mxu0
      %v4590 = vadd.f32 %v4511, %v4589
      %v4591 = vpop.f32.mrb[0].mxu0
      %4592 = vmatprep.mubr.f32.mxu0 %v4499
      %4593 = vmatmul.mubr.f32.gmra.mrb[0].mxu0 %v4498
      %v4594 = vpop.f32.mrb[0].mxu0
      %v4595 = vadd.f32 %v4512, %v4594
      %v4596 = vpop.f32.mrb[0].mxu0
      %4597 = vmatprep.mubr.f32.mxu0 %v4501
      %4598 = vmatmul.mubr.f32.gmra.mrb[0].mxu0 %v4500
      %v4599 = vpop.f32.mrb[0].mxu0
      %v4600 = vadd.f32 %v4513, %v4599
      %v4601 = vpop.f32.mrb[0].mxu0
      %4602 = vmatprep.mubr.f32.mxu0 %v4503
      %4603 = vmatmul.mubr.f32.gmra.mrb[0].mxu0 %v4502
      %v4604 = vpop.f32.mrb[0].mxu0
      %v4605 = vadd.f32 %v4514, %v4604
      %v4606 = vpop.f32.mrb[0].mxu0
      %4607 = vmatprep.mubr.f32.mxu0 %v4505
      %4608 = vmatmul.mubr.f32.gmra.mrb[0].mxu0 %v4504
      %v4609 = vpop.f32.mrb[0].mxu0
      %v4610 = vadd.f32 %v4515, %v4609
      %v4611 = vpop.f32.mrb[0].mxu0
      %4612 = vmatprep.mubr.f32.mxu0 %v4507
      %4613 = vmatmul.mubr.f32.gmra.mrb[0].mxu0 %v4506
      %v4614 = vpop.f32.mrb[0].mxu0
      %v4615 = vadd.f32 %v4516, %v4614
      %v4616 = vpop.f32.mrb[0].mxu0
      %4617 = vmatprep.mubr.f32.mxu0 %v4509
      %4618 = vmatmul.mubr.f32.gmra.mrb[0].mxu0 %v4508
      %v4619 = vpop.f32.mrb[0].mxu0
      %v4620 = vadd.f32 %v4517, %v4619
      %v4621 = vpop.f32.mrb[0].mxu0
      %4622 = vdwg.mxu0
      %v4623 = vmax.f32 %v4585, 0.0
      %v4624 = vmax.f32 %v4590, 0.0
      %v4625 = vmax.f32 %v4595, 0.0
      %v4626 = vmax.f32 %v4600, 0.0
      %v4627 = vmax.f32 %v4605, 0.0
      %v4628 = vmax.f32 %v4610, 0.0
      %v4629 = vmax.f32 %v4615, 0.0
      %v4630 = vmax.f32 %v4620, 0.0
      %v4631 = vld [vmem:[%s11] sm:$0xf]
      %v4632 = vld [vmem:[%s12] sm:$0xf]
      %v4634 = vsel %vm3720, %v4631, 0
      %4636 = vmatprep.subr.mxu0 0.0
      %4637 = vmatpush1.msra.mxu0 %v4623
      %4638 = vmatprep.subr.mxu0 0.0
      %4639 = vmatpush1.msra.mxu0 %v4624
      %4640 = vmatprep.subr.mxu0 0.0
      %4641 = vmatpush1.msra.mxu0 %v4625
      %4642 = vmatprep.subr.mxu0 0.0
      %4643 = vmatpush1.msra.mxu0 %v4626
      %4644 = vmatprep.subr.mxu0 0.0
      %4645 = vmatpush1.msra.mxu0 %v4627
      %4646 = vmatprep.subr.mxu0 0.0
      %4647 = vmatpush1.msra.mxu0 %v4628
      %4648 = vmatprep.subr.mxu0 0.0
      %4649 = vmatpush1.msra.mxu0 %v4629
      %4650 = vmatprep.subr.mxu0 0.0
      %4651 = vmatpush1.msra.mxu0 %v4630
      %4652 = vmatprep.subr.mxu0 0.0
      %4653 = vmatpush1.msra.mxu0 0.0
      %4654 = vmatprep.subr.mxu0 0.0
      %4655 = vmatpush1.msra.mxu0 0.0
      %4656 = vmatprep.subr.mxu0 0.0
      %4657 = vmatpush1.msra.mxu0 0.0
      %4658 = vmatprep.subr.mxu0 0.0
      %4659 = vmatpush1.msra.mxu0 0.0
      %4660 = vmatprep.subr.mxu0 0.0
      %4661 = vmatpush1.msra.mxu0 0.0
      %4662 = vmatprep.subr.mxu0 0.0
      %4663 = vmatpush1.msra.mxu0 0.0
      %4664 = vmatprep.subr.mxu0 0.0
      %4665 = vmatpush1.msra.mxu0 0.0
      %4666 = vmatprep.subr.mxu0 0.0
      %4667 = vmatpush1.msra.mxu0 0.0
      %4668 = vmatprep.subr.mxu0 0.0
      %4669 = vmatpush1.msra.mxu0 0.0
      %4670 = vmatprep.subr.mxu0 0.0
      %4671 = vmatpush1.msra.mxu0 0.0
      %4672 = vmatprep.subr.mxu0 0.0
      %4673 = vmatpush1.msra.mxu0 0.0
      %4674 = vmatprep.subr.mxu0 0.0
      %4675 = vmatpush1.msra.mxu0 0.0
      %4676 = vmatprep.subr.mxu0 0.0
      %4677 = vmatpush1.msra.mxu0 0.0
      %4678 = vmatprep.subr.mxu0 0.0
      %4679 = vmatpush1.msra.mxu0 0.0
      %4680 = vmatprep.subr.mxu0 0.0
      %4681 = vmatpush1.msra.mxu0 0.0
      %4682 = vmatprep.subr.mxu0 0.0
      %4683 = vmatpush1.msra.mxu0 0.0
      %4684 = vmatprep.subr.mxu0 0.0
      %4685 = vmatpush1.msra.mxu0 0.0
      %4686 = vmatprep.subr.mxu0 0.0
      %4687 = vmatpush1.msra.mxu0 0.0
      %4688 = vmatprep.subr.mxu0 0.0
      %4689 = vmatpush1.msra.mxu0 0.0
      %4690 = vmatprep.subr.mxu0 0.0
      %4691 = vmatpush1.msra.mxu0 0.0
      %4692 = vmatprep.subr.mxu0 0.0
      %4693 = vmatpush1.msra.mxu0 0.0
      %4694 = vmatprep.subr.mxu0 0.0
      %4695 = vmatpush1.msra.mxu0 0.0
      %4696 = vmatprep.subr.mxu0 0.0
      %4697 = vmatpush1.msra.mxu0 0.0
      %4698 = vmatprep.subr.mxu0 0.0
      %4699 = vmatpush1.msra.mxu0 0.0
      %4700 = vmatprep.mubr.f32.mxu0 0.0
      %4701 = vmatmul.mubr.f32.gmra.mrb[0].mxu0 %v4634
      %v4702 = vpop.f32.mrb[0].mxu0
      %v4703 = vadd.f32 %v4632, %v4702
      %v4704 = vpop.f32.mrb[0].mxu0
      %4705 = vdwg.mxu0
      %v4706 = vtanh.pop %v4703
      %v4707 = vmul.f32 %v4706, 3.1415927
      %v4708 = vmul.f32 %v4707, %v4707
      %v4709 = vmul.f32 %v4708, -1.1470745e-11
      %v4710 = vadd.f32 %v4709, 2.0876756e-09
      %v4711 = vmul.f32 %v4708, %v4710
      %v4712 = vadd.f32 %v4711, -2.755732e-07
      %v4713 = vmul.f32 %v4708, %v4712
      %v4714 = vadd.f32 %v4713, 2.4801588e-05
      %v4715 = vmul.f32 %v4708, %v4714
      %v4716 = vadd.f32 %v4715, -0.0013888889
      %v4717 = vmul.f32 %v4708, %v4716
      %v4718 = vadd.f32 %v4717, 0.041666668
      %v4719 = vmul.f32 %v4708, %v4718
      %v4720 = vadd.f32 %v4719, -0.5
      %v4721 = vmul.f32 %v4708, %v4720
      %v4722 = vadd.f32 %v4721, 1.0
      %vm4723 = vcmask 3072
      %v4724 = vsel %vm4723, %v4722, 0.0
      %v4725 = vrot.slane %v4724, 4
      %v4726 = vadd.f32 %v4724, %v4725
      %v4727 = vrot.slane %v4726, 2
      %v4728 = vadd.f32 %v4726, %v4727
      %v4729 = vrot.slane %v4728, 1
      %v4730 = vadd.f32 %v4728, %v4729
      %v4731 = vmul.f32 %v4730, 0.25
      %v4732 = vxor.u32 %v4731, 2147483648
      %v4733 = vmul.f32 %v4732, 1.442695
      %v4734 = vpow.pop %v4733
      %v4735 = vadd.f32 %v4734, 1.0
      %v4736 = vrcp.pop %v4735
      %v4737 = vmul.f32 1.0, %v4736
      %vm4738 = vcmp.eq.s32.totalorder %v4076, 0
      %v4739 = vsub.f32 1.0, %v4737
      %4741 = vset.pattern.permute.xlu0 0
      %4742 = vperm.xlu0 %4741, %v4737
      %v4743 = vpop.permute.xlu0 %4742
      %4746 = vset.pattern.permute.xlu0 0
      %4747 = vperm.xlu0 %4746, %v4739
      %v4748 = vpop.permute.xlu0 %4747
      %v4750 = vsel %vm4738, %v4743, %v4748
      %vm4751 = vcmask 8192
      %4752 = vst.msk [vmem:[%s436] sm:$0x1] %vm4751, %v4750
      %p4753 = scmp.lt.s32.totalorder %s24, 7
      %s4754 = scalar_select %p4753, %s24, 7
      %s4755 = scalar_lea.vmem %s13, %s4754
      // Predicated region
      $region73: #{neural_net_forward.1} parent=71 // pred_check
        %p4756 = pneg %p320
      $region74: #{neural_net_forward.1} parent=71 // pred_check_branch
        %4758 = sbr.rel (%p4756) target = $region76
      $region75: #{neural_net_forward.1} parent=71 // pred_region
        _
      $region76: #{neural_net_forward.1} parent=71 // pred_fallthru
        _
    $region72: #{neural_net_forward.1} parent=5 // pred_fallthru
      _
    %p4759 = scmp.le.s32.totalorder 2, %s19
    // Predicated region
    $region77: #{neural_net_forward.1} parent=5 // pred_check
      %p4760 = pneg %p4759
    $region78: #{neural_net_forward.1} parent=5 // pred_check_branch
      %4762 = sbr.rel (%p4760) target = $region80
    $region79: #{neural_net_forward.1} parent=5 // pred_region
      %s4763 = ssub.s32 %s19, 2
      // Predicated region
      $region81: #{neural_net_forward.1} parent=79 // pred_check
        %p4764 = pneg %p326
      $region82: #{neural_net_forward.1} parent=79 // pred_check_branch
        %4766 = sbr.rel (%p4764) target = $region84
      $region83: #{neural_net_forward.1} parent=79 // pred_region
        %p4767 = scmp.lt.s32.totalorder %s25, 7
        %s4768 = scalar_select %p4767, %s25, 7
        %s4769 = scalar_lea.vmem %s13, %s4768
      $region84: #{neural_net_forward.1} parent=79 // pred_fallthru
        _
    $region80: #{neural_net_forward.1} parent=5 // pred_fallthru
      _
  $region6: #{neural_net_forward.1} parent=0 // loop_footer
    %s23 = sadd.s32 1, %s19
  $region7: #{neural_net_forward.1} parent=0 // loop_footer_branch
    %18 = sbr.rel target = $region3
  $region8: #{neural_net_forward.1} parent=0 // loop_exit
    _

</llo_original>
